<compile_context>
chip_gen: v7x
topology: tpu7x:2x2x1
jax: 0.10.0
libtpu: 0.0.40
codegen_flags: <defaults>
</compile_context>

<pallas_src>
import functools

import jax
import jax.numpy as jnp
from jax.experimental import pallas as pl
from jax.experimental.pallas import tpu as pltpu


def _block_kernel(*refs, cpg, eps, with_film):
    if with_film:
        (xp_ref, w_ref, b_ref, g_ref, be_ref, m_ref, mt_ref,
         sc_ref, sh_ref, o_ref) = refs
    else:
        (xp_ref, w_ref, b_ref, g_ref, be_ref, m_ref, mt_ref, o_ref) = refs
        sc_ref = sh_ref = None

    Bt, Hp, Wp, Cin = xp_ref.shape
    H, W = Hp - 2, Wp - 2
    HW = H * W
    Cpad = w_ref.shape[-1]
    C_store = o_ref.shape[-1]
    inv_n = 1.0 / float(HW * cpg)          # elements per (sample, group)

    # ---- 3x3 conv: 9 shifted bf16 matmuls, f32 accumulation --------------
    # dx (width) is the sublane axis: pre-slice the 3 dx-shifted slabs ONCE
    # (3 relayout copies, not 9) and reuse across dy; dy is an outer dim so
    # slicing it is pure addressing.
    x_dx = [xp_ref[:, :, dx:dx + W, :] for dx in range(3)]   # (Bt, Hp, W, Cin)

    acc = jnp.zeros((Bt * HW, Cpad), jnp.float32)
    for dy in range(3):
        for dx in range(3):
            tap = x_dx[dx][:, dy:dy + H]                     # (Bt, H, W, Cin)
            tap = tap.reshape(Bt * HW, Cin)                  # lane dim unchanged
            acc = acc + jnp.dot(tap, w_ref[dy * 3 + dx],
                                preferred_element_type=jnp.float32)
    acc = acc.reshape(Bt, HW, Cpad)          # conv output WITHOUT bias

    # ---- GroupNorm: one pass over acc, conv bias folded analytically -----
    b = b_ref[...]                                           # (1, Cpad)
    sum_c = jnp.sum(acc, axis=1)                             # (Bt, Cpad)
    sumsq_c = jnp.sum(acc * acc, axis=1)                     # (Bt, Cpad)
    # statistics of z = acc + bias
    sum_z = sum_c + float(HW) * b
    sumsq_z = sumsq_c + 2.0 * b * sum_c + float(HW) * (b * b)
    mean_g = jnp.dot(sum_z, m_ref[...],
                     preferred_element_type=jnp.float32) * inv_n     # (Bt, G)
    ex2_g = jnp.dot(sumsq_z, m_ref[...],
                    preferred_element_type=jnp.float32) * inv_n      # (Bt, G)
    var_g = jnp.maximum(ex2_g - mean_g * mean_g, 0.0)
    inv_g = jax.lax.rsqrt(var_g + eps)
    mean_c = jnp.dot(mean_g, mt_ref[...],
                     preferred_element_type=jnp.float32)             # (Bt, Cpad)
    inv_c = jnp.dot(inv_g, mt_ref[...],
                    preferred_element_type=jnp.float32)              # (Bt, Cpad)

    # ---- fold bias + mean + affine (+ FiLM) into one per-channel FMA -----
    if with_film:
        fs = sc_ref[...].reshape(Bt, Cpad) + 1.0
        a = inv_c * g_ref[...] * fs
        d = (b - mean_c) * a + be_ref[...] * fs + sh_ref[...].reshape(Bt, Cpad)
    else:
        a = inv_c * g_ref[...]
        d = (b - mean_c) * a + be_ref[...]

    y = acc * a[:, None, :] + d[:, None, :]          # single f32 pass over acc
    y = y.astype(jnp.bfloat16)                       # bf16 epilogue (VPU/EUP)
    act = y * jax.nn.sigmoid(y)                      # SiLU
    o_ref[...] = act[:, :, :C_store].astype(o_ref.dtype)


def _vmem_capacity_bytes():
    try:
        info = pltpu.get_tpu_info()
        cap = getattr(info, "vmem_capacity_bytes", None)
        if cap:
            return int(cap)
    except Exception:
        pass
    return 64 * 1024 * 1024      # conservative default (v7x per-TensorCore)


def _pick_bt(B, Hp, Wp, Cin, Cpad, C_store, budget):
    """Samples per grid step, sized against a VMEM budget that accounts for
    double-buffered I/O blocks, the dx slabs and the f32 temporaries, and
    capped so the grid keeps >= 2 steps (pipelining / v7x megacore)."""
    H, W = Hp - 2, Wp - 2
    HW = H * W
    in_blk = Hp * Wp * Cin * 2                 # bf16 input block
    dx_slabs = 3 * Hp * W * Cin * 2            # bf16 relayout copies
    acc = HW * Cpad * 4                        # f32 conv accumulator
    fma = HW * Cpad * 4                        # f32 pre-activation temporary
    out_blk = HW * C_store * 2                 # bf16 output block
    per = 2 * in_blk + dx_slabs + acc + fma + 2 * out_blk
    bt = max(1, min(B, budget // max(per, 1)))
    if B >= 2:
        bt = min(bt, B // 2)                   # keep >= 2 grid steps
    while B % bt:
        bt -= 1
    return bt


def block_forward_nhwc(x_nhwc, params, scale_shift=None, *, groups=8):
    """NHWC-in / NHWC-out (bf16) forward of Block.

    scale_shift: optional (scale, shift), each (B, Cout, 1, 1) or (B, Cout).
    Output is bf16 (downstream UNet layers consume bf16)."""
    w, b = params["w"], params["b"]
    gamma, beta = params["gamma"], params["beta"]
    B, H, W, Cin = x_nhwc.shape
    Cout = w.shape[0]
    assert w.shape[1] == Cin
    assert Cout % groups == 0, "GroupNorm requires Cout % groups == 0"
    cpg = Cout // groups
    Cpad = ((Cout + 127) // 128) * 128
    # Below 128 output channels, a lane-dense Cpad store would be up to 8x the
    # necessary HBM writeback plus an XLA slice pass: store Cout directly.
    C_store = Cout if Cout < 128 else Cpad
    HW = H * W
    Hp, Wp = H + 2, W + 2

    # Zero-pad spatial (conv padding=1), bf16 activations for the MXU.
    xp = jnp.pad(x_nhwc.astype(jnp.bfloat16), ((0, 0), (1, 1), (1, 1), (0, 0)))

    # Torch conv weight (Cout, Cin, 3, 3) -> tap-major (9, Cin, Cpad), bf16.
    w_k = jnp.transpose(w, (2, 3, 1, 0)).reshape(9, Cin, Cout)
    w_k = jnp.pad(w_k, ((0, 0), (0, 0), (0, Cpad - Cout))).astype(jnp.bfloat16)

    def pad_vec(v):
        return jnp.pad(v.reshape(1, Cout).astype(jnp.float32),
                       ((0, 0), (0, Cpad - Cout)))

    b2, g2, be2 = pad_vec(b), pad_vec(gamma), pad_vec(beta)

    # Group-membership matrices, hoisted out of the kernel.
    # Padded channels belong to no group (zero rows/cols).
    c_idx = jnp.arange(Cpad)
    M = (c_idx[:, None] // cpg) == jnp.arange(groups)[None, :]
    M = jnp.where(c_idx[:, None] < Cout, M, False).astype(jnp.float32)  # (Cpad, G)
    MT = M.T                                                            # (G, Cpad)

    with_film = scale_shift is not None

    vmem_cap = _vmem_capacity_bytes()
    vmem_limit = min(int(vmem_cap * 0.75), 100 * 1024 * 1024)
    # leave ~half the scoped limit for weights/constants/compiler scratch
    bt = _pick_bt(B, Hp, Wp, Cin, Cpad, C_store, vmem_limit // 2)

    in_specs = [
        pl.BlockSpec((bt, Hp, Wp, Cin), lambda i: (i, 0, 0, 0)),  # activation
        pl.BlockSpec((9, Cin, Cpad), lambda i: (0, 0, 0)),        # conv taps
        pl.BlockSpec((1, Cpad), lambda i: (0, 0)),                # bias
        pl.BlockSpec((1, Cpad), lambda i: (0, 0)),                # gamma
        pl.BlockSpec((1, Cpad), lambda i: (0, 0)),                # beta
        pl.BlockSpec((Cpad, groups), lambda i: (0, 0)),           # M
        pl.BlockSpec((groups, Cpad), lambda i: (0, 0)),           # M^T
    ]
    inputs = [xp, w_k, b2, g2, be2, M, MT]

    if with_film:
        s, sh = scale_shift
        s2 = jnp.pad(s.reshape(B, Cout).astype(jnp.float32),
                     ((0, 0), (0, Cpad - Cout)))[:, None, :]      # (B, 1, Cpad)
        sh2 = jnp.pad(sh.reshape(B, Cout).astype(jnp.float32),
                      ((0, 0), (0, Cpad - Cout)))[:, None, :]
        in_specs += [pl.BlockSpec((bt, 1, Cpad), lambda i: (i, 0, 0)),
                     pl.BlockSpec((bt, 1, Cpad), lambda i: (i, 0, 0))]
        inputs += [s2, sh2]

    kernel = functools.partial(_block_kernel, cpg=cpg, eps=1e-5,
                               with_film=with_film)

    out = pl.pallas_call(
        kernel,
        out_shape=jax.ShapeDtypeStruct((B, HW, C_store), jnp.bfloat16),
        grid=(B // bt,),
        in_specs=in_specs,
        out_specs=pl.BlockSpec((bt, HW, C_store), lambda i: (i, 0, 0)),
        compiler_params=pltpu.CompilerParams(
            dimension_semantics=("parallel",),
            vmem_limit_bytes=vmem_limit),
    )(*inputs)

    if C_store > Cout:
        out = out[:, :, :Cout]
    return out.reshape(B, H, W, Cout)


def block_forward(x_nchw, params, scale_shift=None, *, groups=8):
    """PyTorch-layout (NCHW) entry point. Returns NCHW bf16."""
    x = jnp.transpose(x_nchw, (0, 2, 3, 1))
    out = block_forward_nhwc(x, params, scale_shift, groups=groups)
    return jnp.transpose(out, (0, 3, 1, 2))


def _reference(x, params, scale_shift, groups=8, eps=1e-5,
               conv_dtype=jnp.float32):
    """Pure-JAX reference matching the PyTorch forward (NCHW, f32 output)."""
    xw = x.astype(conv_dtype).astype(jnp.float32)
    ww = params["w"].astype(conv_dtype).astype(jnp.float32)
    y = jax.lax.conv_general_dilated(
        xw, ww, (1, 1), ((1, 1), (1, 1)),
        dimension_numbers=("NCHW", "OIHW", "NCHW"))
    y = y + params["b"].reshape(1, -1, 1, 1)
    B, C, H, W = y.shape
    yg = y.reshape(B, groups, (C // groups) * H * W)
    mean = yg.mean(axis=-1, keepdims=True)
    var = yg.var(axis=-1, keepdims=True)
    yn = ((yg - mean) / jnp.sqrt(var + eps)).reshape(B, C, H, W)
    yn = (yn * params["gamma"].reshape(1, -1, 1, 1)
          + params["beta"].reshape(1, -1, 1, 1))
    if scale_shift is not None:
        s, sh = scale_shift
        yn = yn * (s + 1.0) + sh
    return yn * jax.nn.sigmoid(yn)


if __name__ == "__main__":
    B, Cin, Cout, H, W, groups = 2, 4, 16, 16, 16, 8

    key = jax.random.PRNGKey(0)
    k1, k2, k3, k4, k5, k6, k7 = jax.random.split(key, 7)
    bound = 1.0 / (Cin * 9) ** 0.5
    params = {
        "w": jax.random.uniform(k1, (Cout, Cin, 3, 3), jnp.float32, -bound, bound),
        "b": jax.random.uniform(k2, (Cout,), jnp.float32, -bound, bound),
        "gamma": jnp.ones((Cout,), jnp.float32)
                 + 0.1 * jax.random.normal(k3, (Cout,), jnp.float32),
        "beta": 0.1 * jax.random.normal(k4, (Cout,), jnp.float32),
    }
    x = jax.random.normal(k5, (B, Cin, H, W), jnp.float32)
    scale = 0.5 * jax.random.normal(k6, (B, Cout, 1, 1), jnp.float32)
    shift = 0.5 * jax.random.normal(k7, (B, Cout, 1, 1), jnp.float32)

    # With FiLM conditioning.
    out = jax.block_until_ready(block_forward(x, params, (scale, shift),
                                              groups=groups))
    assert out.shape == (B, Cout, H, W)
    assert out.dtype == jnp.bfloat16
    out_f32 = out.astype(jnp.float32)

    # Reference with matching conv precision (bf16 operands, f32 accum);
    # tolerance covers the kernel's bf16 epilogue + bf16 output store.
    ref_bf16 = _reference(x, params, (scale, shift), groups=groups,
                          conv_dtype=jnp.bfloat16)
    err = float(jnp.max(jnp.abs(out_f32 - ref_bf16)))
    assert jnp.allclose(out_f32, ref_bf16, atol=3e-2, rtol=3e-2), err

    # Full-f32 module reference (looser: bf16 conv operands + bf16 output).
    ref_f32 = _reference(x, params, (scale, shift), groups=groups)
    err32 = float(jnp.max(jnp.abs(out_f32 - ref_f32)))
    assert jnp.allclose(out_f32, ref_f32, atol=8e-2, rtol=8e-2), err32

    # Without FiLM conditioning (specialized kernel variant).
    out2 = jax.block_until_ready(block_forward(x, params, None, groups=groups))
    ref2 = _reference(x, params, None, groups=groups, conv_dtype=jnp.bfloat16)
    out2_f32 = out2.astype(jnp.float32)
    err2 = float(jnp.max(jnp.abs(out2_f32 - ref2)))
    assert jnp.allclose(out2_f32, ref2, atol=3e-2, rtol=3e-2), err2

    print("KERNEL_OK")
</pallas_src>

<mosaic_0001>
module attributes {stable_mosaic.version = 11 : i64} {
  func.func @_block_kernel(%arg0: i32, %arg1: memref<1x18x18x4xbf16, #tpu.memory_space<vmem>>, %arg2: memref<9x4x128xbf16, #tpu.memory_space<vmem>>, %arg3: memref<1x128xf32, #tpu.memory_space<vmem>>, %arg4: memref<1x128xf32, #tpu.memory_space<vmem>>, %arg5: memref<1x128xf32, #tpu.memory_space<vmem>>, %arg6: memref<128x8xf32, #tpu.memory_space<vmem>>, %arg7: memref<8x128xf32, #tpu.memory_space<vmem>>, %arg8: memref<1x1x128xf32, #tpu.memory_space<vmem>>, %arg9: memref<1x1x128xf32, #tpu.memory_space<vmem>>, %arg10: memref<1x256x16xbf16, #tpu.memory_space<vmem>>) attributes {dimension_semantics = [#tpu.dimension_semantics<parallel>], iteration_bounds = array<i64: 2>, scalar_prefetch = 0 : i64, scratch_operands = 0 : i64, tpu.core_type = #tpu.core_type<tc>, window_params = [{transform_indices = @transform_0, window_bounds = array<i64: 1, 18, 18, 4>}, {pipeline_mode = #tpu.pipeline_mode<synchronous>, transform_indices = @transform_1, window_bounds = array<i64: 9, 4, 128>}, {pipeline_mode = #tpu.pipeline_mode<synchronous>, transform_indices = @transform_2, window_bounds = array<i64: 1, 128>}, {pipeline_mode = #tpu.pipeline_mode<synchronous>, transform_indices = @transform_3, window_bounds = array<i64: 1, 128>}, {pipeline_mode = #tpu.pipeline_mode<synchronous>, transform_indices = @transform_4, window_bounds = array<i64: 1, 128>}, {pipeline_mode = #tpu.pipeline_mode<synchronous>, transform_indices = @transform_5, window_bounds = array<i64: 128, 8>}, {pipeline_mode = #tpu.pipeline_mode<synchronous>, transform_indices = @transform_6, window_bounds = array<i64: 8, 128>}, {transform_indices = @transform_7, window_bounds = array<i64: 1, 1, 128>}, {transform_indices = @transform_8, window_bounds = array<i64: 1, 1, 128>}, {transform_indices = @transform_9, window_bounds = array<i64: 1, 256, 16>}]} {
    %c0 = arith.constant 0 : index
    %c0_0 = arith.constant 0 : index
    %c0_1 = arith.constant 0 : index
    %c0_2 = arith.constant 0 : index
    %0 = vector.load %arg1[%c0, %c0_0, %c0_1, %c0_2] : memref<1x18x18x4xbf16, #tpu.memory_space<vmem>>, vector<1x18x16x4xbf16>
    %c0_3 = arith.constant 0 : index
    %c0_4 = arith.constant 0 : index
    %c1 = arith.constant 1 : index
    %c0_5 = arith.constant 0 : index
    %1 = vector.load %arg1[%c0_3, %c0_4, %c1, %c0_5] : memref<1x18x18x4xbf16, #tpu.memory_space<vmem>>, vector<1x18x16x4xbf16>
    %c0_6 = arith.constant 0 : index
    %c0_7 = arith.constant 0 : index
    %c2 = arith.constant 2 : index
    %c0_8 = arith.constant 0 : index
    %2 = vector.load %arg1[%c0_6, %c0_7, %c2, %c0_8] : memref<1x18x18x4xbf16, #tpu.memory_space<vmem>>, vector<1x18x16x4xbf16>
    %cst = arith.constant 0.000000e+00 : f32
    %3 = vector.broadcast %cst : f32 to vector<256x128xf32>
    %4 = vector.extract_strided_slice %0 {offsets = [0, 0, 0, 0], sizes = [1, 16, 16, 4], strides = [1, 1, 1, 1]} : vector<1x18x16x4xbf16> to vector<1x16x16x4xbf16>
    %5 = vector.shape_cast %4 : vector<1x16x16x4xbf16> to vector<256x4xbf16>
    %c0_9 = arith.constant 0 : index
    %c0_10 = arith.constant 0 : index
    %c0_11 = arith.constant 0 : index
    %6 = vector.load %arg2[%c0_9, %c0_10, %c0_11] : memref<9x4x128xbf16, #tpu.memory_space<vmem>>, vector<1x4x128xbf16>
    %7 = vector.shape_cast %6 : vector<1x4x128xbf16> to vector<4x128xbf16>
    %cst_12 = arith.constant dense<0.000000e+00> : vector<256x128xf32>
    %8 = tpu.matmul %5, %7, %cst_12 {dimension_numbers = #tpu.dot_dimension_numbers<[1], [0], [0], [1], [0, 0, 1, 1], [], []>} : vector<256x4xbf16>, vector<4x128xbf16>, vector<256x128xf32> -> vector<256x128xf32>
    %9 = arith.addf %3, %8 : vector<256x128xf32>
    %10 = vector.extract_strided_slice %1 {offsets = [0, 0, 0, 0], sizes = [1, 16, 16, 4], strides = [1, 1, 1, 1]} : vector<1x18x16x4xbf16> to vector<1x16x16x4xbf16>
    %11 = vector.shape_cast %10 : vector<1x16x16x4xbf16> to vector<256x4xbf16>
    %c1_13 = arith.constant 1 : index
    %c0_14 = arith.constant 0 : index
    %c0_15 = arith.constant 0 : index
    %12 = vector.load %arg2[%c1_13, %c0_14, %c0_15] : memref<9x4x128xbf16, #tpu.memory_space<vmem>>, vector<1x4x128xbf16>
    %13 = vector.shape_cast %12 : vector<1x4x128xbf16> to vector<4x128xbf16>
    %cst_16 = arith.constant dense<0.000000e+00> : vector<256x128xf32>
    %14 = tpu.matmul %11, %13, %cst_16 {dimension_numbers = #tpu.dot_dimension_numbers<[1], [0], [0], [1], [0, 0, 1, 1], [], []>} : vector<256x4xbf16>, vector<4x128xbf16>, vector<256x128xf32> -> vector<256x128xf32>
    %15 = arith.addf %9, %14 : vector<256x128xf32>
    %16 = vector.extract_strided_slice %2 {offsets = [0, 0, 0, 0], sizes = [1, 16, 16, 4], strides = [1, 1, 1, 1]} : vector<1x18x16x4xbf16> to vector<1x16x16x4xbf16>
    %17 = vector.shape_cast %16 : vector<1x16x16x4xbf16> to vector<256x4xbf16>
    %c2_17 = arith.constant 2 : index
    %c0_18 = arith.constant 0 : index
    %c0_19 = arith.constant 0 : index
    %18 = vector.load %arg2[%c2_17, %c0_18, %c0_19] : memref<9x4x128xbf16, #tpu.memory_space<vmem>>, vector<1x4x128xbf16>
    %19 = vector.shape_cast %18 : vector<1x4x128xbf16> to vector<4x128xbf16>
    %cst_20 = arith.constant dense<0.000000e+00> : vector<256x128xf32>
    %20 = tpu.matmul %17, %19, %cst_20 {dimension_numbers = #tpu.dot_dimension_numbers<[1], [0], [0], [1], [0, 0, 1, 1], [], []>} : vector<256x4xbf16>, vector<4x128xbf16>, vector<256x128xf32> -> vector<256x128xf32>
    %21 = arith.addf %15, %20 : vector<256x128xf32>
    %22 = vector.extract_strided_slice %0 {offsets = [0, 1, 0, 0], sizes = [1, 16, 16, 4], strides = [1, 1, 1, 1]} : vector<1x18x16x4xbf16> to vector<1x16x16x4xbf16>
    %23 = vector.shape_cast %22 : vector<1x16x16x4xbf16> to vector<256x4xbf16>
    %c3 = arith.constant 3 : index
    %c0_21 = arith.constant 0 : index
    %c0_22 = arith.constant 0 : index
    %24 = vector.load %arg2[%c3, %c0_21, %c0_22] : memref<9x4x128xbf16, #tpu.memory_space<vmem>>, vector<1x4x128xbf16>
    %25 = vector.shape_cast %24 : vector<1x4x128xbf16> to vector<4x128xbf16>
    %cst_23 = arith.constant dense<0.000000e+00> : vector<256x128xf32>
    %26 = tpu.matmul %23, %25, %cst_23 {dimension_numbers = #tpu.dot_dimension_numbers<[1], [0], [0], [1], [0, 0, 1, 1], [], []>} : vector<256x4xbf16>, vector<4x128xbf16>, vector<256x128xf32> -> vector<256x128xf32>
    %27 = arith.addf %21, %26 : vector<256x128xf32>
    %28 = vector.extract_strided_slice %1 {offsets = [0, 1, 0, 0], sizes = [1, 16, 16, 4], strides = [1, 1, 1, 1]} : vector<1x18x16x4xbf16> to vector<1x16x16x4xbf16>
    %29 = vector.shape_cast %28 : vector<1x16x16x4xbf16> to vector<256x4xbf16>
    %c4 = arith.constant 4 : index
    %c0_24 = arith.constant 0 : index
    %c0_25 = arith.constant 0 : index
    %30 = vector.load %arg2[%c4, %c0_24, %c0_25] : memref<9x4x128xbf16, #tpu.memory_space<vmem>>, vector<1x4x128xbf16>
    %31 = vector.shape_cast %30 : vector<1x4x128xbf16> to vector<4x128xbf16>
    %cst_26 = arith.constant dense<0.000000e+00> : vector<256x128xf32>
    %32 = tpu.matmul %29, %31, %cst_26 {dimension_numbers = #tpu.dot_dimension_numbers<[1], [0], [0], [1], [0, 0, 1, 1], [], []>} : vector<256x4xbf16>, vector<4x128xbf16>, vector<256x128xf32> -> vector<256x128xf32>
    %33 = arith.addf %27, %32 : vector<256x128xf32>
    %34 = vector.extract_strided_slice %2 {offsets = [0, 1, 0, 0], sizes = [1, 16, 16, 4], strides = [1, 1, 1, 1]} : vector<1x18x16x4xbf16> to vector<1x16x16x4xbf16>
    %35 = vector.shape_cast %34 : vector<1x16x16x4xbf16> to vector<256x4xbf16>
    %c5 = arith.constant 5 : index
    %c0_27 = arith.constant 0 : index
    %c0_28 = arith.constant 0 : index
    %36 = vector.load %arg2[%c5, %c0_27, %c0_28] : memref<9x4x128xbf16, #tpu.memory_space<vmem>>, vector<1x4x128xbf16>
    %37 = vector.shape_cast %36 : vector<1x4x128xbf16> to vector<4x128xbf16>
    %cst_29 = arith.constant dense<0.000000e+00> : vector<256x128xf32>
    %38 = tpu.matmul %35, %37, %cst_29 {dimension_numbers = #tpu.dot_dimension_numbers<[1], [0], [0], [1], [0, 0, 1, 1], [], []>} : vector<256x4xbf16>, vector<4x128xbf16>, vector<256x128xf32> -> vector<256x128xf32>
    %39 = arith.addf %33, %38 : vector<256x128xf32>
    %40 = vector.extract_strided_slice %0 {offsets = [0, 2, 0, 0], sizes = [1, 16, 16, 4], strides = [1, 1, 1, 1]} : vector<1x18x16x4xbf16> to vector<1x16x16x4xbf16>
    %41 = vector.shape_cast %40 : vector<1x16x16x4xbf16> to vector<256x4xbf16>
    %c6 = arith.constant 6 : index
    %c0_30 = arith.constant 0 : index
    %c0_31 = arith.constant 0 : index
    %42 = vector.load %arg2[%c6, %c0_30, %c0_31] : memref<9x4x128xbf16, #tpu.memory_space<vmem>>, vector<1x4x128xbf16>
    %43 = vector.shape_cast %42 : vector<1x4x128xbf16> to vector<4x128xbf16>
    %cst_32 = arith.constant dense<0.000000e+00> : vector<256x128xf32>
    %44 = tpu.matmul %41, %43, %cst_32 {dimension_numbers = #tpu.dot_dimension_numbers<[1], [0], [0], [1], [0, 0, 1, 1], [], []>} : vector<256x4xbf16>, vector<4x128xbf16>, vector<256x128xf32> -> vector<256x128xf32>
    %45 = arith.addf %39, %44 : vector<256x128xf32>
    %46 = vector.extract_strided_slice %1 {offsets = [0, 2, 0, 0], sizes = [1, 16, 16, 4], strides = [1, 1, 1, 1]} : vector<1x18x16x4xbf16> to vector<1x16x16x4xbf16>
    %47 = vector.shape_cast %46 : vector<1x16x16x4xbf16> to vector<256x4xbf16>
    %c7 = arith.constant 7 : index
    %c0_33 = arith.constant 0 : index
    %c0_34 = arith.constant 0 : index
    %48 = vector.load %arg2[%c7, %c0_33, %c0_34] : memref<9x4x128xbf16, #tpu.memory_space<vmem>>, vector<1x4x128xbf16>
    %49 = vector.shape_cast %48 : vector<1x4x128xbf16> to vector<4x128xbf16>
    %cst_35 = arith.constant dense<0.000000e+00> : vector<256x128xf32>
    %50 = tpu.matmul %47, %49, %cst_35 {dimension_numbers = #tpu.dot_dimension_numbers<[1], [0], [0], [1], [0, 0, 1, 1], [], []>} : vector<256x4xbf16>, vector<4x128xbf16>, vector<256x128xf32> -> vector<256x128xf32>
    %51 = arith.addf %45, %50 : vector<256x128xf32>
    %52 = vector.extract_strided_slice %2 {offsets = [0, 2, 0, 0], sizes = [1, 16, 16, 4], strides = [1, 1, 1, 1]} : vector<1x18x16x4xbf16> to vector<1x16x16x4xbf16>
    %53 = vector.shape_cast %52 : vector<1x16x16x4xbf16> to vector<256x4xbf16>
    %c8 = arith.constant 8 : index
    %c0_36 = arith.constant 0 : index
    %c0_37 = arith.constant 0 : index
    %54 = vector.load %arg2[%c8, %c0_36, %c0_37] : memref<9x4x128xbf16, #tpu.memory_space<vmem>>, vector<1x4x128xbf16>
    %55 = vector.shape_cast %54 : vector<1x4x128xbf16> to vector<4x128xbf16>
    %cst_38 = arith.constant dense<0.000000e+00> : vector<256x128xf32>
    %56 = tpu.matmul %53, %55, %cst_38 {dimension_numbers = #tpu.dot_dimension_numbers<[1], [0], [0], [1], [0, 0, 1, 1], [], []>} : vector<256x4xbf16>, vector<4x128xbf16>, vector<256x128xf32> -> vector<256x128xf32>
    %57 = arith.addf %51, %56 : vector<256x128xf32>
    %58 = vector.shape_cast %57 : vector<256x128xf32> to vector<1x256x128xf32>
    %c0_39 = arith.constant 0 : index
    %c0_40 = arith.constant 0 : index
    %59 = vector.load %arg3[%c0_39, %c0_40] : memref<1x128xf32, #tpu.memory_space<vmem>>, vector<1x128xf32>
    %cst_41 = arith.constant dense<0.000000e+00> : vector<1x128xf32>
    %60 = vector.multi_reduction <add>, %58, %cst_41 [1] : vector<1x256x128xf32> to vector<1x128xf32>
    %61 = arith.mulf %58, %58 : vector<1x256x128xf32>
    %cst_42 = arith.constant dense<0.000000e+00> : vector<1x128xf32>
    %62 = vector.multi_reduction <add>, %61, %cst_42 [1] : vector<1x256x128xf32> to vector<1x128xf32>
    %cst_43 = arith.constant 2.560000e+02 : f32
    %63 = vector.broadcast %cst_43 : f32 to vector<1x128xf32>
    %64 = arith.mulf %63, %59 : vector<1x128xf32>
    %65 = arith.addf %60, %64 : vector<1x128xf32>
    %cst_44 = arith.constant 2.000000e+00 : f32
    %66 = vector.broadcast %cst_44 : f32 to vector<1x128xf32>
    %67 = arith.mulf %66, %59 : vector<1x128xf32>
    %68 = arith.mulf %67, %60 : vector<1x128xf32>
    %69 = arith.addf %62, %68 : vector<1x128xf32>
    %70 = arith.mulf %59, %59 : vector<1x128xf32>
    %cst_45 = arith.constant 2.560000e+02 : f32
    %71 = vector.broadcast %cst_45 : f32 to vector<1x128xf32>
    %72 = arith.mulf %71, %70 : vector<1x128xf32>
    %73 = arith.addf %69, %72 : vector<1x128xf32>
    %c0_46 = arith.constant 0 : index
    %c0_47 = arith.constant 0 : index
    %74 = vector.load %arg6[%c0_46, %c0_47] : memref<128x8xf32, #tpu.memory_space<vmem>>, vector<128x8xf32>
    %cst_48 = arith.constant dense<0.000000e+00> : vector<1x8xf32>
    %75 = tpu.matmul %65, %74, %cst_48 {dimension_numbers = #tpu.dot_dimension_numbers<[1], [0], [0], [1], [0, 0, 1, 1], [], []>} : vector<1x128xf32>, vector<128x8xf32>, vector<1x8xf32> -> vector<1x8xf32>
    %cst_49 = arith.constant 0.001953125 : f32
    %76 = vector.broadcast %cst_49 : f32 to vector<1x8xf32>
    %77 = arith.mulf %75, %76 : vector<1x8xf32>
    %c0_50 = arith.constant 0 : index
    %c0_51 = arith.constant 0 : index
    %78 = vector.load %arg6[%c0_50, %c0_51] : memref<128x8xf32, #tpu.memory_space<vmem>>, vector<128x8xf32>
    %cst_52 = arith.constant dense<0.000000e+00> : vector<1x8xf32>
    %79 = tpu.matmul %73, %78, %cst_52 {dimension_numbers = #tpu.dot_dimension_numbers<[1], [0], [0], [1], [0, 0, 1, 1], [], []>} : vector<1x128xf32>, vector<128x8xf32>, vector<1x8xf32> -> vector<1x8xf32>
    %cst_53 = arith.constant 0.001953125 : f32
    %80 = vector.broadcast %cst_53 : f32 to vector<1x8xf32>
    %81 = arith.mulf %79, %80 : vector<1x8xf32>
    %82 = arith.mulf %77, %77 : vector<1x8xf32>
    %83 = arith.subf %81, %82 : vector<1x8xf32>
    %cst_54 = arith.constant 0.000000e+00 : f32
    %84 = vector.broadcast %cst_54 : f32 to vector<1x8xf32>
    %85 = arith.maximumf %83, %84 : vector<1x8xf32>
    %cst_55 = arith.constant 9.99999974E-6 : f32
    %86 = vector.broadcast %cst_55 : f32 to vector<1x8xf32>
    %87 = arith.addf %85, %86 : vector<1x8xf32>
    %88 = math.rsqrt %87 : vector<1x8xf32>
    %c0_56 = arith.constant 0 : index
    %c0_57 = arith.constant 0 : index
    %89 = vector.load %arg7[%c0_56, %c0_57] : memref<8x128xf32, #tpu.memory_space<vmem>>, vector<8x128xf32>
    %cst_58 = arith.constant dense<0.000000e+00> : vector<1x128xf32>
    %90 = tpu.matmul %77, %89, %cst_58 {dimension_numbers = #tpu.dot_dimension_numbers<[1], [0], [0], [1], [0, 0, 1, 1], [], []>} : vector<1x8xf32>, vector<8x128xf32>, vector<1x128xf32> -> vector<1x128xf32>
    %c0_59 = arith.constant 0 : index
    %c0_60 = arith.constant 0 : index
    %91 = vector.load %arg7[%c0_59, %c0_60] : memref<8x128xf32, #tpu.memory_space<vmem>>, vector<8x128xf32>
    %cst_61 = arith.constant dense<0.000000e+00> : vector<1x128xf32>
    %92 = tpu.matmul %88, %91, %cst_61 {dimension_numbers = #tpu.dot_dimension_numbers<[1], [0], [0], [1], [0, 0, 1, 1], [], []>} : vector<1x8xf32>, vector<8x128xf32>, vector<1x128xf32> -> vector<1x128xf32>
    %c0_62 = arith.constant 0 : index
    %c0_63 = arith.constant 0 : index
    %c0_64 = arith.constant 0 : index
    %93 = vector.load %arg8[%c0_62, %c0_63, %c0_64] : memref<1x1x128xf32, #tpu.memory_space<vmem>>, vector<1x1x128xf32>
    %94 = vector.shape_cast %93 : vector<1x1x128xf32> to vector<1x128xf32>
    %cst_65 = arith.constant 1.000000e+00 : f32
    %95 = vector.broadcast %cst_65 : f32 to vector<1x128xf32>
    %96 = arith.addf %94, %95 : vector<1x128xf32>
    %c0_66 = arith.constant 0 : index
    %c0_67 = arith.constant 0 : index
    %97 = vector.load %arg4[%c0_66, %c0_67] : memref<1x128xf32, #tpu.memory_space<vmem>>, vector<1x128xf32>
    %98 = arith.mulf %92, %97 : vector<1x128xf32>
    %99 = arith.mulf %98, %96 : vector<1x128xf32>
    %100 = arith.subf %59, %90 : vector<1x128xf32>
    %101 = arith.mulf %100, %99 : vector<1x128xf32>
    %c0_68 = arith.constant 0 : index
    %c0_69 = arith.constant 0 : index
    %102 = vector.load %arg5[%c0_68, %c0_69] : memref<1x128xf32, #tpu.memory_space<vmem>>, vector<1x128xf32>
    %103 = arith.mulf %102, %96 : vector<1x128xf32>
    %104 = arith.addf %101, %103 : vector<1x128xf32>
    %c0_70 = arith.constant 0 : index
    %c0_71 = arith.constant 0 : index
    %c0_72 = arith.constant 0 : index
    %105 = vector.load %arg9[%c0_70, %c0_71, %c0_72] : memref<1x1x128xf32, #tpu.memory_space<vmem>>, vector<1x1x128xf32>
    %106 = vector.shape_cast %105 : vector<1x1x128xf32> to vector<1x128xf32>
    %107 = arith.addf %104, %106 : vector<1x128xf32>
    %108 = vector.shape_cast %99 : vector<1x128xf32> to vector<1x1x128xf32>
    %109 = vector.broadcast %108 : vector<1x1x128xf32> to vector<1x256x128xf32>
    %110 = arith.mulf %58, %109 : vector<1x256x128xf32>
    %111 = vector.shape_cast %107 : vector<1x128xf32> to vector<1x1x128xf32>
    %112 = vector.broadcast %111 : vector<1x1x128xf32> to vector<1x256x128xf32>
    %113 = arith.addf %110, %112 : vector<1x256x128xf32>
    %114 = arith.truncf %113 : vector<1x256x128xf32> to vector<1x256x128xbf16>
    %115 = arith.negf %114 : vector<1x256x128xbf16>
    %116 = math.exp %115 : vector<1x256x128xbf16>
    %cst_73 = arith.constant 1.000000e+00 : bf16
    %117 = vector.broadcast %cst_73 : bf16 to vector<1x256x128xbf16>
    %118 = arith.addf %117, %116 : vector<1x256x128xbf16>
    %119 = arith.divf %117, %118 : vector<1x256x128xbf16>
    %120 = arith.mulf %114, %119 : vector<1x256x128xbf16>
    %121 = vector.extract_strided_slice %120 {offsets = [0, 0, 0], sizes = [1, 256, 16], strides = [1, 1, 1]} : vector<1x256x128xbf16> to vector<1x256x16xbf16>
    %c0_74 = arith.constant 0 : index
    %c0_75 = arith.constant 0 : index
    %c0_76 = arith.constant 0 : index
    %122 = vector.load %arg10[%c0_74, %c0_75, %c0_76] : memref<1x256x16xbf16, #tpu.memory_space<vmem>>, vector<1x256x16xbf16>
    tpu.vector_store %arg10[%c0_74, %c0_75, %c0_76], %121 {strides = array<i32>} : memref<1x256x16xbf16, #tpu.memory_space<vmem>>, vector<1x256x16xbf16>,
    return
  }
  func.func @transform_0(%arg0: i32) -> (i32, i32, i32, i32) {
    %c0_i32 = arith.constant 0 : i32
    %c0_i32_0 = arith.constant 0 : i32
    %c0_i32_1 = arith.constant 0 : i32
    %c0_i32_2 = arith.constant 0 : i32
    return %arg0, %c0_i32, %c0_i32_0, %c0_i32_1 : i32, i32, i32, i32
  }
  func.func @transform_1(%arg0: i32) -> (i32, i32, i32) {
    %c0_i32 = arith.constant 0 : i32
    %c0_i32_0 = arith.constant 0 : i32
    %c0_i32_1 = arith.constant 0 : i32
    %c0_i32_2 = arith.constant 0 : i32
    return %c0_i32, %c0_i32_0, %c0_i32_1 : i32, i32, i32
  }
  func.func @transform_2(%arg0: i32) -> (i32, i32) {
    %c0_i32 = arith.constant 0 : i32
    %c0_i32_0 = arith.constant 0 : i32
    %c0_i32_1 = arith.constant 0 : i32
    return %c0_i32, %c0_i32_0 : i32, i32
  }
  func.func @transform_3(%arg0: i32) -> (i32, i32) {
    %c0_i32 = arith.constant 0 : i32
    %c0_i32_0 = arith.constant 0 : i32
    %c0_i32_1 = arith.constant 0 : i32
    return %c0_i32, %c0_i32_0 : i32, i32
  }
  func.func @transform_4(%arg0: i32) -> (i32, i32) {
    %c0_i32 = arith.constant 0 : i32
    %c0_i32_0 = arith.constant 0 : i32
    %c0_i32_1 = arith.constant 0 : i32
    return %c0_i32, %c0_i32_0 : i32, i32
  }
  func.func @transform_5(%arg0: i32) -> (i32, i32) {
    %c0_i32 = arith.constant 0 : i32
    %c0_i32_0 = arith.constant 0 : i32
    %c0_i32_1 = arith.constant 0 : i32
    return %c0_i32, %c0_i32_0 : i32, i32
  }
  func.func @transform_6(%arg0: i32) -> (i32, i32) {
    %c0_i32 = arith.constant 0 : i32
    %c0_i32_0 = arith.constant 0 : i32
    %c0_i32_1 = arith.constant 0 : i32
    return %c0_i32, %c0_i32_0 : i32, i32
  }
  func.func @transform_7(%arg0: i32) -> (i32, i32, i32) {
    %c0_i32 = arith.constant 0 : i32
    %c0_i32_0 = arith.constant 0 : i32
    %c0_i32_1 = arith.constant 0 : i32
    return %arg0, %c0_i32, %c0_i32_0 : i32, i32, i32
  }
  func.func @transform_8(%arg0: i32) -> (i32, i32, i32) {
    %c0_i32 = arith.constant 0 : i32
    %c0_i32_0 = arith.constant 0 : i32
    %c0_i32_1 = arith.constant 0 : i32
    return %arg0, %c0_i32, %c0_i32_0 : i32, i32, i32
  }
  func.func @transform_9(%arg0: i32) -> (i32, i32, i32) {
    %c0_i32 = arith.constant 0 : i32
    %c0_i32_0 = arith.constant 0 : i32
    %c0_i32_1 = arith.constant 0 : i32
    return %arg0, %c0_i32, %c0_i32_0 : i32, i32, i32
  }
}

</mosaic_0001>

<llo_original>
// kernel: tpu_custom_call.1
$region0: #{tpu_custom_call.1}
  #allocation0 [shape = 'u32[]', space=smem, size = 0x4, offset = 0x4, fixed_abs, tag = 'smem constant byte address 0x4 - core index']
  #allocation1 [shape = 'u32[144,128]{1,0:T(1,128)}', space=vmem, size = 0x12000, scoped, tag = 'internal scratch']
  %s0 = inlined_call_operand.vmem [shape: bf16[2,18,18,4], index: 0, kind: input, shape index: {}]
  %s1 = inlined_call_operand.vmem [shape: bf16[9,4,128], index: 1, kind: input, shape index: {}]
  %s2 = inlined_call_operand.vmem [shape: f32[1,128], index: 2, kind: input, shape index: {}]
  %s3 = inlined_call_operand.vmem [shape: f32[1,128], index: 3, kind: input, shape index: {}]
  %s4 = inlined_call_operand.vmem [shape: f32[1,128], index: 4, kind: input, shape index: {}]
  %s5 = inlined_call_operand.vmem [shape: f32[128,8], index: 5, kind: input, shape index: {}]
  %s6 = inlined_call_operand.vmem [shape: f32[8,128], index: 6, kind: input, shape index: {}]
  %s7 = inlined_call_operand.vmem [shape: f32[2,1,128], index: 7, kind: input, shape index: {}]
  %s8 = inlined_call_operand.vmem [shape: f32[2,1,128], index: 8, kind: input, shape index: {}]
  %s9 = inlined_call_operand.vmem [shape: bf16[2,256,16], index: 9, kind: output, shape index: {}]
  %s10 = sld [smem:[#allocation0]]
  $region69: #{tpu_custom_call.1} parent=0
    _
  %s12 = ssub.s32 1, %s10
  %s13 = scalar_select 0, %s12, %s10
  loop: start=0, step=1, limit=4
  $region2: #{tpu_custom_call.1} parent=0 // loop_pre_header
    _
  $region3: #{tpu_custom_call.1} parent=0 // loop_header
    %s15 = sphi 0, %s19
    %p16 = scmp.ge.s32.totalorder %s15, 4
    %s25 = sphi 0, %s27
    %s28 = sphi 0, %s25
    %s29 = sphi 0, %s28
    %s45 = sphi 0, %s29
    %s49 = sphi 0, %s49
    %s51 = sphi 0, %s49
    %s52 = sphi 0, %s51
    %s66 = sphi 0, %s52
    %s70 = sphi 0, %s70
    %s72 = sphi 0, %s70
    %s73 = sphi 0, %s72
    %s87 = sphi 0, %s73
    %s91 = sphi 0, %s91
    %s93 = sphi 0, %s91
    %s94 = sphi 0, %s93
    %s108 = sphi 0, %s94
    %s112 = sphi 0, %s112
    %s114 = sphi 0, %s112
    %s115 = sphi 0, %s114
    %s129 = sphi 0, %s115
    %s133 = sphi 0, %s133
    %s135 = sphi 0, %s133
    %s136 = sphi 0, %s135
    %s150 = sphi 0, %s136
    %s154 = sphi 0, %s154
    %s156 = sphi 0, %s154
    %s157 = sphi 0, %s156
    %s171 = sphi 0, %s157
    %s177 = sphi 0, %s179
    %s180 = sphi 0, %s177
    %s181 = sphi 0, %s180
    %s197 = sphi 0, %s181
    %s203 = sphi 0, %s205
    %s206 = sphi 0, %s203
    %s207 = sphi 0, %s206
    %s223 = sphi 0, %s207
    %s229 = sphi 0, %s231
    %s232 = sphi 0, %s229
    %s233 = sphi 0, %s232
    %s249 = sphi 0, %s233
  $region4: #{tpu_custom_call.1} parent=0 // loop_header_branch
    %18 = sbr.rel (%p16) target = $region8
  $region5: #{tpu_custom_call.1} parent=0 // loop_body
    %s20 = ssub.s32 %s15, 1
    %s21 = ssub.s32 %s15, 2
    %s22 = sadd.s32 %s15, 1
    %s23 = ssub.s32 %s15, %s22
    %p24 = scmp.eq.s32.totalorder %s23, 0
    %s26 = sadd.s32 %s25, 1
    %s27 = scalar_select %p24, %s25, %s26
    %p30 = pneg %p24
    %p31 = scmp.eq.s32.totalorder %s15, 1
    %p32 = por %p30, %p31
    %p33 = scmp.ne.s32.totalorder %s25, %s28
    %p34 = scmp.eq.s32.totalorder %s15, 0
    %p35 = por %p33, %p34
    %p36 = scmp.ne.s32.totalorder %s25, %s28
    %p37 = scmp.eq.s32.totalorder %s20, 1
    %p38 = por %p36, %p37
    %p39 = scmp.ne.s32.totalorder %s28, %s29
    %p40 = scmp.eq.s32.totalorder %s20, 0
    %p41 = por %p39, %p40
    %p42 = scmp.ne.s32.totalorder %s28, %s29
    %p43 = scmp.eq.s32.totalorder %s21, 1
    %p44 = por %p42, %p43
    %p46 = scmp.ne.s32.totalorder %s29, %s45
    %p47 = scmp.eq.s32.totalorder %s21, 0
    %p48 = por %p46, %p47
    %s50 = sadd.s32 %s49, 1
    %p53 = scmp.eq.s32.totalorder %s15, 1
    %p54 = scmp.ne.s32.totalorder %s49, %s51
    %p55 = scmp.eq.s32.totalorder %s15, 0
    %p56 = por %p54, %p55
    %p57 = scmp.ne.s32.totalorder %s49, %s51
    %p58 = scmp.eq.s32.totalorder %s20, 1
    %p59 = por %p57, %p58
    %p60 = scmp.ne.s32.totalorder %s51, %s52
    %p61 = scmp.eq.s32.totalorder %s20, 0
    %p62 = por %p60, %p61
    %p63 = scmp.ne.s32.totalorder %s51, %s52
    %p64 = scmp.eq.s32.totalorder %s21, 1
    %p65 = por %p63, %p64
    %p67 = scmp.ne.s32.totalorder %s52, %s66
    %p68 = scmp.eq.s32.totalorder %s21, 0
    %p69 = por %p67, %p68
    %s71 = sadd.s32 %s70, 1
    %p74 = scmp.eq.s32.totalorder %s15, 1
    %p75 = scmp.ne.s32.totalorder %s70, %s72
    %p76 = scmp.eq.s32.totalorder %s15, 0
    %p77 = por %p75, %p76
    %p78 = scmp.ne.s32.totalorder %s70, %s72
    %p79 = scmp.eq.s32.totalorder %s20, 1
    %p80 = por %p78, %p79
    %p81 = scmp.ne.s32.totalorder %s72, %s73
    %p82 = scmp.eq.s32.totalorder %s20, 0
    %p83 = por %p81, %p82
    %p84 = scmp.ne.s32.totalorder %s72, %s73
    %p85 = scmp.eq.s32.totalorder %s21, 1
    %p86 = por %p84, %p85
    %p88 = scmp.ne.s32.totalorder %s73, %s87
    %p89 = scmp.eq.s32.totalorder %s21, 0
    %p90 = por %p88, %p89
    %s92 = sadd.s32 %s91, 1
    %p95 = scmp.eq.s32.totalorder %s15, 1
    %p96 = scmp.ne.s32.totalorder %s91, %s93
    %p97 = scmp.eq.s32.totalorder %s15, 0
    %p98 = por %p96, %p97
    %p99 = scmp.ne.s32.totalorder %s91, %s93
    %p100 = scmp.eq.s32.totalorder %s20, 1
    %p101 = por %p99, %p100
    %p102 = scmp.ne.s32.totalorder %s93, %s94
    %p103 = scmp.eq.s32.totalorder %s20, 0
    %p104 = por %p102, %p103
    %p105 = scmp.ne.s32.totalorder %s93, %s94
    %p106 = scmp.eq.s32.totalorder %s21, 1
    %p107 = por %p105, %p106
    %p109 = scmp.ne.s32.totalorder %s94, %s108
    %p110 = scmp.eq.s32.totalorder %s21, 0
    %p111 = por %p109, %p110
    %s113 = sadd.s32 %s112, 1
    %p116 = scmp.eq.s32.totalorder %s15, 1
    %p117 = scmp.ne.s32.totalorder %s112, %s114
    %p118 = scmp.eq.s32.totalorder %s15, 0
    %p119 = por %p117, %p118
    %p120 = scmp.ne.s32.totalorder %s112, %s114
    %p121 = scmp.eq.s32.totalorder %s20, 1
    %p122 = por %p120, %p121
    %p123 = scmp.ne.s32.totalorder %s114, %s115
    %p124 = scmp.eq.s32.totalorder %s20, 0
    %p125 = por %p123, %p124
    %p126 = scmp.ne.s32.totalorder %s114, %s115
    %p127 = scmp.eq.s32.totalorder %s21, 1
    %p128 = por %p126, %p127
    %p130 = scmp.ne.s32.totalorder %s115, %s129
    %p131 = scmp.eq.s32.totalorder %s21, 0
    %p132 = por %p130, %p131
    %s134 = sadd.s32 %s133, 1
    %p137 = scmp.eq.s32.totalorder %s15, 1
    %p138 = scmp.ne.s32.totalorder %s133, %s135
    %p139 = scmp.eq.s32.totalorder %s15, 0
    %p140 = por %p138, %p139
    %p141 = scmp.ne.s32.totalorder %s133, %s135
    %p142 = scmp.eq.s32.totalorder %s20, 1
    %p143 = por %p141, %p142
    %p144 = scmp.ne.s32.totalorder %s135, %s136
    %p145 = scmp.eq.s32.totalorder %s20, 0
    %p146 = por %p144, %p145
    %p147 = scmp.ne.s32.totalorder %s135, %s136
    %p148 = scmp.eq.s32.totalorder %s21, 1
    %p149 = por %p147, %p148
    %p151 = scmp.ne.s32.totalorder %s136, %s150
    %p152 = scmp.eq.s32.totalorder %s21, 0
    %p153 = por %p151, %p152
    %s155 = sadd.s32 %s154, 1
    %p158 = scmp.eq.s32.totalorder %s15, 1
    %p159 = scmp.ne.s32.totalorder %s154, %s156
    %p160 = scmp.eq.s32.totalorder %s15, 0
    %p161 = por %p159, %p160
    %p162 = scmp.ne.s32.totalorder %s154, %s156
    %p163 = scmp.eq.s32.totalorder %s20, 1
    %p164 = por %p162, %p163
    %p165 = scmp.ne.s32.totalorder %s156, %s157
    %p166 = scmp.eq.s32.totalorder %s20, 0
    %p167 = por %p165, %p166
    %p168 = scmp.ne.s32.totalorder %s156, %s157
    %p169 = scmp.eq.s32.totalorder %s21, 1
    %p170 = por %p168, %p169
    %p172 = scmp.ne.s32.totalorder %s157, %s171
    %p173 = scmp.eq.s32.totalorder %s21, 0
    %p174 = por %p172, %p173
    %s175 = ssub.s32 %s15, %s22
    %p176 = scmp.eq.s32.totalorder %s175, 0
    %s178 = sadd.s32 %s177, 1
    %s179 = scalar_select %p176, %s177, %s178
    %p182 = pneg %p176
    %p183 = scmp.eq.s32.totalorder %s15, 1
    %p184 = por %p182, %p183
    %p185 = scmp.ne.s32.totalorder %s177, %s180
    %p186 = scmp.eq.s32.totalorder %s15, 0
    %p187 = por %p185, %p186
    %p188 = scmp.ne.s32.totalorder %s177, %s180
    %p189 = scmp.eq.s32.totalorder %s20, 1
    %p190 = por %p188, %p189
    %p191 = scmp.ne.s32.totalorder %s180, %s181
    %p192 = scmp.eq.s32.totalorder %s20, 0
    %p193 = por %p191, %p192
    %p194 = scmp.ne.s32.totalorder %s180, %s181
    %p195 = scmp.eq.s32.totalorder %s21, 1
    %p196 = por %p194, %p195
    %p198 = scmp.ne.s32.totalorder %s181, %s197
    %p199 = scmp.eq.s32.totalorder %s21, 0
    %p200 = por %p198, %p199
    %s201 = ssub.s32 %s15, %s22
    %p202 = scmp.eq.s32.totalorder %s201, 0
    %s204 = sadd.s32 %s203, 1
    %s205 = scalar_select %p202, %s203, %s204
    %p208 = pneg %p202
    %p209 = scmp.eq.s32.totalorder %s15, 1
    %p210 = por %p208, %p209
    %p211 = scmp.ne.s32.totalorder %s203, %s206
    %p212 = scmp.eq.s32.totalorder %s15, 0
    %p213 = por %p211, %p212
    %p214 = scmp.ne.s32.totalorder %s203, %s206
    %p215 = scmp.eq.s32.totalorder %s20, 1
    %p216 = por %p214, %p215
    %p217 = scmp.ne.s32.totalorder %s206, %s207
    %p218 = scmp.eq.s32.totalorder %s20, 0
    %p219 = por %p217, %p218
    %p220 = scmp.ne.s32.totalorder %s206, %s207
    %p221 = scmp.eq.s32.totalorder %s21, 1
    %p222 = por %p220, %p221
    %p224 = scmp.ne.s32.totalorder %s207, %s223
    %p225 = scmp.eq.s32.totalorder %s21, 0
    %p226 = por %p224, %p225
    %s227 = ssub.s32 %s15, %s22
    %p228 = scmp.eq.s32.totalorder %s227, 0
    %s230 = sadd.s32 %s229, 1
    %s231 = scalar_select %p228, %s229, %s230
    %p234 = pneg %p228
    %p235 = scmp.eq.s32.totalorder %s15, 1
    %p236 = por %p234, %p235
    %p237 = scmp.ne.s32.totalorder %s229, %s232
    %p238 = scmp.eq.s32.totalorder %s15, 0
    %p239 = por %p237, %p238
    %p240 = scmp.ne.s32.totalorder %s229, %s232
    %p241 = scmp.eq.s32.totalorder %s20, 1
    %p242 = por %p240, %p241
    %p243 = scmp.ne.s32.totalorder %s232, %s233
    %p244 = scmp.eq.s32.totalorder %s20, 0
    %p245 = por %p243, %p244
    %p246 = scmp.ne.s32.totalorder %s232, %s233
    %p247 = scmp.eq.s32.totalorder %s21, 1
    %p248 = por %p246, %p247
    %p250 = scmp.ne.s32.totalorder %s233, %s249
    %p251 = scmp.eq.s32.totalorder %s21, 0
    %p252 = por %p250, %p251
    %p253 = scmp.le.s32.totalorder 1, %s15
    %p254 = scmp.lt.s32.totalorder %s15, 3
    %p255 = pnand %p253, %p254
    %p256 = pneg %p255
    // Predicated region
    $region9: #{tpu_custom_call.1} parent=5 // pred_check
      _
    $region10: #{tpu_custom_call.1} parent=5 // pred_check_branch
      %258 = sbr.rel (%p255) target = $region12
    $region11: #{tpu_custom_call.1} parent=5 // pred_region
      %s259 = ssub.s32 %s15, 1
      // Predicated region
      $region13: #{tpu_custom_call.1} parent=11 // pred_check
        %p260 = pneg %p62
      $region14: #{tpu_custom_call.1} parent=11 // pred_check_branch
        %262 = sbr.rel (%p260) target = $region16
      $region15: #{tpu_custom_call.1} parent=11 // pred_region
        _
      $region16: #{tpu_custom_call.1} parent=11 // pred_fallthru
        _
      // Predicated region
      $region17: #{tpu_custom_call.1} parent=11 // pred_check
        %p263 = pneg %p83
      $region18: #{tpu_custom_call.1} parent=11 // pred_check_branch
        %265 = sbr.rel (%p263) target = $region20
      $region19: #{tpu_custom_call.1} parent=11 // pred_region
        _
      $region20: #{tpu_custom_call.1} parent=11 // pred_fallthru
        _
      // Predicated region
      $region21: #{tpu_custom_call.1} parent=11 // pred_check
        %p266 = pneg %p104
      $region22: #{tpu_custom_call.1} parent=11 // pred_check_branch
        %268 = sbr.rel (%p266) target = $region24
      $region23: #{tpu_custom_call.1} parent=11 // pred_region
        _
      $region24: #{tpu_custom_call.1} parent=11 // pred_fallthru
        _
      // Predicated region
      $region25: #{tpu_custom_call.1} parent=11 // pred_check
        %p269 = pneg %p125
      $region26: #{tpu_custom_call.1} parent=11 // pred_check_branch
        %271 = sbr.rel (%p269) target = $region28
      $region27: #{tpu_custom_call.1} parent=11 // pred_region
        _
      $region28: #{tpu_custom_call.1} parent=11 // pred_fallthru
        _
      // Predicated region
      $region29: #{tpu_custom_call.1} parent=11 // pred_check
        %p272 = pneg %p146
      $region30: #{tpu_custom_call.1} parent=11 // pred_check_branch
        %274 = sbr.rel (%p272) target = $region32
      $region31: #{tpu_custom_call.1} parent=11 // pred_region
        _
      $region32: #{tpu_custom_call.1} parent=11 // pred_fallthru
        _
      // Predicated region
      $region33: #{tpu_custom_call.1} parent=11 // pred_check
        %p275 = pneg %p167
      $region34: #{tpu_custom_call.1} parent=11 // pred_check_branch
        %277 = sbr.rel (%p275) target = $region36
      $region35: #{tpu_custom_call.1} parent=11 // pred_region
        _
      $region36: #{tpu_custom_call.1} parent=11 // pred_fallthru
        _
    $region12: #{tpu_custom_call.1} parent=5 // pred_fallthru
      _
    %p278 = scmp.lt.s32.totalorder %s15, 2
    // Predicated region
    $region37: #{tpu_custom_call.1} parent=5 // pred_check
      %p279 = pneg %p278
    $region38: #{tpu_custom_call.1} parent=5 // pred_check_branch
      %281 = sbr.rel (%p279) target = $region40
    $region39: #{tpu_custom_call.1} parent=5 // pred_region
      // Predicated region
      $region41: #{tpu_custom_call.1} parent=39 // pred_check
        %p282 = pneg %p35
      $region42: #{tpu_custom_call.1} parent=39 // pred_check_branch
        %284 = sbr.rel (%p282) target = $region44
      $region43: #{tpu_custom_call.1} parent=39 // pred_region
        %p285 = scmp.lt.s32.totalorder %s15, 1
        %s286 = scalar_select %p285, %s15, 1
        %s287 = smul.addr %s286, 54
        %s288 = smul.addr %s287, 4
        %s289 = scalar_lea.vmem %s0, %s288
      $region44: #{tpu_custom_call.1} parent=39 // pred_fallthru
        _
      // Predicated region
      $region45: #{tpu_custom_call.1} parent=39 // pred_check
        %p290 = pneg %p187
      $region46: #{tpu_custom_call.1} parent=39 // pred_check_branch
        %292 = sbr.rel (%p290) target = $region48
      $region47: #{tpu_custom_call.1} parent=39 // pred_region
        %p293 = scmp.lt.s32.totalorder %s15, 1
        %s294 = scalar_select %p293, %s15, 1
        %s295 = scalar_lea.vmem %s7, %s294
      $region48: #{tpu_custom_call.1} parent=39 // pred_fallthru
        _
      // Predicated region
      $region49: #{tpu_custom_call.1} parent=39 // pred_check
        %p296 = pneg %p213
      $region50: #{tpu_custom_call.1} parent=39 // pred_check_branch
        %298 = sbr.rel (%p296) target = $region52
      $region51: #{tpu_custom_call.1} parent=39 // pred_region
        %p299 = scmp.lt.s32.totalorder %s15, 1
        %s300 = scalar_select %p299, %s15, 1
        %s301 = scalar_lea.vmem %s8, %s300
      $region52: #{tpu_custom_call.1} parent=39 // pred_fallthru
        _
    $region40: #{tpu_custom_call.1} parent=5 // pred_fallthru
      _
    %p302 = scmp.le.s32.totalorder 1, %s15
    %p303 = scmp.lt.s32.totalorder %s15, 3
    %p304 = pnand %p302, %p303
    %p305 = pneg %p304
    // Predicated region
    $region53: #{tpu_custom_call.1} parent=5 // pred_check
      _
    $region54: #{tpu_custom_call.1} parent=5 // pred_check_branch
      %307 = sbr.rel (%p304) target = $region56
    $region55: #{tpu_custom_call.1} parent=5 // pred_region
      %s308 = ssub.s32 %s15, 1
      %p309 = scmp.lt.s32.totalorder %s20, 1
      %s310 = scalar_select %p309, %s20, 1
      %s311 = smul.addr %s310, 54
      %s312 = smul.addr %s311, 4
      %s313 = scalar_lea.vmem %s0, %s312
      %p314 = pneg %p41
      %p315 = pneg %p38
      %p316 = pneg %p62
      %p317 = pneg %p59
      %p318 = pneg %p83
      %p319 = pneg %p80
      %p320 = pneg %p104
      %p321 = pneg %p101
      %p322 = pneg %p125
      %p323 = pneg %p122
      %p324 = pneg %p146
      %p325 = pneg %p143
      %p326 = pneg %p167
      %p327 = pneg %p164
      %p328 = scmp.lt.s32.totalorder %s20, 1
      %s329 = scalar_select %p328, %s20, 1
      %s330 = scalar_lea.vmem %s7, %s329
      %p331 = pneg %p193
      %p332 = pneg %p190
      %p333 = scmp.lt.s32.totalorder %s20, 1
      %s334 = scalar_select %p333, %s20, 1
      %s335 = scalar_lea.vmem %s8, %s334
      %p336 = pneg %p219
      %p337 = pneg %p216
      %p338 = pneg %p245
      %p339 = pneg %p242
      %p340 = scmp.lt.s32.totalorder %s20, 1
      %s341 = scalar_select %p340, %s20, 1
      %s342 = smul.addr %s341, 32
      %s343 = smul.addr %s342, 4
      %s344 = scalar_lea.vmem %s9, %s343
      %p345 = scmp.lt.s32.totalorder %s20, 1
      %s346 = scalar_select %p345, %s20, 1
      %s347 = smul.addr %s346, 54
      %s348 = smul.addr %s347, 4
      %s349 = scalar_lea.vmem %s0, %s348
      %p350 = scmp.lt.s32.totalorder %s20, 1
      %s351 = scalar_select %p350, %s20, 1
      %s352 = scalar_lea.vmem %s7, %s351
      %p353 = scmp.lt.s32.totalorder %s20, 1
      %s354 = scalar_select %p353, %s20, 1
      %s355 = scalar_lea.vmem %s8, %s354
      %p356 = scmp.lt.s32.totalorder %s20, 1
      %s357 = scalar_select %p356, %s20, 1
      %s358 = smul.addr %s357, 32
      %s359 = smul.addr %s358, 4
      %s360 = scalar_lea.vmem %s9, %s359
      %v363 = vld [vmem:[%s349] sm:$0xf]
      %v364 = vld [vmem:[%s349 + $0x4] sm:$0xf]
      %v365 = vld [vmem:[%s349 + $0xc] sm:$0xf]
      %v366 = vld [vmem:[%s349 + $0x10] sm:$0xf]
      %v367 = vld [vmem:[%s349 + $0x18] sm:$0xf]
      %v368 = vld [vmem:[%s349 + $0x1c] sm:$0xf]
      %v369 = vld [vmem:[%s349 + $0x24] sm:$0xf]
      %v370 = vld [vmem:[%s349 + $0x28] sm:$0xf]
      %v371 = vld [vmem:[%s349 + $0x30] sm:$0xf]
      %v372 = vld [vmem:[%s349 + $0x34] sm:$0xf]
      %v373 = vld [vmem:[%s349 + $0x3c] sm:$0xf]
      %v374 = vld [vmem:[%s349 + $0x40] sm:$0xf]
      %v375 = vld [vmem:[%s349 + $0x48] sm:$0xf]
      %v376 = vld [vmem:[%s349 + $0x4c] sm:$0xf]
      %v377 = vld [vmem:[%s349 + $0x54] sm:$0xf]
      %v378 = vld [vmem:[%s349 + $0x58] sm:$0xf]
      %v379 = vld [vmem:[%s349 + $0x60] sm:$0xf]
      %v380 = vld [vmem:[%s349 + $0x64] sm:$0xf]
      %v381 = vld [vmem:[%s349 + $0x6c] sm:$0xf]
      %v382 = vld [vmem:[%s349 + $0x70] sm:$0xf]
      %v383 = vld [vmem:[%s349 + $0x78] sm:$0xf]
      %v384 = vld [vmem:[%s349 + $0x7c] sm:$0xf]
      %v385 = vld [vmem:[%s349 + $0x84] sm:$0xf]
      %v386 = vld [vmem:[%s349 + $0x88] sm:$0xf]
      %v387 = vld [vmem:[%s349 + $0x90] sm:$0xf]
      %v388 = vld [vmem:[%s349 + $0x94] sm:$0xf]
      %v389 = vld [vmem:[%s349 + $0x9c] sm:$0xf]
      %v390 = vld [vmem:[%s349 + $0xa0] sm:$0xf]
      %v391 = vld [vmem:[%s349 + $0xa8] sm:$0xf]
      %v392 = vld [vmem:[%s349 + $0xac] sm:$0xf]
      %v393 = vld [vmem:[%s349 + $0xb4] sm:$0xf]
      %v394 = vld [vmem:[%s349 + $0xb8] sm:$0xf]
      %v395 = vld [vmem:[%s349 + $0xc0] sm:$0xf]
      %v396 = vld [vmem:[%s349 + $0xc4] sm:$0xf]
      %v397 = vld [vmem:[%s349 + $0xcc] sm:$0xf]
      %v398 = vld [vmem:[%s349 + $0xd0] sm:$0xf]
      %v399 = vld [vmem:[%s349 + $0x8] sm:$0x1]
      %v400 = vld [vmem:[%s349 + $0x14] sm:$0x1]
      %v401 = vld [vmem:[%s349 + $0x20] sm:$0x1]
      %v402 = vld [vmem:[%s349 + $0x2c] sm:$0x1]
      %v403 = vld [vmem:[%s349 + $0x38] sm:$0x1]
      %v404 = vld [vmem:[%s349 + $0x44] sm:$0x1]
      %v405 = vld [vmem:[%s349 + $0x50] sm:$0x1]
      %v406 = vld [vmem:[%s349 + $0x5c] sm:$0x1]
      %v407 = vld [vmem:[%s349 + $0x68] sm:$0x1]
      %v408 = vld [vmem:[%s349 + $0x74] sm:$0x1]
      %v409 = vld [vmem:[%s349 + $0x80] sm:$0x1]
      %v410 = vld [vmem:[%s349 + $0x8c] sm:$0x1]
      %v411 = vld [vmem:[%s349 + $0x98] sm:$0x1]
      %v412 = vld [vmem:[%s349 + $0xa4] sm:$0x1]
      %v413 = vld [vmem:[%s349 + $0xb0] sm:$0x1]
      %v414 = vld [vmem:[%s349 + $0xbc] sm:$0x1]
      %v415 = vld [vmem:[%s349 + $0xc8] sm:$0x1]
      %v416 = vld [vmem:[%s349 + $0xd4] sm:$0x1]
      %v417 = vld [vmem:[%s349] sm:$0xe]
      %v418 = vld [vmem:[%s349 + $0xc] sm:$0xe]
      %v419 = vld [vmem:[%s349 + $0x18] sm:$0xe]
      %v420 = vld [vmem:[%s349 + $0x24] sm:$0xe]
      %v421 = vld [vmem:[%s349 + $0x30] sm:$0xe]
      %v422 = vld [vmem:[%s349 + $0x3c] sm:$0xe]
      %v423 = vld [vmem:[%s349 + $0x48] sm:$0xe]
      %v424 = vld [vmem:[%s349 + $0x54] sm:$0xe]
      %v425 = vld [vmem:[%s349 + $0x60] sm:$0xe]
      %v426 = vld [vmem:[%s349 + $0x6c] sm:$0xe]
      %v427 = vld [vmem:[%s349 + $0x78] sm:$0xe]
      %v428 = vld [vmem:[%s349 + $0x84] sm:$0xe]
      %v429 = vld [vmem:[%s349 + $0x90] sm:$0xe]
      %v430 = vld [vmem:[%s349 + $0x9c] sm:$0xe]
      %v431 = vld [vmem:[%s349 + $0xa8] sm:$0xe]
      %v432 = vld [vmem:[%s349 + $0xb4] sm:$0xe]
      %v433 = vld [vmem:[%s349 + $0xc0] sm:$0xe]
      %v434 = vld [vmem:[%s349 + $0xcc] sm:$0xe]
      %v435 = vld [vmem:[%s1] sm:$0x3]
      %vm436 = vsmask.f32 3328
      %vm437 = vsmask.f32 7440
      %vm438 = vmor %vm436, %vm437
      %v440 = vshrl.u32 %v363, 16
      %v442 = vrot.slane %v440, 4
      %v443 = vshll.u32 %v363, 16
      %v445 = vrot.slane %v443, 5
      %v446 = vor.u32 %v442, %v445
      %v447 = vrot.slane %v446, 4
      %v449 = vshll.u32 %v364, 16
      %v451 = vrot.slane %v449, 5
      %v452 = vsel %vm438, %v447, %v451
      %v453 = vshrl.u32 %v364, 16
      %v455 = vrot.slane %v453, 4
      %v456 = vor.u32 %v455, %v451
      %v457 = vrot.slane %v456, 4
      %v459 = vshll.u32 %v399, 16
      %v461 = vrot.slane %v459, 5
      %v462 = vsel %vm438, %v457, %v461
      %v464 = vshrl.u32 %v365, 16
      %v466 = vrot.slane %v464, 4
      %v467 = vshll.u32 %v365, 16
      %v469 = vrot.slane %v467, 5
      %v470 = vor.u32 %v466, %v469
      %v471 = vrot.slane %v470, 4
      %v473 = vshll.u32 %v366, 16
      %v475 = vrot.slane %v473, 5
      %v476 = vsel %vm438, %v471, %v475
      %v477 = vshrl.u32 %v366, 16
      %v479 = vrot.slane %v477, 4
      %v480 = vor.u32 %v479, %v475
      %v481 = vrot.slane %v480, 4
      %v483 = vshll.u32 %v400, 16
      %v485 = vrot.slane %v483, 5
      %v486 = vsel %vm438, %v481, %v485
      %v488 = vshrl.u32 %v367, 16
      %v490 = vrot.slane %v488, 4
      %v491 = vshll.u32 %v367, 16
      %v493 = vrot.slane %v491, 5
      %v494 = vor.u32 %v490, %v493
      %v495 = vrot.slane %v494, 4
      %v497 = vshll.u32 %v368, 16
      %v499 = vrot.slane %v497, 5
      %v500 = vsel %vm438, %v495, %v499
      %v501 = vshrl.u32 %v368, 16
      %v503 = vrot.slane %v501, 4
      %v504 = vor.u32 %v503, %v499
      %v505 = vrot.slane %v504, 4
      %v507 = vshll.u32 %v401, 16
      %v509 = vrot.slane %v507, 5
      %v510 = vsel %vm438, %v505, %v509
      %v512 = vshrl.u32 %v369, 16
      %v514 = vrot.slane %v512, 4
      %v515 = vshll.u32 %v369, 16
      %v517 = vrot.slane %v515, 5
      %v518 = vor.u32 %v514, %v517
      %v519 = vrot.slane %v518, 4
      %v521 = vshll.u32 %v370, 16
      %v523 = vrot.slane %v521, 5
      %v524 = vsel %vm438, %v519, %v523
      %v525 = vshrl.u32 %v370, 16
      %v527 = vrot.slane %v525, 4
      %v528 = vor.u32 %v527, %v523
      %v529 = vrot.slane %v528, 4
      %v531 = vshll.u32 %v402, 16
      %v533 = vrot.slane %v531, 5
      %v534 = vsel %vm438, %v529, %v533
      %v536 = vshrl.u32 %v371, 16
      %v538 = vrot.slane %v536, 4
      %v539 = vshll.u32 %v371, 16
      %v541 = vrot.slane %v539, 5
      %v542 = vor.u32 %v538, %v541
      %v543 = vrot.slane %v542, 4
      %v545 = vshll.u32 %v372, 16
      %v547 = vrot.slane %v545, 5
      %v548 = vsel %vm438, %v543, %v547
      %v549 = vshrl.u32 %v372, 16
      %v551 = vrot.slane %v549, 4
      %v552 = vor.u32 %v551, %v547
      %v553 = vrot.slane %v552, 4
      %v555 = vshll.u32 %v403, 16
      %v557 = vrot.slane %v555, 5
      %v558 = vsel %vm438, %v553, %v557
      %v560 = vshrl.u32 %v373, 16
      %v562 = vrot.slane %v560, 4
      %v563 = vshll.u32 %v373, 16
      %v565 = vrot.slane %v563, 5
      %v566 = vor.u32 %v562, %v565
      %v567 = vrot.slane %v566, 4
      %v569 = vshll.u32 %v374, 16
      %v571 = vrot.slane %v569, 5
      %v572 = vsel %vm438, %v567, %v571
      %v573 = vshrl.u32 %v374, 16
      %v575 = vrot.slane %v573, 4
      %v576 = vor.u32 %v575, %v571
      %v577 = vrot.slane %v576, 4
      %v579 = vshll.u32 %v404, 16
      %v581 = vrot.slane %v579, 5
      %v582 = vsel %vm438, %v577, %v581
      %v584 = vshrl.u32 %v375, 16
      %v586 = vrot.slane %v584, 4
      %v587 = vshll.u32 %v375, 16
      %v589 = vrot.slane %v587, 5
      %v590 = vor.u32 %v586, %v589
      %v591 = vrot.slane %v590, 4
      %v593 = vshll.u32 %v376, 16
      %v595 = vrot.slane %v593, 5
      %v596 = vsel %vm438, %v591, %v595
      %v597 = vshrl.u32 %v376, 16
      %v599 = vrot.slane %v597, 4
      %v600 = vor.u32 %v599, %v595
      %v601 = vrot.slane %v600, 4
      %v603 = vshll.u32 %v405, 16
      %v605 = vrot.slane %v603, 5
      %v606 = vsel %vm438, %v601, %v605
      %v608 = vshrl.u32 %v377, 16
      %v610 = vrot.slane %v608, 4
      %v611 = vshll.u32 %v377, 16
      %v613 = vrot.slane %v611, 5
      %v614 = vor.u32 %v610, %v613
      %v615 = vrot.slane %v614, 4
      %v617 = vshll.u32 %v378, 16
      %v619 = vrot.slane %v617, 5
      %v620 = vsel %vm438, %v615, %v619
      %v621 = vshrl.u32 %v378, 16
      %v623 = vrot.slane %v621, 4
      %v624 = vor.u32 %v623, %v619
      %v625 = vrot.slane %v624, 4
      %v627 = vshll.u32 %v406, 16
      %v629 = vrot.slane %v627, 5
      %v630 = vsel %vm438, %v625, %v629
      %v632 = vshrl.u32 %v379, 16
      %v634 = vrot.slane %v632, 4
      %v635 = vshll.u32 %v379, 16
      %v637 = vrot.slane %v635, 5
      %v638 = vor.u32 %v634, %v637
      %v639 = vrot.slane %v638, 4
      %v641 = vshll.u32 %v380, 16
      %v643 = vrot.slane %v641, 5
      %v644 = vsel %vm438, %v639, %v643
      %v645 = vshrl.u32 %v380, 16
      %v647 = vrot.slane %v645, 4
      %v648 = vor.u32 %v647, %v643
      %v649 = vrot.slane %v648, 4
      %v651 = vshll.u32 %v407, 16
      %v653 = vrot.slane %v651, 5
      %v654 = vsel %vm438, %v649, %v653
      %v656 = vshrl.u32 %v381, 16
      %v658 = vrot.slane %v656, 4
      %v659 = vshll.u32 %v381, 16
      %v661 = vrot.slane %v659, 5
      %v662 = vor.u32 %v658, %v661
      %v663 = vrot.slane %v662, 4
      %v665 = vshll.u32 %v382, 16
      %v667 = vrot.slane %v665, 5
      %v668 = vsel %vm438, %v663, %v667
      %v669 = vshrl.u32 %v382, 16
      %v671 = vrot.slane %v669, 4
      %v672 = vor.u32 %v671, %v667
      %v673 = vrot.slane %v672, 4
      %v675 = vshll.u32 %v408, 16
      %v677 = vrot.slane %v675, 5
      %v678 = vsel %vm438, %v673, %v677
      %v680 = vshrl.u32 %v383, 16
      %v682 = vrot.slane %v680, 4
      %v683 = vshll.u32 %v383, 16
      %v685 = vrot.slane %v683, 5
      %v686 = vor.u32 %v682, %v685
      %v687 = vrot.slane %v686, 4
      %v689 = vshll.u32 %v384, 16
      %v691 = vrot.slane %v689, 5
      %v692 = vsel %vm438, %v687, %v691
      %v693 = vshrl.u32 %v384, 16
      %v695 = vrot.slane %v693, 4
      %v696 = vor.u32 %v695, %v691
      %v697 = vrot.slane %v696, 4
      %v699 = vshll.u32 %v409, 16
      %v701 = vrot.slane %v699, 5
      %v702 = vsel %vm438, %v697, %v701
      %v704 = vshrl.u32 %v385, 16
      %v706 = vrot.slane %v704, 4
      %v707 = vshll.u32 %v385, 16
      %v709 = vrot.slane %v707, 5
      %v710 = vor.u32 %v706, %v709
      %v711 = vrot.slane %v710, 4
      %v713 = vshll.u32 %v386, 16
      %v715 = vrot.slane %v713, 5
      %v716 = vsel %vm438, %v711, %v715
      %v717 = vshrl.u32 %v386, 16
      %v719 = vrot.slane %v717, 4
      %v720 = vor.u32 %v719, %v715
      %v721 = vrot.slane %v720, 4
      %v723 = vshll.u32 %v410, 16
      %v725 = vrot.slane %v723, 5
      %v726 = vsel %vm438, %v721, %v725
      %v728 = vshrl.u32 %v387, 16
      %v730 = vrot.slane %v728, 4
      %v731 = vshll.u32 %v387, 16
      %v733 = vrot.slane %v731, 5
      %v734 = vor.u32 %v730, %v733
      %v735 = vrot.slane %v734, 4
      %v737 = vshll.u32 %v388, 16
      %v739 = vrot.slane %v737, 5
      %v740 = vsel %vm438, %v735, %v739
      %v741 = vshrl.u32 %v388, 16
      %v743 = vrot.slane %v741, 4
      %v744 = vor.u32 %v743, %v739
      %v745 = vrot.slane %v744, 4
      %v747 = vshll.u32 %v411, 16
      %v749 = vrot.slane %v747, 5
      %v750 = vsel %vm438, %v745, %v749
      %v752 = vshrl.u32 %v389, 16
      %v754 = vrot.slane %v752, 4
      %v755 = vshll.u32 %v389, 16
      %v757 = vrot.slane %v755, 5
      %v758 = vor.u32 %v754, %v757
      %v759 = vrot.slane %v758, 4
      %v761 = vshll.u32 %v390, 16
      %v763 = vrot.slane %v761, 5
      %v764 = vsel %vm438, %v759, %v763
      %v765 = vshrl.u32 %v390, 16
      %v767 = vrot.slane %v765, 4
      %v768 = vor.u32 %v767, %v763
      %v769 = vrot.slane %v768, 4
      %v771 = vshll.u32 %v412, 16
      %v773 = vrot.slane %v771, 5
      %v774 = vsel %vm438, %v769, %v773
      %v776 = vshrl.u32 %v391, 16
      %v778 = vrot.slane %v776, 4
      %v779 = vshll.u32 %v391, 16
      %v781 = vrot.slane %v779, 5
      %v782 = vor.u32 %v778, %v781
      %v783 = vrot.slane %v782, 4
      %v785 = vshll.u32 %v392, 16
      %v787 = vrot.slane %v785, 5
      %v788 = vsel %vm438, %v783, %v787
      %v789 = vshrl.u32 %v392, 16
      %v791 = vrot.slane %v789, 4
      %v792 = vor.u32 %v791, %v787
      %v793 = vrot.slane %v792, 4
      %v795 = vshll.u32 %v413, 16
      %v797 = vrot.slane %v795, 5
      %v798 = vsel %vm438, %v793, %v797
      %v800 = vshrl.u32 %v393, 16
      %v802 = vrot.slane %v800, 4
      %v803 = vshll.u32 %v393, 16
      %v805 = vrot.slane %v803, 5
      %v806 = vor.u32 %v802, %v805
      %v807 = vrot.slane %v806, 4
      %v809 = vshll.u32 %v394, 16
      %v811 = vrot.slane %v809, 5
      %v812 = vsel %vm438, %v807, %v811
      %v813 = vshrl.u32 %v394, 16
      %v815 = vrot.slane %v813, 4
      %v816 = vor.u32 %v815, %v811
      %v817 = vrot.slane %v816, 4
      %v819 = vshll.u32 %v414, 16
      %v821 = vrot.slane %v819, 5
      %v822 = vsel %vm438, %v817, %v821
      %s823 = scalar_lea.vmem %s1, 2
      %v824 = vld [vmem:[%s823] sm:$0x3]
      %v825 = vunpack.c.l.b16 %v452
      %v826 = vunpack.c.l.b16 %v462
      %v827 = vunpack.c.l.b16 %v476
      %v828 = vunpack.c.l.b16 %v486
      %v829 = vunpack.c.l.b16 %v500
      %v830 = vunpack.c.l.b16 %v510
      %v831 = vunpack.c.l.b16 %v524
      %v832 = vunpack.c.l.b16 %v534
      %v833 = vunpack.c.l.b16 %v548
      %v834 = vunpack.c.l.b16 %v558
      %v835 = vunpack.c.l.b16 %v572
      %v836 = vunpack.c.l.b16 %v582
      %v837 = vunpack.c.l.b16 %v596
      %v838 = vunpack.c.l.b16 %v606
      %v839 = vunpack.c.l.b16 %v620
      %v840 = vunpack.c.l.b16 %v630
      %v841 = vunpack.c.l.b16 %v644
      %v842 = vunpack.c.l.b16 %v654
      %v843 = vunpack.c.l.b16 %v668
      %v844 = vunpack.c.l.b16 %v678
      %v845 = vunpack.c.l.b16 %v692
      %v846 = vunpack.c.l.b16 %v702
      %v847 = vunpack.c.l.b16 %v716
      %v848 = vunpack.c.l.b16 %v726
      %v849 = vunpack.c.l.b16 %v740
      %v850 = vunpack.c.l.b16 %v750
      %v851 = vunpack.c.l.b16 %v764
      %v852 = vunpack.c.l.b16 %v774
      %v853 = vunpack.c.l.b16 %v788
      %v854 = vunpack.c.l.b16 %v798
      %v855 = vunpack.c.l.b16 %v812
      %v856 = vunpack.c.l.b16 %v822
      %v857 = vpack.c.b16 %v826, %v825
      %v858 = vpack.c.b16 %v828, %v827
      %v859 = vpack.c.b16 %v830, %v829
      %v860 = vpack.c.b16 %v832, %v831
      %v861 = vpack.c.b16 %v834, %v833
      %v862 = vpack.c.b16 %v836, %v835
      %v863 = vpack.c.b16 %v838, %v837
      %v864 = vpack.c.b16 %v840, %v839
      %v865 = vpack.c.b16 %v842, %v841
      %v866 = vpack.c.b16 %v844, %v843
      %v867 = vpack.c.b16 %v846, %v845
      %v868 = vpack.c.b16 %v848, %v847
      %v869 = vpack.c.b16 %v850, %v849
      %v870 = vpack.c.b16 %v852, %v851
      %v871 = vpack.c.b16 %v854, %v853
      %v872 = vpack.c.b16 %v856, %v855
      %vm873 = vcmask 31744
      %v875 = vsel %vm873, %v857, 0
      %v878 = vsel %vm873, %v858, 0
      %v881 = vsel %vm873, %v859, 0
      %v884 = vsel %vm873, %v860, 0
      %v887 = vsel %vm873, %v861, 0
      %v890 = vsel %vm873, %v862, 0
      %v893 = vsel %vm873, %v863, 0
      %v896 = vsel %vm873, %v864, 0
      %v899 = vsel %vm873, %v865, 0
      %v902 = vsel %vm873, %v866, 0
      %v905 = vsel %vm873, %v867, 0
      %v908 = vsel %vm873, %v868, 0
      %v911 = vsel %vm873, %v869, 0
      %v914 = vsel %vm873, %v870, 0
      %v917 = vsel %vm873, %v871, 0
      %v920 = vsel %vm873, %v872, 0
      %vm922 = vcmask 1041408
      %v924 = vsel %vm922, %v824, 0
      %926 = vmatprep.subr.bf16.mxu0 0
      %927 = vmatpush1.bf16.msra.mxu0 %v924
      %928 = vmatprep.subr.bf16.mxu0 0
      %929 = vmatpush1.bf16.msra.mxu0 0
      %930 = vmatprep.subr.bf16.mxu0 0
      %931 = vmatpush1.bf16.msra.mxu0 0
      %932 = vmatprep.subr.bf16.mxu0 0
      %933 = vmatpush1.bf16.msra.mxu0 0
      %934 = vmatprep.subr.bf16.mxu0 0
      %935 = vmatpush1.bf16.msra.mxu0 0
      %936 = vmatprep.subr.bf16.mxu0 0
      %937 = vmatpush1.bf16.msra.mxu0 0
      %938 = vmatprep.subr.bf16.mxu0 0
      %939 = vmatpush1.bf16.msra.mxu0 0
      %940 = vmatprep.subr.bf16.mxu0 0
      %941 = vmatpush1.bf16.msra.mxu0 0
      %942 = vmatprep.subr.bf16.mxu0 0
      %943 = vmatpush1.bf16.msra.mxu0 0
      %944 = vmatprep.subr.bf16.mxu0 0
      %945 = vmatpush1.bf16.msra.mxu0 0
      %946 = vmatprep.subr.bf16.mxu0 0
      %947 = vmatpush1.bf16.msra.mxu0 0
      %948 = vmatprep.subr.bf16.mxu0 0
      %949 = vmatpush1.bf16.msra.mxu0 0
      %950 = vmatprep.subr.bf16.mxu0 0
      %951 = vmatpush1.bf16.msra.mxu0 0
      %952 = vmatprep.subr.bf16.mxu0 0
      %953 = vmatpush1.bf16.msra.mxu0 0
      %954 = vmatprep.subr.bf16.mxu0 0
      %955 = vmatpush1.bf16.msra.mxu0 0
      %956 = vmatprep.subr.bf16.mxu0 0
      %957 = vmatpush1.bf16.msra.mxu0 0
      %958 = vmatprep.mubr.bf16.mxu0 0
      %959 = vmatmul.mubr.bf16.gmra.mrb[0].mxu0 %v875
      %v960 = vpop.f32.mrb[0].mxu0
      %v961 = vadd.f32 0.0, %v960
      %v962 = vpop.f32.mrb[0].mxu0
      %v963 = vpop.f32.mrb[0].mxu0
      %v964 = vadd.f32 0.0, %v963
      %v965 = vpop.f32.mrb[0].mxu0
      %966 = vmatprep.mubr.bf16.mxu0 0
      %967 = vmatmul.mubr.bf16.gmra.mrb[0].mxu0 %v878
      %v968 = vpop.f32.mrb[0].mxu0
      %v969 = vadd.f32 0.0, %v968
      %v970 = vpop.f32.mrb[0].mxu0
      %v971 = vpop.f32.mrb[0].mxu0
      %v972 = vadd.f32 0.0, %v971
      %v973 = vpop.f32.mrb[0].mxu0
      %974 = vmatprep.mubr.bf16.mxu0 0
      %975 = vmatmul.mubr.bf16.gmra.mrb[0].mxu0 %v881
      %v976 = vpop.f32.mrb[0].mxu0
      %v977 = vadd.f32 0.0, %v976
      %v978 = vpop.f32.mrb[0].mxu0
      %v979 = vpop.f32.mrb[0].mxu0
      %v980 = vadd.f32 0.0, %v979
      %v981 = vpop.f32.mrb[0].mxu0
      %982 = vmatprep.mubr.bf16.mxu0 0
      %983 = vmatmul.mubr.bf16.gmra.mrb[0].mxu0 %v884
      %v984 = vpop.f32.mrb[0].mxu0
      %v985 = vadd.f32 0.0, %v984
      %v986 = vpop.f32.mrb[0].mxu0
      %v987 = vpop.f32.mrb[0].mxu0
      %v988 = vadd.f32 0.0, %v987
      %v989 = vpop.f32.mrb[0].mxu0
      %990 = vmatprep.mubr.bf16.mxu0 0
      %991 = vmatmul.mubr.bf16.gmra.mrb[0].mxu0 %v887
      %v992 = vpop.f32.mrb[0].mxu0
      %v993 = vadd.f32 0.0, %v992
      %v994 = vpop.f32.mrb[0].mxu0
      %v995 = vpop.f32.mrb[0].mxu0
      %v996 = vadd.f32 0.0, %v995
      %v997 = vpop.f32.mrb[0].mxu0
      %998 = vmatprep.mubr.bf16.mxu0 0
      %999 = vmatmul.mubr.bf16.gmra.mrb[0].mxu0 %v890
      %v1000 = vpop.f32.mrb[0].mxu0
      %v1001 = vadd.f32 0.0, %v1000
      %v1002 = vpop.f32.mrb[0].mxu0
      %v1003 = vpop.f32.mrb[0].mxu0
      %v1004 = vadd.f32 0.0, %v1003
      %v1005 = vpop.f32.mrb[0].mxu0
      %1006 = vmatprep.mubr.bf16.mxu0 0
      %1007 = vmatmul.mubr.bf16.gmra.mrb[0].mxu0 %v893
      %v1008 = vpop.f32.mrb[0].mxu0
      %v1009 = vadd.f32 0.0, %v1008
      %v1010 = vpop.f32.mrb[0].mxu0
      %v1011 = vpop.f32.mrb[0].mxu0
      %v1012 = vadd.f32 0.0, %v1011
      %v1013 = vpop.f32.mrb[0].mxu0
      %1014 = vmatprep.mubr.bf16.mxu0 0
      %1015 = vmatmul.mubr.bf16.gmra.mrb[0].mxu0 %v896
      %v1016 = vpop.f32.mrb[0].mxu0
      %v1017 = vadd.f32 0.0, %v1016
      %v1018 = vpop.f32.mrb[0].mxu0
      %v1019 = vpop.f32.mrb[0].mxu0
      %v1020 = vadd.f32 0.0, %v1019
      %v1021 = vpop.f32.mrb[0].mxu0
      %1022 = vmatprep.mubr.bf16.mxu0 0
      %1023 = vmatmul.mubr.bf16.gmra.mrb[0].mxu0 %v899
      %v1024 = vpop.f32.mrb[0].mxu0
      %v1025 = vadd.f32 0.0, %v1024
      %v1026 = vpop.f32.mrb[0].mxu0
      %v1027 = vpop.f32.mrb[0].mxu0
      %v1028 = vadd.f32 0.0, %v1027
      %v1029 = vpop.f32.mrb[0].mxu0
      %1030 = vmatprep.mubr.bf16.mxu0 0
      %1031 = vmatmul.mubr.bf16.gmra.mrb[0].mxu0 %v902
      %v1032 = vpop.f32.mrb[0].mxu0
      %v1033 = vadd.f32 0.0, %v1032
      %v1034 = vpop.f32.mrb[0].mxu0
      %v1035 = vpop.f32.mrb[0].mxu0
      %v1036 = vadd.f32 0.0, %v1035
      %v1037 = vpop.f32.mrb[0].mxu0
      %1038 = vmatprep.mubr.bf16.mxu0 0
      %1039 = vmatmul.mubr.bf16.gmra.mrb[0].mxu0 %v905
      %v1040 = vpop.f32.mrb[0].mxu0
      %v1041 = vadd.f32 0.0, %v1040
      %v1042 = vpop.f32.mrb[0].mxu0
      %v1043 = vpop.f32.mrb[0].mxu0
      %v1044 = vadd.f32 0.0, %v1043
      %v1045 = vpop.f32.mrb[0].mxu0
      %1046 = vmatprep.mubr.bf16.mxu0 0
      %1047 = vmatmul.mubr.bf16.gmra.mrb[0].mxu0 %v908
      %v1048 = vpop.f32.mrb[0].mxu0
      %v1049 = vadd.f32 0.0, %v1048
      %v1050 = vpop.f32.mrb[0].mxu0
      %v1051 = vpop.f32.mrb[0].mxu0
      %v1052 = vadd.f32 0.0, %v1051
      %v1053 = vpop.f32.mrb[0].mxu0
      %1054 = vmatprep.mubr.bf16.mxu0 0
      %1055 = vmatmul.mubr.bf16.gmra.mrb[0].mxu0 %v911
      %v1056 = vpop.f32.mrb[0].mxu0
      %v1057 = vadd.f32 0.0, %v1056
      %v1058 = vpop.f32.mrb[0].mxu0
      %v1059 = vpop.f32.mrb[0].mxu0
      %v1060 = vadd.f32 0.0, %v1059
      %v1061 = vpop.f32.mrb[0].mxu0
      %1062 = vmatprep.mubr.bf16.mxu0 0
      %1063 = vmatmul.mubr.bf16.gmra.mrb[0].mxu0 %v914
      %v1064 = vpop.f32.mrb[0].mxu0
      %v1065 = vadd.f32 0.0, %v1064
      %v1066 = vpop.f32.mrb[0].mxu0
      %v1067 = vpop.f32.mrb[0].mxu0
      %v1068 = vadd.f32 0.0, %v1067
      %v1069 = vpop.f32.mrb[0].mxu0
      %1070 = vmatprep.mubr.bf16.mxu0 0
      %1071 = vmatmul.mubr.bf16.gmra.mrb[0].mxu0 %v917
      %v1072 = vpop.f32.mrb[0].mxu0
      %v1073 = vadd.f32 0.0, %v1072
      %v1074 = vpop.f32.mrb[0].mxu0
      %v1075 = vpop.f32.mrb[0].mxu0
      %v1076 = vadd.f32 0.0, %v1075
      %v1077 = vpop.f32.mrb[0].mxu0
      %1078 = vmatprep.mubr.bf16.mxu0 0
      %1079 = vmatmul.mubr.bf16.gmra.mrb[0].mxu0 %v920
      %v1080 = vpop.f32.mrb[0].mxu0
      %v1081 = vadd.f32 0.0, %v1080
      %v1082 = vpop.f32.mrb[0].mxu0
      %v1083 = vpop.f32.mrb[0].mxu0
      %v1084 = vadd.f32 0.0, %v1083
      %v1085 = vpop.f32.mrb[0].mxu0
      %1086 = vdwg.mxu0
      %v1119 = vunpack.c.l.b16 %v363
      %v1120 = vunpack.c.l.b16 %v364
      %v1121 = vunpack.c.l.b16 %v365
      %v1122 = vunpack.c.l.b16 %v366
      %v1123 = vunpack.c.l.b16 %v367
      %v1124 = vunpack.c.l.b16 %v368
      %v1125 = vunpack.c.l.b16 %v369
      %v1126 = vunpack.c.l.b16 %v370
      %v1127 = vunpack.c.l.b16 %v371
      %v1128 = vunpack.c.l.b16 %v372
      %v1129 = vunpack.c.l.b16 %v373
      %v1130 = vunpack.c.l.b16 %v374
      %v1131 = vunpack.c.l.b16 %v375
      %v1132 = vunpack.c.l.b16 %v376
      %v1133 = vunpack.c.l.b16 %v377
      %v1134 = vunpack.c.l.b16 %v378
      %v1135 = vunpack.c.l.b16 %v379
      %v1136 = vunpack.c.l.b16 %v380
      %v1137 = vunpack.c.l.b16 %v381
      %v1138 = vunpack.c.l.b16 %v382
      %v1139 = vunpack.c.l.b16 %v383
      %v1140 = vunpack.c.l.b16 %v384
      %v1141 = vunpack.c.l.b16 %v385
      %v1142 = vunpack.c.l.b16 %v386
      %v1143 = vunpack.c.l.b16 %v387
      %v1144 = vunpack.c.l.b16 %v388
      %v1145 = vunpack.c.l.b16 %v389
      %v1146 = vunpack.c.l.b16 %v390
      %v1147 = vunpack.c.l.b16 %v391
      %v1148 = vunpack.c.l.b16 %v392
      %v1149 = vunpack.c.l.b16 %v393
      %v1150 = vunpack.c.l.b16 %v394
      %v1151 = vpack.c.b16 %v1120, %v1119
      %v1152 = vpack.c.b16 %v1122, %v1121
      %v1153 = vpack.c.b16 %v1124, %v1123
      %v1154 = vpack.c.b16 %v1126, %v1125
      %v1155 = vpack.c.b16 %v1128, %v1127
      %v1156 = vpack.c.b16 %v1130, %v1129
      %v1157 = vpack.c.b16 %v1132, %v1131
      %v1158 = vpack.c.b16 %v1134, %v1133
      %v1159 = vpack.c.b16 %v1136, %v1135
      %v1160 = vpack.c.b16 %v1138, %v1137
      %v1161 = vpack.c.b16 %v1140, %v1139
      %v1162 = vpack.c.b16 %v1142, %v1141
      %v1163 = vpack.c.b16 %v1144, %v1143
      %v1164 = vpack.c.b16 %v1146, %v1145
      %v1165 = vpack.c.b16 %v1148, %v1147
      %v1166 = vpack.c.b16 %v1150, %v1149
      %v1168 = vsel %vm873, %v1151, 0
      %v1171 = vsel %vm873, %v1152, 0
      %v1174 = vsel %vm873, %v1153, 0
      %v1177 = vsel %vm873, %v1154, 0
      %v1180 = vsel %vm873, %v1155, 0
      %v1183 = vsel %vm873, %v1156, 0
      %v1186 = vsel %vm873, %v1157, 0
      %v1189 = vsel %vm873, %v1158, 0
      %v1192 = vsel %vm873, %v1159, 0
      %v1195 = vsel %vm873, %v1160, 0
      %v1198 = vsel %vm873, %v1161, 0
      %v1201 = vsel %vm873, %v1162, 0
      %v1204 = vsel %vm873, %v1163, 0
      %v1207 = vsel %vm873, %v1164, 0
      %v1210 = vsel %vm873, %v1165, 0
      %v1213 = vsel %vm873, %v1166, 0
      %v1216 = vsel %vm922, %v435, 0
      %1218 = vmatprep.subr.bf16.mxu0 0
      %1219 = vmatpush1.bf16.msra.mxu0 %v1216
      %1220 = vmatprep.subr.bf16.mxu0 0
      %1221 = vmatpush1.bf16.msra.mxu0 0
      %1222 = vmatprep.subr.bf16.mxu0 0
      %1223 = vmatpush1.bf16.msra.mxu0 0
      %1224 = vmatprep.subr.bf16.mxu0 0
      %1225 = vmatpush1.bf16.msra.mxu0 0
      %1226 = vmatprep.subr.bf16.mxu0 0
      %1227 = vmatpush1.bf16.msra.mxu0 0
      %1228 = vmatprep.subr.bf16.mxu0 0
      %1229 = vmatpush1.bf16.msra.mxu0 0
      %1230 = vmatprep.subr.bf16.mxu0 0
      %1231 = vmatpush1.bf16.msra.mxu0 0
      %1232 = vmatprep.subr.bf16.mxu0 0
      %1233 = vmatpush1.bf16.msra.mxu0 0
      %1234 = vmatprep.subr.bf16.mxu0 0
      %1235 = vmatpush1.bf16.msra.mxu0 0
      %1236 = vmatprep.subr.bf16.mxu0 0
      %1237 = vmatpush1.bf16.msra.mxu0 0
      %1238 = vmatprep.subr.bf16.mxu0 0
      %1239 = vmatpush1.bf16.msra.mxu0 0
      %1240 = vmatprep.subr.bf16.mxu0 0
      %1241 = vmatpush1.bf16.msra.mxu0 0
      %1242 = vmatprep.subr.bf16.mxu0 0
      %1243 = vmatpush1.bf16.msra.mxu0 0
      %1244 = vmatprep.subr.bf16.mxu0 0
      %1245 = vmatpush1.bf16.msra.mxu0 0
      %1246 = vmatprep.subr.bf16.mxu0 0
      %1247 = vmatpush1.bf16.msra.mxu0 0
      %1248 = vmatprep.subr.bf16.mxu0 0
      %1249 = vmatpush1.bf16.msra.mxu0 0
      %1250 = vmatprep.mubr.bf16.mxu0 0
      %1251 = vmatmul.mubr.bf16.gmra.mrb[0].mxu0 %v1168
      %v1252 = vpop.f32.mrb[0].mxu0
      %v1253 = vadd.f32 %v961, %v1252
      %v1254 = vpop.f32.mrb[0].mxu0
      %v1255 = vpop.f32.mrb[0].mxu0
      %v1256 = vadd.f32 %v964, %v1255
      %v1257 = vpop.f32.mrb[0].mxu0
      %1258 = vmatprep.mubr.bf16.mxu0 0
      %1259 = vmatmul.mubr.bf16.gmra.mrb[0].mxu0 %v1171
      %v1260 = vpop.f32.mrb[0].mxu0
      %v1261 = vadd.f32 %v969, %v1260
      %v1262 = vpop.f32.mrb[0].mxu0
      %v1263 = vpop.f32.mrb[0].mxu0
      %v1264 = vadd.f32 %v972, %v1263
      %v1265 = vpop.f32.mrb[0].mxu0
      %1266 = vmatprep.mubr.bf16.mxu0 0
      %1267 = vmatmul.mubr.bf16.gmra.mrb[0].mxu0 %v1174
      %v1268 = vpop.f32.mrb[0].mxu0
      %v1269 = vadd.f32 %v977, %v1268
      %v1270 = vpop.f32.mrb[0].mxu0
      %v1271 = vpop.f32.mrb[0].mxu0
      %v1272 = vadd.f32 %v980, %v1271
      %v1273 = vpop.f32.mrb[0].mxu0
      %1274 = vmatprep.mubr.bf16.mxu0 0
      %1275 = vmatmul.mubr.bf16.gmra.mrb[0].mxu0 %v1177
      %v1276 = vpop.f32.mrb[0].mxu0
      %v1277 = vadd.f32 %v985, %v1276
      %v1278 = vpop.f32.mrb[0].mxu0
      %v1279 = vpop.f32.mrb[0].mxu0
      %v1280 = vadd.f32 %v988, %v1279
      %v1281 = vpop.f32.mrb[0].mxu0
      %1282 = vmatprep.mubr.bf16.mxu0 0
      %1283 = vmatmul.mubr.bf16.gmra.mrb[0].mxu0 %v1180
      %v1284 = vpop.f32.mrb[0].mxu0
      %v1285 = vadd.f32 %v993, %v1284
      %v1286 = vpop.f32.mrb[0].mxu0
      %v1287 = vpop.f32.mrb[0].mxu0
      %v1288 = vadd.f32 %v996, %v1287
      %v1289 = vpop.f32.mrb[0].mxu0
      %1290 = vmatprep.mubr.bf16.mxu0 0
      %1291 = vmatmul.mubr.bf16.gmra.mrb[0].mxu0 %v1183
      %v1292 = vpop.f32.mrb[0].mxu0
      %v1293 = vadd.f32 %v1001, %v1292
      %v1294 = vpop.f32.mrb[0].mxu0
      %v1295 = vpop.f32.mrb[0].mxu0
      %v1296 = vadd.f32 %v1004, %v1295
      %v1297 = vpop.f32.mrb[0].mxu0
      %1298 = vmatprep.mubr.bf16.mxu0 0
      %1299 = vmatmul.mubr.bf16.gmra.mrb[0].mxu0 %v1186
      %v1300 = vpop.f32.mrb[0].mxu0
      %v1301 = vadd.f32 %v1009, %v1300
      %v1302 = vpop.f32.mrb[0].mxu0
      %v1303 = vpop.f32.mrb[0].mxu0
      %v1304 = vadd.f32 %v1012, %v1303
      %v1305 = vpop.f32.mrb[0].mxu0
      %1306 = vmatprep.mubr.bf16.mxu0 0
      %1307 = vmatmul.mubr.bf16.gmra.mrb[0].mxu0 %v1189
      %v1308 = vpop.f32.mrb[0].mxu0
      %v1309 = vadd.f32 %v1017, %v1308
      %v1310 = vpop.f32.mrb[0].mxu0
      %v1311 = vpop.f32.mrb[0].mxu0
      %v1312 = vadd.f32 %v1020, %v1311
      %v1313 = vpop.f32.mrb[0].mxu0
      %1314 = vmatprep.mubr.bf16.mxu0 0
      %1315 = vmatmul.mubr.bf16.gmra.mrb[0].mxu0 %v1192
      %v1316 = vpop.f32.mrb[0].mxu0
      %v1317 = vadd.f32 %v1025, %v1316
      %v1318 = vpop.f32.mrb[0].mxu0
      %v1319 = vpop.f32.mrb[0].mxu0
      %v1320 = vadd.f32 %v1028, %v1319
      %v1321 = vpop.f32.mrb[0].mxu0
      %1322 = vmatprep.mubr.bf16.mxu0 0
      %1323 = vmatmul.mubr.bf16.gmra.mrb[0].mxu0 %v1195
      %v1324 = vpop.f32.mrb[0].mxu0
      %v1325 = vadd.f32 %v1033, %v1324
      %v1326 = vpop.f32.mrb[0].mxu0
      %v1327 = vpop.f32.mrb[0].mxu0
      %v1328 = vadd.f32 %v1036, %v1327
      %v1329 = vpop.f32.mrb[0].mxu0
      %1330 = vmatprep.mubr.bf16.mxu0 0
      %1331 = vmatmul.mubr.bf16.gmra.mrb[0].mxu0 %v1198
      %v1332 = vpop.f32.mrb[0].mxu0
      %v1333 = vadd.f32 %v1041, %v1332
      %v1334 = vpop.f32.mrb[0].mxu0
      %v1335 = vpop.f32.mrb[0].mxu0
      %v1336 = vadd.f32 %v1044, %v1335
      %v1337 = vpop.f32.mrb[0].mxu0
      %1338 = vmatprep.mubr.bf16.mxu0 0
      %1339 = vmatmul.mubr.bf16.gmra.mrb[0].mxu0 %v1201
      %v1340 = vpop.f32.mrb[0].mxu0
      %v1341 = vadd.f32 %v1049, %v1340
      %v1342 = vpop.f32.mrb[0].mxu0
      %v1343 = vpop.f32.mrb[0].mxu0
      %v1344 = vadd.f32 %v1052, %v1343
      %v1345 = vpop.f32.mrb[0].mxu0
      %1346 = vmatprep.mubr.bf16.mxu0 0
      %1347 = vmatmul.mubr.bf16.gmra.mrb[0].mxu0 %v1204
      %v1348 = vpop.f32.mrb[0].mxu0
      %v1349 = vadd.f32 %v1057, %v1348
      %v1350 = vpop.f32.mrb[0].mxu0
      %v1351 = vpop.f32.mrb[0].mxu0
      %v1352 = vadd.f32 %v1060, %v1351
      %v1353 = vpop.f32.mrb[0].mxu0
      %1354 = vmatprep.mubr.bf16.mxu0 0
      %1355 = vmatmul.mubr.bf16.gmra.mrb[0].mxu0 %v1207
      %v1356 = vpop.f32.mrb[0].mxu0
      %v1357 = vadd.f32 %v1065, %v1356
      %v1358 = vpop.f32.mrb[0].mxu0
      %v1359 = vpop.f32.mrb[0].mxu0
      %v1360 = vadd.f32 %v1068, %v1359
      %v1361 = vpop.f32.mrb[0].mxu0
      %1362 = vmatprep.mubr.bf16.mxu0 0
      %1363 = vmatmul.mubr.bf16.gmra.mrb[0].mxu0 %v1210
      %v1364 = vpop.f32.mrb[0].mxu0
      %v1365 = vadd.f32 %v1073, %v1364
      %v1366 = vpop.f32.mrb[0].mxu0
      %v1367 = vpop.f32.mrb[0].mxu0
      %v1368 = vadd.f32 %v1076, %v1367
      %v1369 = vpop.f32.mrb[0].mxu0
      %1370 = vmatprep.mubr.bf16.mxu0 0
      %1371 = vmatmul.mubr.bf16.gmra.mrb[0].mxu0 %v1213
      %v1372 = vpop.f32.mrb[0].mxu0
      %v1373 = vadd.f32 %v1081, %v1372
      %v1374 = vpop.f32.mrb[0].mxu0
      %v1375 = vpop.f32.mrb[0].mxu0
      %v1376 = vadd.f32 %v1084, %v1375
      %v1377 = vpop.f32.mrb[0].mxu0
      %1378 = vdwg.mxu0
      %vm1411 = vcmask 1042432
      %vm1412 = vcmask 1046532
      %vm1413 = vmor %vm1411, %vm1412
      %v1414 = vrot.slane %v417, 5
      %v1415 = vrot.slane %v1414, 4
      %v1416 = vrot.slane %v364, 5
      %v1417 = vsel %vm1413, %v1415, %v1416
      %v1418 = vrot.slane %v1416, 4
      %v1419 = vrot.slane %v399, 5
      %v1420 = vsel %vm1413, %v1418, %v1419
      %v1421 = vrot.slane %v418, 5
      %v1422 = vrot.slane %v1421, 4
      %v1423 = vrot.slane %v366, 5
      %v1424 = vsel %vm1413, %v1422, %v1423
      %v1425 = vrot.slane %v1423, 4
      %v1426 = vrot.slane %v400, 5
      %v1427 = vsel %vm1413, %v1425, %v1426
      %v1428 = vrot.slane %v419, 5
      %v1429 = vrot.slane %v1428, 4
      %v1430 = vrot.slane %v368, 5
      %v1431 = vsel %vm1413, %v1429, %v1430
      %v1432 = vrot.slane %v1430, 4
      %v1433 = vrot.slane %v401, 5
      %v1434 = vsel %vm1413, %v1432, %v1433
      %v1435 = vrot.slane %v420, 5
      %v1436 = vrot.slane %v1435, 4
      %v1437 = vrot.slane %v370, 5
      %v1438 = vsel %vm1413, %v1436, %v1437
      %v1439 = vrot.slane %v1437, 4
      %v1440 = vrot.slane %v402, 5
      %v1441 = vsel %vm1413, %v1439, %v1440
      %v1442 = vrot.slane %v421, 5
      %v1443 = vrot.slane %v1442, 4
      %v1444 = vrot.slane %v372, 5
      %v1445 = vsel %vm1413, %v1443, %v1444
      %v1446 = vrot.slane %v1444, 4
      %v1447 = vrot.slane %v403, 5
      %v1448 = vsel %vm1413, %v1446, %v1447
      %v1449 = vrot.slane %v422, 5
      %v1450 = vrot.slane %v1449, 4
      %v1451 = vrot.slane %v374, 5
      %v1452 = vsel %vm1413, %v1450, %v1451
      %v1453 = vrot.slane %v1451, 4
      %v1454 = vrot.slane %v404, 5
      %v1455 = vsel %vm1413, %v1453, %v1454
      %v1456 = vrot.slane %v423, 5
      %v1457 = vrot.slane %v1456, 4
      %v1458 = vrot.slane %v376, 5
      %v1459 = vsel %vm1413, %v1457, %v1458
      %v1460 = vrot.slane %v1458, 4
      %v1461 = vrot.slane %v405, 5
      %v1462 = vsel %vm1413, %v1460, %v1461
      %v1463 = vrot.slane %v424, 5
      %v1464 = vrot.slane %v1463, 4
      %v1465 = vrot.slane %v378, 5
      %v1466 = vsel %vm1413, %v1464, %v1465
      %v1467 = vrot.slane %v1465, 4
      %v1468 = vrot.slane %v406, 5
      %v1469 = vsel %vm1413, %v1467, %v1468
      %v1470 = vrot.slane %v425, 5
      %v1471 = vrot.slane %v1470, 4
      %v1472 = vrot.slane %v380, 5
      %v1473 = vsel %vm1413, %v1471, %v1472
      %v1474 = vrot.slane %v1472, 4
      %v1475 = vrot.slane %v407, 5
      %v1476 = vsel %vm1413, %v1474, %v1475
      %v1477 = vrot.slane %v426, 5
      %v1478 = vrot.slane %v1477, 4
      %v1479 = vrot.slane %v382, 5
      %v1480 = vsel %vm1413, %v1478, %v1479
      %v1481 = vrot.slane %v1479, 4
      %v1482 = vrot.slane %v408, 5
      %v1483 = vsel %vm1413, %v1481, %v1482
      %v1484 = vrot.slane %v427, 5
      %v1485 = vrot.slane %v1484, 4
      %v1486 = vrot.slane %v384, 5
      %v1487 = vsel %vm1413, %v1485, %v1486
      %v1488 = vrot.slane %v1486, 4
      %v1489 = vrot.slane %v409, 5
      %v1490 = vsel %vm1413, %v1488, %v1489
      %v1491 = vrot.slane %v428, 5
      %v1492 = vrot.slane %v1491, 4
      %v1493 = vrot.slane %v386, 5
      %v1494 = vsel %vm1413, %v1492, %v1493
      %v1495 = vrot.slane %v1493, 4
      %v1496 = vrot.slane %v410, 5
      %v1497 = vsel %vm1413, %v1495, %v1496
      %v1498 = vrot.slane %v429, 5
      %v1499 = vrot.slane %v1498, 4
      %v1500 = vrot.slane %v388, 5
      %v1501 = vsel %vm1413, %v1499, %v1500
      %v1502 = vrot.slane %v1500, 4
      %v1503 = vrot.slane %v411, 5
      %v1504 = vsel %vm1413, %v1502, %v1503
      %v1505 = vrot.slane %v430, 5
      %v1506 = vrot.slane %v1505, 4
      %v1507 = vrot.slane %v390, 5
      %v1508 = vsel %vm1413, %v1506, %v1507
      %v1509 = vrot.slane %v1507, 4
      %v1510 = vrot.slane %v412, 5
      %v1511 = vsel %vm1413, %v1509, %v1510
      %v1512 = vrot.slane %v431, 5
      %v1513 = vrot.slane %v1512, 4
      %v1514 = vrot.slane %v392, 5
      %v1515 = vsel %vm1413, %v1513, %v1514
      %v1516 = vrot.slane %v1514, 4
      %v1517 = vrot.slane %v413, 5
      %v1518 = vsel %vm1413, %v1516, %v1517
      %v1519 = vrot.slane %v432, 5
      %v1520 = vrot.slane %v1519, 4
      %v1521 = vrot.slane %v394, 5
      %v1522 = vsel %vm1413, %v1520, %v1521
      %v1523 = vrot.slane %v1521, 4
      %v1524 = vrot.slane %v414, 5
      %v1525 = vsel %vm1413, %v1523, %v1524
      %s1526 = scalar_lea.vmem %s1, 4
      %v1527 = vld [vmem:[%s1526] sm:$0x3]
      %v1528 = vunpack.c.l.b16 %v1417
      %v1529 = vunpack.c.l.b16 %v1420
      %v1530 = vunpack.c.l.b16 %v1424
      %v1531 = vunpack.c.l.b16 %v1427
      %v1532 = vunpack.c.l.b16 %v1431
      %v1533 = vunpack.c.l.b16 %v1434
      %v1534 = vunpack.c.l.b16 %v1438
      %v1535 = vunpack.c.l.b16 %v1441
      %v1536 = vunpack.c.l.b16 %v1445
      %v1537 = vunpack.c.l.b16 %v1448
      %v1538 = vunpack.c.l.b16 %v1452
      %v1539 = vunpack.c.l.b16 %v1455
      %v1540 = vunpack.c.l.b16 %v1459
      %v1541 = vunpack.c.l.b16 %v1462
      %v1542 = vunpack.c.l.b16 %v1466
      %v1543 = vunpack.c.l.b16 %v1469
      %v1544 = vunpack.c.l.b16 %v1473
      %v1545 = vunpack.c.l.b16 %v1476
      %v1546 = vunpack.c.l.b16 %v1480
      %v1547 = vunpack.c.l.b16 %v1483
      %v1548 = vunpack.c.l.b16 %v1487
      %v1549 = vunpack.c.l.b16 %v1490
      %v1550 = vunpack.c.l.b16 %v1494
      %v1551 = vunpack.c.l.b16 %v1497
      %v1552 = vunpack.c.l.b16 %v1501
      %v1553 = vunpack.c.l.b16 %v1504
      %v1554 = vunpack.c.l.b16 %v1508
      %v1555 = vunpack.c.l.b16 %v1511
      %v1556 = vunpack.c.l.b16 %v1515
      %v1557 = vunpack.c.l.b16 %v1518
      %v1558 = vunpack.c.l.b16 %v1522
      %v1559 = vunpack.c.l.b16 %v1525
      %v1560 = vpack.c.b16 %v1529, %v1528
      %v1561 = vpack.c.b16 %v1531, %v1530
      %v1562 = vpack.c.b16 %v1533, %v1532
      %v1563 = vpack.c.b16 %v1535, %v1534
      %v1564 = vpack.c.b16 %v1537, %v1536
      %v1565 = vpack.c.b16 %v1539, %v1538
      %v1566 = vpack.c.b16 %v1541, %v1540
      %v1567 = vpack.c.b16 %v1543, %v1542
      %v1568 = vpack.c.b16 %v1545, %v1544
      %v1569 = vpack.c.b16 %v1547, %v1546
      %v1570 = vpack.c.b16 %v1549, %v1548
      %v1571 = vpack.c.b16 %v1551, %v1550
      %v1572 = vpack.c.b16 %v1553, %v1552
      %v1573 = vpack.c.b16 %v1555, %v1554
      %v1574 = vpack.c.b16 %v1557, %v1556
      %v1575 = vpack.c.b16 %v1559, %v1558
      %v1577 = vsel %vm873, %v1560, 0
      %v1580 = vsel %vm873, %v1561, 0
      %v1583 = vsel %vm873, %v1562, 0
      %v1586 = vsel %vm873, %v1563, 0
      %v1589 = vsel %vm873, %v1564, 0
      %v1592 = vsel %vm873, %v1565, 0
      %v1595 = vsel %vm873, %v1566, 0
      %v1598 = vsel %vm873, %v1567, 0
      %v1601 = vsel %vm873, %v1568, 0
      %v1604 = vsel %vm873, %v1569, 0
      %v1607 = vsel %vm873, %v1570, 0
      %v1610 = vsel %vm873, %v1571, 0
      %v1613 = vsel %vm873, %v1572, 0
      %v1616 = vsel %vm873, %v1573, 0
      %v1619 = vsel %vm873, %v1574, 0
      %v1622 = vsel %vm873, %v1575, 0
      %v1625 = vsel %vm922, %v1527, 0
      %1627 = vmatprep.subr.bf16.mxu0 0
      %1628 = vmatpush1.bf16.msra.mxu0 %v1625
      %1629 = vmatprep.subr.bf16.mxu0 0
      %1630 = vmatpush1.bf16.msra.mxu0 0
      %1631 = vmatprep.subr.bf16.mxu0 0
      %1632 = vmatpush1.bf16.msra.mxu0 0
      %1633 = vmatprep.subr.bf16.mxu0 0
      %1634 = vmatpush1.bf16.msra.mxu0 0
      %1635 = vmatprep.subr.bf16.mxu0 0
      %1636 = vmatpush1.bf16.msra.mxu0 0
      %1637 = vmatprep.subr.bf16.mxu0 0
      %1638 = vmatpush1.bf16.msra.mxu0 0
      %1639 = vmatprep.subr.bf16.mxu0 0
      %1640 = vmatpush1.bf16.msra.mxu0 0
      %1641 = vmatprep.subr.bf16.mxu0 0
      %1642 = vmatpush1.bf16.msra.mxu0 0
      %1643 = vmatprep.subr.bf16.mxu0 0
      %1644 = vmatpush1.bf16.msra.mxu0 0
      %1645 = vmatprep.subr.bf16.mxu0 0
      %1646 = vmatpush1.bf16.msra.mxu0 0
      %1647 = vmatprep.subr.bf16.mxu0 0
      %1648 = vmatpush1.bf16.msra.mxu0 0
      %1649 = vmatprep.subr.bf16.mxu0 0
      %1650 = vmatpush1.bf16.msra.mxu0 0
      %1651 = vmatprep.subr.bf16.mxu0 0
      %1652 = vmatpush1.bf16.msra.mxu0 0
      %1653 = vmatprep.subr.bf16.mxu0 0
      %1654 = vmatpush1.bf16.msra.mxu0 0
      %1655 = vmatprep.subr.bf16.mxu0 0
      %1656 = vmatpush1.bf16.msra.mxu0 0
      %1657 = vmatprep.subr.bf16.mxu0 0
      %1658 = vmatpush1.bf16.msra.mxu0 0
      %1659 = vmatprep.mubr.bf16.mxu0 0
      %1660 = vmatmul.mubr.bf16.gmra.mrb[0].mxu0 %v1577
      %v1661 = vpop.f32.mrb[0].mxu0
      %v1662 = vadd.f32 0.0, %v1661
      %v1663 = vpop.f32.mrb[0].mxu0
      %v1664 = vpop.f32.mrb[0].mxu0
      %v1665 = vadd.f32 0.0, %v1664
      %v1666 = vpop.f32.mrb[0].mxu0
      %1667 = vmatprep.mubr.bf16.mxu0 0
      %1668 = vmatmul.mubr.bf16.gmra.mrb[0].mxu0 %v1580
      %v1669 = vpop.f32.mrb[0].mxu0
      %v1670 = vadd.f32 0.0, %v1669
      %v1671 = vpop.f32.mrb[0].mxu0
      %v1672 = vpop.f32.mrb[0].mxu0
      %v1673 = vadd.f32 0.0, %v1672
      %v1674 = vpop.f32.mrb[0].mxu0
      %1675 = vmatprep.mubr.bf16.mxu0 0
      %1676 = vmatmul.mubr.bf16.gmra.mrb[0].mxu0 %v1583
      %v1677 = vpop.f32.mrb[0].mxu0
      %v1678 = vadd.f32 0.0, %v1677
      %v1679 = vpop.f32.mrb[0].mxu0
      %v1680 = vpop.f32.mrb[0].mxu0
      %v1681 = vadd.f32 0.0, %v1680
      %v1682 = vpop.f32.mrb[0].mxu0
      %1683 = vmatprep.mubr.bf16.mxu0 0
      %1684 = vmatmul.mubr.bf16.gmra.mrb[0].mxu0 %v1586
      %v1685 = vpop.f32.mrb[0].mxu0
      %v1686 = vadd.f32 0.0, %v1685
      %v1687 = vpop.f32.mrb[0].mxu0
      %v1688 = vpop.f32.mrb[0].mxu0
      %v1689 = vadd.f32 0.0, %v1688
      %v1690 = vpop.f32.mrb[0].mxu0
      %1691 = vmatprep.mubr.bf16.mxu0 0
      %1692 = vmatmul.mubr.bf16.gmra.mrb[0].mxu0 %v1589
      %v1693 = vpop.f32.mrb[0].mxu0
      %v1694 = vadd.f32 0.0, %v1693
      %v1695 = vpop.f32.mrb[0].mxu0
      %v1696 = vpop.f32.mrb[0].mxu0
      %v1697 = vadd.f32 0.0, %v1696
      %v1698 = vpop.f32.mrb[0].mxu0
      %1699 = vmatprep.mubr.bf16.mxu0 0
      %1700 = vmatmul.mubr.bf16.gmra.mrb[0].mxu0 %v1592
      %v1701 = vpop.f32.mrb[0].mxu0
      %v1702 = vadd.f32 0.0, %v1701
      %v1703 = vpop.f32.mrb[0].mxu0
      %v1704 = vpop.f32.mrb[0].mxu0
      %v1705 = vadd.f32 0.0, %v1704
      %v1706 = vpop.f32.mrb[0].mxu0
      %1707 = vmatprep.mubr.bf16.mxu0 0
      %1708 = vmatmul.mubr.bf16.gmra.mrb[0].mxu0 %v1595
      %v1709 = vpop.f32.mrb[0].mxu0
      %v1710 = vadd.f32 0.0, %v1709
      %v1711 = vpop.f32.mrb[0].mxu0
      %v1712 = vpop.f32.mrb[0].mxu0
      %v1713 = vadd.f32 0.0, %v1712
      %v1714 = vpop.f32.mrb[0].mxu0
      %1715 = vmatprep.mubr.bf16.mxu0 0
      %1716 = vmatmul.mubr.bf16.gmra.mrb[0].mxu0 %v1598
      %v1717 = vpop.f32.mrb[0].mxu0
      %v1718 = vadd.f32 0.0, %v1717
      %v1719 = vpop.f32.mrb[0].mxu0
      %v1720 = vpop.f32.mrb[0].mxu0
      %v1721 = vadd.f32 0.0, %v1720
      %v1722 = vpop.f32.mrb[0].mxu0
      %1723 = vmatprep.mubr.bf16.mxu0 0
      %1724 = vmatmul.mubr.bf16.gmra.mrb[0].mxu0 %v1601
      %v1725 = vpop.f32.mrb[0].mxu0
      %v1726 = vadd.f32 0.0, %v1725
      %v1727 = vpop.f32.mrb[0].mxu0
      %v1728 = vpop.f32.mrb[0].mxu0
      %v1729 = vadd.f32 0.0, %v1728
      %v1730 = vpop.f32.mrb[0].mxu0
      %1731 = vmatprep.mubr.bf16.mxu0 0
      %1732 = vmatmul.mubr.bf16.gmra.mrb[0].mxu0 %v1604
      %v1733 = vpop.f32.mrb[0].mxu0
      %v1734 = vadd.f32 0.0, %v1733
      %v1735 = vpop.f32.mrb[0].mxu0
      %v1736 = vpop.f32.mrb[0].mxu0
      %v1737 = vadd.f32 0.0, %v1736
      %v1738 = vpop.f32.mrb[0].mxu0
      %1739 = vmatprep.mubr.bf16.mxu0 0
      %1740 = vmatmul.mubr.bf16.gmra.mrb[0].mxu0 %v1607
      %v1741 = vpop.f32.mrb[0].mxu0
      %v1742 = vadd.f32 0.0, %v1741
      %v1743 = vpop.f32.mrb[0].mxu0
      %v1744 = vpop.f32.mrb[0].mxu0
      %v1745 = vadd.f32 0.0, %v1744
      %v1746 = vpop.f32.mrb[0].mxu0
      %1747 = vmatprep.mubr.bf16.mxu0 0
      %1748 = vmatmul.mubr.bf16.gmra.mrb[0].mxu0 %v1610
      %v1749 = vpop.f32.mrb[0].mxu0
      %v1750 = vadd.f32 0.0, %v1749
      %v1751 = vpop.f32.mrb[0].mxu0
      %v1752 = vpop.f32.mrb[0].mxu0
      %v1753 = vadd.f32 0.0, %v1752
      %v1754 = vpop.f32.mrb[0].mxu0
      %1755 = vmatprep.mubr.bf16.mxu0 0
      %1756 = vmatmul.mubr.bf16.gmra.mrb[0].mxu0 %v1613
      %v1757 = vpop.f32.mrb[0].mxu0
      %v1758 = vadd.f32 0.0, %v1757
      %v1759 = vpop.f32.mrb[0].mxu0
      %v1760 = vpop.f32.mrb[0].mxu0
      %v1761 = vadd.f32 0.0, %v1760
      %v1762 = vpop.f32.mrb[0].mxu0
      %1763 = vmatprep.mubr.bf16.mxu0 0
      %1764 = vmatmul.mubr.bf16.gmra.mrb[0].mxu0 %v1616
      %v1765 = vpop.f32.mrb[0].mxu0
      %v1766 = vadd.f32 0.0, %v1765
      %v1767 = vpop.f32.mrb[0].mxu0
      %v1768 = vpop.f32.mrb[0].mxu0
      %v1769 = vadd.f32 0.0, %v1768
      %v1770 = vpop.f32.mrb[0].mxu0
      %1771 = vmatprep.mubr.bf16.mxu0 0
      %1772 = vmatmul.mubr.bf16.gmra.mrb[0].mxu0 %v1619
      %v1773 = vpop.f32.mrb[0].mxu0
      %v1774 = vadd.f32 0.0, %v1773
      %v1775 = vpop.f32.mrb[0].mxu0
      %v1776 = vpop.f32.mrb[0].mxu0
      %v1777 = vadd.f32 0.0, %v1776
      %v1778 = vpop.f32.mrb[0].mxu0
      %1779 = vmatprep.mubr.bf16.mxu0 0
      %1780 = vmatmul.mubr.bf16.gmra.mrb[0].mxu0 %v1622
      %v1781 = vpop.f32.mrb[0].mxu0
      %v1782 = vadd.f32 0.0, %v1781
      %v1783 = vpop.f32.mrb[0].mxu0
      %v1784 = vpop.f32.mrb[0].mxu0
      %v1785 = vadd.f32 0.0, %v1784
      %v1786 = vpop.f32.mrb[0].mxu0
      %1787 = vdwg.mxu0
      %v1788 = vadd.f32 %v1253, %v1662
      %v1789 = vadd.f32 %v1256, %v1665
      %v1790 = vadd.f32 %v1261, %v1670
      %v1791 = vadd.f32 %v1264, %v1673
      %v1792 = vadd.f32 %v1269, %v1678
      %v1793 = vadd.f32 %v1272, %v1681
      %v1794 = vadd.f32 %v1277, %v1686
      %v1795 = vadd.f32 %v1280, %v1689
      %v1796 = vadd.f32 %v1285, %v1694
      %v1797 = vadd.f32 %v1288, %v1697
      %v1798 = vadd.f32 %v1293, %v1702
      %v1799 = vadd.f32 %v1296, %v1705
      %v1800 = vadd.f32 %v1301, %v1710
      %v1801 = vadd.f32 %v1304, %v1713
      %v1802 = vadd.f32 %v1309, %v1718
      %v1803 = vadd.f32 %v1312, %v1721
      %v1804 = vadd.f32 %v1317, %v1726
      %v1805 = vadd.f32 %v1320, %v1729
      %v1806 = vadd.f32 %v1325, %v1734
      %v1807 = vadd.f32 %v1328, %v1737
      %v1808 = vadd.f32 %v1333, %v1742
      %v1809 = vadd.f32 %v1336, %v1745
      %v1810 = vadd.f32 %v1341, %v1750
      %v1811 = vadd.f32 %v1344, %v1753
      %v1812 = vadd.f32 %v1349, %v1758
      %v1813 = vadd.f32 %v1352, %v1761
      %v1814 = vadd.f32 %v1357, %v1766
      %v1815 = vadd.f32 %v1360, %v1769
      %v1816 = vadd.f32 %v1365, %v1774
      %v1817 = vadd.f32 %v1368, %v1777
      %v1818 = vadd.f32 %v1373, %v1782
      %v1819 = vadd.f32 %v1376, %v1785
      %s1820 = scalar_lea.vmem %s1, 6
      %v1821 = vld [vmem:[%s1820] sm:$0x3]
      %v1824 = vunpack.c.l.b16 %v395
      %v1825 = vunpack.c.l.b16 %v396
      %v1826 = vpack.c.b16 %v1825, %v1824
      %v1828 = vsel %vm873, %v1826, 0
      %v1831 = vsel %vm922, %v1821, 0
      %1833 = vmatprep.subr.bf16.mxu0 0
      %1834 = vmatpush1.bf16.msra.mxu0 %v1831
      %1835 = vmatprep.subr.bf16.mxu0 0
      %1836 = vmatpush1.bf16.msra.mxu0 0
      %1837 = vmatprep.subr.bf16.mxu0 0
      %1838 = vmatpush1.bf16.msra.mxu0 0
      %1839 = vmatprep.subr.bf16.mxu0 0
      %1840 = vmatpush1.bf16.msra.mxu0 0
      %1841 = vmatprep.subr.bf16.mxu0 0
      %1842 = vmatpush1.bf16.msra.mxu0 0
      %1843 = vmatprep.subr.bf16.mxu0 0
      %1844 = vmatpush1.bf16.msra.mxu0 0
      %1845 = vmatprep.subr.bf16.mxu0 0
      %1846 = vmatpush1.bf16.msra.mxu0 0
      %1847 = vmatprep.subr.bf16.mxu0 0
      %1848 = vmatpush1.bf16.msra.mxu0 0
      %1849 = vmatprep.subr.bf16.mxu0 0
      %1850 = vmatpush1.bf16.msra.mxu0 0
      %1851 = vmatprep.subr.bf16.mxu0 0
      %1852 = vmatpush1.bf16.msra.mxu0 0
      %1853 = vmatprep.subr.bf16.mxu0 0
      %1854 = vmatpush1.bf16.msra.mxu0 0
      %1855 = vmatprep.subr.bf16.mxu0 0
      %1856 = vmatpush1.bf16.msra.mxu0 0
      %1857 = vmatprep.subr.bf16.mxu0 0
      %1858 = vmatpush1.bf16.msra.mxu0 0
      %1859 = vmatprep.subr.bf16.mxu0 0
      %1860 = vmatpush1.bf16.msra.mxu0 0
      %1861 = vmatprep.subr.bf16.mxu0 0
      %1862 = vmatpush1.bf16.msra.mxu0 0
      %1863 = vmatprep.subr.bf16.mxu0 0
      %1864 = vmatpush1.bf16.msra.mxu0 0
      %1865 = vmatprep.mubr.bf16.mxu0 0
      %1866 = vmatmul.mubr.bf16.gmra.mrb[0].mxu0 %v1171
      %v1867 = vpop.f32.mrb[0].mxu0
      %v1868 = vadd.f32 0.0, %v1867
      %v1869 = vpop.f32.mrb[0].mxu0
      %v1870 = vpop.f32.mrb[0].mxu0
      %v1871 = vadd.f32 0.0, %v1870
      %v1872 = vpop.f32.mrb[0].mxu0
      %1873 = vmatprep.mubr.bf16.mxu0 0
      %1874 = vmatmul.mubr.bf16.gmra.mrb[0].mxu0 %v1174
      %v1875 = vpop.f32.mrb[0].mxu0
      %v1876 = vadd.f32 0.0, %v1875
      %v1877 = vpop.f32.mrb[0].mxu0
      %v1878 = vpop.f32.mrb[0].mxu0
      %v1879 = vadd.f32 0.0, %v1878
      %v1880 = vpop.f32.mrb[0].mxu0
      %1881 = vmatprep.mubr.bf16.mxu0 0
      %1882 = vmatmul.mubr.bf16.gmra.mrb[0].mxu0 %v1177
      %v1883 = vpop.f32.mrb[0].mxu0
      %v1884 = vadd.f32 0.0, %v1883
      %v1885 = vpop.f32.mrb[0].mxu0
      %v1886 = vpop.f32.mrb[0].mxu0
      %v1887 = vadd.f32 0.0, %v1886
      %v1888 = vpop.f32.mrb[0].mxu0
      %1889 = vmatprep.mubr.bf16.mxu0 0
      %1890 = vmatmul.mubr.bf16.gmra.mrb[0].mxu0 %v1180
      %v1891 = vpop.f32.mrb[0].mxu0
      %v1892 = vadd.f32 0.0, %v1891
      %v1893 = vpop.f32.mrb[0].mxu0
      %v1894 = vpop.f32.mrb[0].mxu0
      %v1895 = vadd.f32 0.0, %v1894
      %v1896 = vpop.f32.mrb[0].mxu0
      %1897 = vmatprep.mubr.bf16.mxu0 0
      %1898 = vmatmul.mubr.bf16.gmra.mrb[0].mxu0 %v1183
      %v1899 = vpop.f32.mrb[0].mxu0
      %v1900 = vadd.f32 0.0, %v1899
      %v1901 = vpop.f32.mrb[0].mxu0
      %v1902 = vpop.f32.mrb[0].mxu0
      %v1903 = vadd.f32 0.0, %v1902
      %v1904 = vpop.f32.mrb[0].mxu0
      %1905 = vmatprep.mubr.bf16.mxu0 0
      %1906 = vmatmul.mubr.bf16.gmra.mrb[0].mxu0 %v1186
      %v1907 = vpop.f32.mrb[0].mxu0
      %v1908 = vadd.f32 0.0, %v1907
      %v1909 = vpop.f32.mrb[0].mxu0
      %v1910 = vpop.f32.mrb[0].mxu0
      %v1911 = vadd.f32 0.0, %v1910
      %v1912 = vpop.f32.mrb[0].mxu0
      %1913 = vmatprep.mubr.bf16.mxu0 0
      %1914 = vmatmul.mubr.bf16.gmra.mrb[0].mxu0 %v1189
      %v1915 = vpop.f32.mrb[0].mxu0
      %v1916 = vadd.f32 0.0, %v1915
      %v1917 = vpop.f32.mrb[0].mxu0
      %v1918 = vpop.f32.mrb[0].mxu0
      %v1919 = vadd.f32 0.0, %v1918
      %v1920 = vpop.f32.mrb[0].mxu0
      %1921 = vmatprep.mubr.bf16.mxu0 0
      %1922 = vmatmul.mubr.bf16.gmra.mrb[0].mxu0 %v1192
      %v1923 = vpop.f32.mrb[0].mxu0
      %v1924 = vadd.f32 0.0, %v1923
      %v1925 = vpop.f32.mrb[0].mxu0
      %v1926 = vpop.f32.mrb[0].mxu0
      %v1927 = vadd.f32 0.0, %v1926
      %v1928 = vpop.f32.mrb[0].mxu0
      %1929 = vmatprep.mubr.bf16.mxu0 0
      %1930 = vmatmul.mubr.bf16.gmra.mrb[0].mxu0 %v1195
      %v1931 = vpop.f32.mrb[0].mxu0
      %v1932 = vadd.f32 0.0, %v1931
      %v1933 = vpop.f32.mrb[0].mxu0
      %v1934 = vpop.f32.mrb[0].mxu0
      %v1935 = vadd.f32 0.0, %v1934
      %v1936 = vpop.f32.mrb[0].mxu0
      %1937 = vmatprep.mubr.bf16.mxu0 0
      %1938 = vmatmul.mubr.bf16.gmra.mrb[0].mxu0 %v1198
      %v1939 = vpop.f32.mrb[0].mxu0
      %v1940 = vadd.f32 0.0, %v1939
      %v1941 = vpop.f32.mrb[0].mxu0
      %v1942 = vpop.f32.mrb[0].mxu0
      %v1943 = vadd.f32 0.0, %v1942
      %v1944 = vpop.f32.mrb[0].mxu0
      %1945 = vmatprep.mubr.bf16.mxu0 0
      %1946 = vmatmul.mubr.bf16.gmra.mrb[0].mxu0 %v1201
      %v1947 = vpop.f32.mrb[0].mxu0
      %v1948 = vadd.f32 0.0, %v1947
      %v1949 = vpop.f32.mrb[0].mxu0
      %v1950 = vpop.f32.mrb[0].mxu0
      %v1951 = vadd.f32 0.0, %v1950
      %v1952 = vpop.f32.mrb[0].mxu0
      %1953 = vmatprep.mubr.bf16.mxu0 0
      %1954 = vmatmul.mubr.bf16.gmra.mrb[0].mxu0 %v1204
      %v1955 = vpop.f32.mrb[0].mxu0
      %v1956 = vadd.f32 0.0, %v1955
      %v1957 = vpop.f32.mrb[0].mxu0
      %v1958 = vpop.f32.mrb[0].mxu0
      %v1959 = vadd.f32 0.0, %v1958
      %v1960 = vpop.f32.mrb[0].mxu0
      %1961 = vmatprep.mubr.bf16.mxu0 0
      %1962 = vmatmul.mubr.bf16.gmra.mrb[0].mxu0 %v1207
      %v1963 = vpop.f32.mrb[0].mxu0
      %v1964 = vadd.f32 0.0, %v1963
      %v1965 = vpop.f32.mrb[0].mxu0
      %v1966 = vpop.f32.mrb[0].mxu0
      %v1967 = vadd.f32 0.0, %v1966
      %v1968 = vpop.f32.mrb[0].mxu0
      %1969 = vmatprep.mubr.bf16.mxu0 0
      %1970 = vmatmul.mubr.bf16.gmra.mrb[0].mxu0 %v1210
      %v1971 = vpop.f32.mrb[0].mxu0
      %v1972 = vadd.f32 0.0, %v1971
      %v1973 = vpop.f32.mrb[0].mxu0
      %v1974 = vpop.f32.mrb[0].mxu0
      %v1975 = vadd.f32 0.0, %v1974
      %v1976 = vpop.f32.mrb[0].mxu0
      %1977 = vmatprep.mubr.bf16.mxu0 0
      %1978 = vmatmul.mubr.bf16.gmra.mrb[0].mxu0 %v1213
      %v1979 = vpop.f32.mrb[0].mxu0
      %v1980 = vadd.f32 0.0, %v1979
      %v1981 = vpop.f32.mrb[0].mxu0
      %v1982 = vpop.f32.mrb[0].mxu0
      %v1983 = vadd.f32 0.0, %v1982
      %v1984 = vpop.f32.mrb[0].mxu0
      %1985 = vmatprep.mubr.bf16.mxu0 0
      %1986 = vmatmul.mubr.bf16.gmra.mrb[0].mxu0 %v1828
      %v1987 = vpop.f32.mrb[0].mxu0
      %v1988 = vadd.f32 0.0, %v1987
      %v1989 = vpop.f32.mrb[0].mxu0
      %v1990 = vpop.f32.mrb[0].mxu0
      %v1991 = vadd.f32 0.0, %v1990
      %v1992 = vpop.f32.mrb[0].mxu0
      %1993 = vdwg.mxu0
      %v1994 = vadd.f32 %v1788, %v1868
      %v1995 = vadd.f32 %v1789, %v1871
      %v1996 = vadd.f32 %v1790, %v1876
      %v1997 = vadd.f32 %v1791, %v1879
      %v1998 = vadd.f32 %v1792, %v1884
      %v1999 = vadd.f32 %v1793, %v1887
      %v2000 = vadd.f32 %v1794, %v1892
      %v2001 = vadd.f32 %v1795, %v1895
      %v2002 = vadd.f32 %v1796, %v1900
      %v2003 = vadd.f32 %v1797, %v1903
      %v2004 = vadd.f32 %v1798, %v1908
      %v2005 = vadd.f32 %v1799, %v1911
      %v2006 = vadd.f32 %v1800, %v1916
      %v2007 = vadd.f32 %v1801, %v1919
      %v2008 = vadd.f32 %v1802, %v1924
      %v2009 = vadd.f32 %v1803, %v1927
      %v2010 = vadd.f32 %v1804, %v1932
      %v2011 = vadd.f32 %v1805, %v1935
      %v2012 = vadd.f32 %v1806, %v1940
      %v2013 = vadd.f32 %v1807, %v1943
      %v2014 = vadd.f32 %v1808, %v1948
      %v2015 = vadd.f32 %v1809, %v1951
      %v2016 = vadd.f32 %v1810, %v1956
      %v2017 = vadd.f32 %v1811, %v1959
      %v2018 = vadd.f32 %v1812, %v1964
      %v2019 = vadd.f32 %v1813, %v1967
      %v2020 = vadd.f32 %v1814, %v1972
      %v2021 = vadd.f32 %v1815, %v1975
      %v2022 = vadd.f32 %v1816, %v1980
      %v2023 = vadd.f32 %v1817, %v1983
      %v2024 = vadd.f32 %v1818, %v1988
      %v2025 = vadd.f32 %v1819, %v1991
      %v2027 = vshrl.u32 %v395, 16
      %v2029 = vrot.slane %v2027, 4
      %v2030 = vshll.u32 %v395, 16
      %v2032 = vrot.slane %v2030, 5
      %v2033 = vor.u32 %v2029, %v2032
      %v2034 = vrot.slane %v2033, 4
      %v2036 = vshll.u32 %v396, 16
      %v2038 = vrot.slane %v2036, 5
      %v2039 = vsel %vm438, %v2034, %v2038
      %v2040 = vshrl.u32 %v396, 16
      %v2042 = vrot.slane %v2040, 4
      %v2043 = vor.u32 %v2042, %v2038
      %v2044 = vrot.slane %v2043, 4
      %v2046 = vshll.u32 %v415, 16
      %v2048 = vrot.slane %v2046, 5
      %v2049 = vsel %vm438, %v2044, %v2048
      %s2050 = scalar_lea.vmem %s1, 8
      %v2051 = vld [vmem:[%s2050] sm:$0x3]
      %v2052 = vunpack.c.l.b16 %v2039
      %v2053 = vunpack.c.l.b16 %v2049
      %v2054 = vpack.c.b16 %v2053, %v2052
      %v2056 = vsel %vm873, %v2054, 0
      %v2059 = vsel %vm922, %v2051, 0
      %2061 = vmatprep.subr.bf16.mxu0 0
      %2062 = vmatpush1.bf16.msra.mxu0 %v2059
      %2063 = vmatprep.subr.bf16.mxu0 0
      %2064 = vmatpush1.bf16.msra.mxu0 0
      %2065 = vmatprep.subr.bf16.mxu0 0
      %2066 = vmatpush1.bf16.msra.mxu0 0
      %2067 = vmatprep.subr.bf16.mxu0 0
      %2068 = vmatpush1.bf16.msra.mxu0 0
      %2069 = vmatprep.subr.bf16.mxu0 0
      %2070 = vmatpush1.bf16.msra.mxu0 0
      %2071 = vmatprep.subr.bf16.mxu0 0
      %2072 = vmatpush1.bf16.msra.mxu0 0
      %2073 = vmatprep.subr.bf16.mxu0 0
      %2074 = vmatpush1.bf16.msra.mxu0 0
      %2075 = vmatprep.subr.bf16.mxu0 0
      %2076 = vmatpush1.bf16.msra.mxu0 0
      %2077 = vmatprep.subr.bf16.mxu0 0
      %2078 = vmatpush1.bf16.msra.mxu0 0
      %2079 = vmatprep.subr.bf16.mxu0 0
      %2080 = vmatpush1.bf16.msra.mxu0 0
      %2081 = vmatprep.subr.bf16.mxu0 0
      %2082 = vmatpush1.bf16.msra.mxu0 0
      %2083 = vmatprep.subr.bf16.mxu0 0
      %2084 = vmatpush1.bf16.msra.mxu0 0
      %2085 = vmatprep.subr.bf16.mxu0 0
      %2086 = vmatpush1.bf16.msra.mxu0 0
      %2087 = vmatprep.subr.bf16.mxu0 0
      %2088 = vmatpush1.bf16.msra.mxu0 0
      %2089 = vmatprep.subr.bf16.mxu0 0
      %2090 = vmatpush1.bf16.msra.mxu0 0
      %2091 = vmatprep.subr.bf16.mxu0 0
      %2092 = vmatpush1.bf16.msra.mxu0 0
      %2093 = vmatprep.mubr.bf16.mxu0 0
      %2094 = vmatmul.mubr.bf16.gmra.mrb[0].mxu0 %v878
      %v2095 = vpop.f32.mrb[0].mxu0
      %v2096 = vadd.f32 0.0, %v2095
      %v2097 = vpop.f32.mrb[0].mxu0
      %v2098 = vpop.f32.mrb[0].mxu0
      %v2099 = vadd.f32 0.0, %v2098
      %v2100 = vpop.f32.mrb[0].mxu0
      %2101 = vmatprep.mubr.bf16.mxu0 0
      %2102 = vmatmul.mubr.bf16.gmra.mrb[0].mxu0 %v881
      %v2103 = vpop.f32.mrb[0].mxu0
      %v2104 = vadd.f32 0.0, %v2103
      %v2105 = vpop.f32.mrb[0].mxu0
      %v2106 = vpop.f32.mrb[0].mxu0
      %v2107 = vadd.f32 0.0, %v2106
      %v2108 = vpop.f32.mrb[0].mxu0
      %2109 = vmatprep.mubr.bf16.mxu0 0
      %2110 = vmatmul.mubr.bf16.gmra.mrb[0].mxu0 %v884
      %v2111 = vpop.f32.mrb[0].mxu0
      %v2112 = vadd.f32 0.0, %v2111
      %v2113 = vpop.f32.mrb[0].mxu0
      %v2114 = vpop.f32.mrb[0].mxu0
      %v2115 = vadd.f32 0.0, %v2114
      %v2116 = vpop.f32.mrb[0].mxu0
      %2117 = vmatprep.mubr.bf16.mxu0 0
      %2118 = vmatmul.mubr.bf16.gmra.mrb[0].mxu0 %v887
      %v2119 = vpop.f32.mrb[0].mxu0
      %v2120 = vadd.f32 0.0, %v2119
      %v2121 = vpop.f32.mrb[0].mxu0
      %v2122 = vpop.f32.mrb[0].mxu0
      %v2123 = vadd.f32 0.0, %v2122
      %v2124 = vpop.f32.mrb[0].mxu0
      %2125 = vmatprep.mubr.bf16.mxu0 0
      %2126 = vmatmul.mubr.bf16.gmra.mrb[0].mxu0 %v890
      %v2127 = vpop.f32.mrb[0].mxu0
      %v2128 = vadd.f32 0.0, %v2127
      %v2129 = vpop.f32.mrb[0].mxu0
      %v2130 = vpop.f32.mrb[0].mxu0
      %v2131 = vadd.f32 0.0, %v2130
      %v2132 = vpop.f32.mrb[0].mxu0
      %2133 = vmatprep.mubr.bf16.mxu0 0
      %2134 = vmatmul.mubr.bf16.gmra.mrb[0].mxu0 %v893
      %v2135 = vpop.f32.mrb[0].mxu0
      %v2136 = vadd.f32 0.0, %v2135
      %v2137 = vpop.f32.mrb[0].mxu0
      %v2138 = vpop.f32.mrb[0].mxu0
      %v2139 = vadd.f32 0.0, %v2138
      %v2140 = vpop.f32.mrb[0].mxu0
      %2141 = vmatprep.mubr.bf16.mxu0 0
      %2142 = vmatmul.mubr.bf16.gmra.mrb[0].mxu0 %v896
      %v2143 = vpop.f32.mrb[0].mxu0
      %v2144 = vadd.f32 0.0, %v2143
      %v2145 = vpop.f32.mrb[0].mxu0
      %v2146 = vpop.f32.mrb[0].mxu0
      %v2147 = vadd.f32 0.0, %v2146
      %v2148 = vpop.f32.mrb[0].mxu0
      %2149 = vmatprep.mubr.bf16.mxu0 0
      %2150 = vmatmul.mubr.bf16.gmra.mrb[0].mxu0 %v899
      %v2151 = vpop.f32.mrb[0].mxu0
      %v2152 = vadd.f32 0.0, %v2151
      %v2153 = vpop.f32.mrb[0].mxu0
      %v2154 = vpop.f32.mrb[0].mxu0
      %v2155 = vadd.f32 0.0, %v2154
      %v2156 = vpop.f32.mrb[0].mxu0
      %2157 = vmatprep.mubr.bf16.mxu0 0
      %2158 = vmatmul.mubr.bf16.gmra.mrb[0].mxu0 %v902
      %v2159 = vpop.f32.mrb[0].mxu0
      %v2160 = vadd.f32 0.0, %v2159
      %v2161 = vpop.f32.mrb[0].mxu0
      %v2162 = vpop.f32.mrb[0].mxu0
      %v2163 = vadd.f32 0.0, %v2162
      %v2164 = vpop.f32.mrb[0].mxu0
      %2165 = vmatprep.mubr.bf16.mxu0 0
      %2166 = vmatmul.mubr.bf16.gmra.mrb[0].mxu0 %v905
      %v2167 = vpop.f32.mrb[0].mxu0
      %v2168 = vadd.f32 0.0, %v2167
      %v2169 = vpop.f32.mrb[0].mxu0
      %v2170 = vpop.f32.mrb[0].mxu0
      %v2171 = vadd.f32 0.0, %v2170
      %v2172 = vpop.f32.mrb[0].mxu0
      %2173 = vmatprep.mubr.bf16.mxu0 0
      %2174 = vmatmul.mubr.bf16.gmra.mrb[0].mxu0 %v908
      %v2175 = vpop.f32.mrb[0].mxu0
      %v2176 = vadd.f32 0.0, %v2175
      %v2177 = vpop.f32.mrb[0].mxu0
      %v2178 = vpop.f32.mrb[0].mxu0
      %v2179 = vadd.f32 0.0, %v2178
      %v2180 = vpop.f32.mrb[0].mxu0
      %2181 = vmatprep.mubr.bf16.mxu0 0
      %2182 = vmatmul.mubr.bf16.gmra.mrb[0].mxu0 %v911
      %v2183 = vpop.f32.mrb[0].mxu0
      %v2184 = vadd.f32 0.0, %v2183
      %v2185 = vpop.f32.mrb[0].mxu0
      %v2186 = vpop.f32.mrb[0].mxu0
      %v2187 = vadd.f32 0.0, %v2186
      %v2188 = vpop.f32.mrb[0].mxu0
      %2189 = vmatprep.mubr.bf16.mxu0 0
      %2190 = vmatmul.mubr.bf16.gmra.mrb[0].mxu0 %v914
      %v2191 = vpop.f32.mrb[0].mxu0
      %v2192 = vadd.f32 0.0, %v2191
      %v2193 = vpop.f32.mrb[0].mxu0
      %v2194 = vpop.f32.mrb[0].mxu0
      %v2195 = vadd.f32 0.0, %v2194
      %v2196 = vpop.f32.mrb[0].mxu0
      %2197 = vmatprep.mubr.bf16.mxu0 0
      %2198 = vmatmul.mubr.bf16.gmra.mrb[0].mxu0 %v917
      %v2199 = vpop.f32.mrb[0].mxu0
      %v2200 = vadd.f32 0.0, %v2199
      %v2201 = vpop.f32.mrb[0].mxu0
      %v2202 = vpop.f32.mrb[0].mxu0
      %v2203 = vadd.f32 0.0, %v2202
      %v2204 = vpop.f32.mrb[0].mxu0
      %2205 = vmatprep.mubr.bf16.mxu0 0
      %2206 = vmatmul.mubr.bf16.gmra.mrb[0].mxu0 %v920
      %v2207 = vpop.f32.mrb[0].mxu0
      %v2208 = vadd.f32 0.0, %v2207
      %v2209 = vpop.f32.mrb[0].mxu0
      %v2210 = vpop.f32.mrb[0].mxu0
      %v2211 = vadd.f32 0.0, %v2210
      %v2212 = vpop.f32.mrb[0].mxu0
      %2213 = vmatprep.mubr.bf16.mxu0 0
      %2214 = vmatmul.mubr.bf16.gmra.mrb[0].mxu0 %v2056
      %v2215 = vpop.f32.mrb[0].mxu0
      %v2216 = vadd.f32 0.0, %v2215
      %v2217 = vpop.f32.mrb[0].mxu0
      %v2218 = vpop.f32.mrb[0].mxu0
      %v2219 = vadd.f32 0.0, %v2218
      %v2220 = vpop.f32.mrb[0].mxu0
      %2221 = vdwg.mxu0
      %v2222 = vadd.f32 %v1994, %v2096
      %v2223 = vadd.f32 %v1995, %v2099
      %v2224 = vadd.f32 %v1996, %v2104
      %v2225 = vadd.f32 %v1997, %v2107
      %v2226 = vadd.f32 %v1998, %v2112
      %v2227 = vadd.f32 %v1999, %v2115
      %v2228 = vadd.f32 %v2000, %v2120
      %v2229 = vadd.f32 %v2001, %v2123
      %v2230 = vadd.f32 %v2002, %v2128
      %v2231 = vadd.f32 %v2003, %v2131
      %v2232 = vadd.f32 %v2004, %v2136
      %v2233 = vadd.f32 %v2005, %v2139
      %v2234 = vadd.f32 %v2006, %v2144
      %v2235 = vadd.f32 %v2007, %v2147
      %v2236 = vadd.f32 %v2008, %v2152
      %v2237 = vadd.f32 %v2009, %v2155
      %v2238 = vadd.f32 %v2010, %v2160
      %v2239 = vadd.f32 %v2011, %v2163
      %v2240 = vadd.f32 %v2012, %v2168
      %v2241 = vadd.f32 %v2013, %v2171
      %v2242 = vadd.f32 %v2014, %v2176
      %v2243 = vadd.f32 %v2015, %v2179
      %v2244 = vadd.f32 %v2016, %v2184
      %v2245 = vadd.f32 %v2017, %v2187
      %v2246 = vadd.f32 %v2018, %v2192
      %v2247 = vadd.f32 %v2019, %v2195
      %v2248 = vadd.f32 %v2020, %v2200
      %v2249 = vadd.f32 %v2021, %v2203
      %v2250 = vadd.f32 %v2022, %v2208
      %v2251 = vadd.f32 %v2023, %v2211
      %v2252 = vadd.f32 %v2024, %v2216
      %v2253 = vadd.f32 %v2025, %v2219
      %v2256 = vrot.slane %v433, 5
      %v2257 = vrot.slane %v2256, 4
      %v2258 = vrot.slane %v396, 5
      %v2259 = vsel %vm1413, %v2257, %v2258
      %v2260 = vrot.slane %v2258, 4
      %v2261 = vrot.slane %v415, 5
      %v2262 = vsel %vm1413, %v2260, %v2261
      %s2263 = scalar_lea.vmem %s1, 10
      %v2264 = vld [vmem:[%s2263] sm:$0x3]
      %v2265 = vunpack.c.l.b16 %v2259
      %v2266 = vunpack.c.l.b16 %v2262
      %v2267 = vpack.c.b16 %v2266, %v2265
      %v2269 = vsel %vm873, %v2267, 0
      %v2272 = vsel %vm922, %v2264, 0
      %2274 = vmatprep.subr.bf16.mxu0 0
      %2275 = vmatpush1.bf16.msra.mxu0 %v2272
      %2276 = vmatprep.subr.bf16.mxu0 0
      %2277 = vmatpush1.bf16.msra.mxu0 0
      %2278 = vmatprep.subr.bf16.mxu0 0
      %2279 = vmatpush1.bf16.msra.mxu0 0
      %2280 = vmatprep.subr.bf16.mxu0 0
      %2281 = vmatpush1.bf16.msra.mxu0 0
      %2282 = vmatprep.subr.bf16.mxu0 0
      %2283 = vmatpush1.bf16.msra.mxu0 0
      %2284 = vmatprep.subr.bf16.mxu0 0
      %2285 = vmatpush1.bf16.msra.mxu0 0
      %2286 = vmatprep.subr.bf16.mxu0 0
      %2287 = vmatpush1.bf16.msra.mxu0 0
      %2288 = vmatprep.subr.bf16.mxu0 0
      %2289 = vmatpush1.bf16.msra.mxu0 0
      %2290 = vmatprep.subr.bf16.mxu0 0
      %2291 = vmatpush1.bf16.msra.mxu0 0
      %2292 = vmatprep.subr.bf16.mxu0 0
      %2293 = vmatpush1.bf16.msra.mxu0 0
      %2294 = vmatprep.subr.bf16.mxu0 0
      %2295 = vmatpush1.bf16.msra.mxu0 0
      %2296 = vmatprep.subr.bf16.mxu0 0
      %2297 = vmatpush1.bf16.msra.mxu0 0
      %2298 = vmatprep.subr.bf16.mxu0 0
      %2299 = vmatpush1.bf16.msra.mxu0 0
      %2300 = vmatprep.subr.bf16.mxu0 0
      %2301 = vmatpush1.bf16.msra.mxu0 0
      %2302 = vmatprep.subr.bf16.mxu0 0
      %2303 = vmatpush1.bf16.msra.mxu0 0
      %2304 = vmatprep.subr.bf16.mxu0 0
      %2305 = vmatpush1.bf16.msra.mxu0 0
      %2306 = vmatprep.mubr.bf16.mxu0 0
      %2307 = vmatmul.mubr.bf16.gmra.mrb[0].mxu0 %v1580
      %v2308 = vpop.f32.mrb[0].mxu0
      %v2309 = vadd.f32 0.0, %v2308
      %v2310 = vpop.f32.mrb[0].mxu0
      %v2311 = vpop.f32.mrb[0].mxu0
      %v2312 = vadd.f32 0.0, %v2311
      %v2313 = vpop.f32.mrb[0].mxu0
      %2314 = vmatprep.mubr.bf16.mxu0 0
      %2315 = vmatmul.mubr.bf16.gmra.mrb[0].mxu0 %v1583
      %v2316 = vpop.f32.mrb[0].mxu0
      %v2317 = vadd.f32 0.0, %v2316
      %v2318 = vpop.f32.mrb[0].mxu0
      %v2319 = vpop.f32.mrb[0].mxu0
      %v2320 = vadd.f32 0.0, %v2319
      %v2321 = vpop.f32.mrb[0].mxu0
      %2322 = vmatprep.mubr.bf16.mxu0 0
      %2323 = vmatmul.mubr.bf16.gmra.mrb[0].mxu0 %v1586
      %v2324 = vpop.f32.mrb[0].mxu0
      %v2325 = vadd.f32 0.0, %v2324
      %v2326 = vpop.f32.mrb[0].mxu0
      %v2327 = vpop.f32.mrb[0].mxu0
      %v2328 = vadd.f32 0.0, %v2327
      %v2329 = vpop.f32.mrb[0].mxu0
      %2330 = vmatprep.mubr.bf16.mxu0 0
      %2331 = vmatmul.mubr.bf16.gmra.mrb[0].mxu0 %v1589
      %v2332 = vpop.f32.mrb[0].mxu0
      %v2333 = vadd.f32 0.0, %v2332
      %v2334 = vpop.f32.mrb[0].mxu0
      %v2335 = vpop.f32.mrb[0].mxu0
      %v2336 = vadd.f32 0.0, %v2335
      %v2337 = vpop.f32.mrb[0].mxu0
      %2338 = vmatprep.mubr.bf16.mxu0 0
      %2339 = vmatmul.mubr.bf16.gmra.mrb[0].mxu0 %v1592
      %v2340 = vpop.f32.mrb[0].mxu0
      %v2341 = vadd.f32 0.0, %v2340
      %v2342 = vpop.f32.mrb[0].mxu0
      %v2343 = vpop.f32.mrb[0].mxu0
      %v2344 = vadd.f32 0.0, %v2343
      %v2345 = vpop.f32.mrb[0].mxu0
      %2346 = vmatprep.mubr.bf16.mxu0 0
      %2347 = vmatmul.mubr.bf16.gmra.mrb[0].mxu0 %v1595
      %v2348 = vpop.f32.mrb[0].mxu0
      %v2349 = vadd.f32 0.0, %v2348
      %v2350 = vpop.f32.mrb[0].mxu0
      %v2351 = vpop.f32.mrb[0].mxu0
      %v2352 = vadd.f32 0.0, %v2351
      %v2353 = vpop.f32.mrb[0].mxu0
      %2354 = vmatprep.mubr.bf16.mxu0 0
      %2355 = vmatmul.mubr.bf16.gmra.mrb[0].mxu0 %v1598
      %v2356 = vpop.f32.mrb[0].mxu0
      %v2357 = vadd.f32 0.0, %v2356
      %v2358 = vpop.f32.mrb[0].mxu0
      %v2359 = vpop.f32.mrb[0].mxu0
      %v2360 = vadd.f32 0.0, %v2359
      %v2361 = vpop.f32.mrb[0].mxu0
      %2362 = vmatprep.mubr.bf16.mxu0 0
      %2363 = vmatmul.mubr.bf16.gmra.mrb[0].mxu0 %v1601
      %v2364 = vpop.f32.mrb[0].mxu0
      %v2365 = vadd.f32 0.0, %v2364
      %v2366 = vpop.f32.mrb[0].mxu0
      %v2367 = vpop.f32.mrb[0].mxu0
      %v2368 = vadd.f32 0.0, %v2367
      %v2369 = vpop.f32.mrb[0].mxu0
      %2370 = vmatprep.mubr.bf16.mxu0 0
      %2371 = vmatmul.mubr.bf16.gmra.mrb[0].mxu0 %v1604
      %v2372 = vpop.f32.mrb[0].mxu0
      %v2373 = vadd.f32 0.0, %v2372
      %v2374 = vpop.f32.mrb[0].mxu0
      %v2375 = vpop.f32.mrb[0].mxu0
      %v2376 = vadd.f32 0.0, %v2375
      %v2377 = vpop.f32.mrb[0].mxu0
      %2378 = vmatprep.mubr.bf16.mxu0 0
      %2379 = vmatmul.mubr.bf16.gmra.mrb[0].mxu0 %v1607
      %v2380 = vpop.f32.mrb[0].mxu0
      %v2381 = vadd.f32 0.0, %v2380
      %v2382 = vpop.f32.mrb[0].mxu0
      %v2383 = vpop.f32.mrb[0].mxu0
      %v2384 = vadd.f32 0.0, %v2383
      %v2385 = vpop.f32.mrb[0].mxu0
      %2386 = vmatprep.mubr.bf16.mxu0 0
      %2387 = vmatmul.mubr.bf16.gmra.mrb[0].mxu0 %v1610
      %v2388 = vpop.f32.mrb[0].mxu0
      %v2389 = vadd.f32 0.0, %v2388
      %v2390 = vpop.f32.mrb[0].mxu0
      %v2391 = vpop.f32.mrb[0].mxu0
      %v2392 = vadd.f32 0.0, %v2391
      %v2393 = vpop.f32.mrb[0].mxu0
      %2394 = vmatprep.mubr.bf16.mxu0 0
      %2395 = vmatmul.mubr.bf16.gmra.mrb[0].mxu0 %v1613
      %v2396 = vpop.f32.mrb[0].mxu0
      %v2397 = vadd.f32 0.0, %v2396
      %v2398 = vpop.f32.mrb[0].mxu0
      %v2399 = vpop.f32.mrb[0].mxu0
      %v2400 = vadd.f32 0.0, %v2399
      %v2401 = vpop.f32.mrb[0].mxu0
      %2402 = vmatprep.mubr.bf16.mxu0 0
      %2403 = vmatmul.mubr.bf16.gmra.mrb[0].mxu0 %v1616
      %v2404 = vpop.f32.mrb[0].mxu0
      %v2405 = vadd.f32 0.0, %v2404
      %v2406 = vpop.f32.mrb[0].mxu0
      %v2407 = vpop.f32.mrb[0].mxu0
      %v2408 = vadd.f32 0.0, %v2407
      %v2409 = vpop.f32.mrb[0].mxu0
      %2410 = vmatprep.mubr.bf16.mxu0 0
      %2411 = vmatmul.mubr.bf16.gmra.mrb[0].mxu0 %v1619
      %v2412 = vpop.f32.mrb[0].mxu0
      %v2413 = vadd.f32 0.0, %v2412
      %v2414 = vpop.f32.mrb[0].mxu0
      %v2415 = vpop.f32.mrb[0].mxu0
      %v2416 = vadd.f32 0.0, %v2415
      %v2417 = vpop.f32.mrb[0].mxu0
      %2418 = vmatprep.mubr.bf16.mxu0 0
      %2419 = vmatmul.mubr.bf16.gmra.mrb[0].mxu0 %v1622
      %v2420 = vpop.f32.mrb[0].mxu0
      %v2421 = vadd.f32 0.0, %v2420
      %v2422 = vpop.f32.mrb[0].mxu0
      %v2423 = vpop.f32.mrb[0].mxu0
      %v2424 = vadd.f32 0.0, %v2423
      %v2425 = vpop.f32.mrb[0].mxu0
      %2426 = vmatprep.mubr.bf16.mxu0 0
      %2427 = vmatmul.mubr.bf16.gmra.mrb[0].mxu0 %v2269
      %v2428 = vpop.f32.mrb[0].mxu0
      %v2429 = vadd.f32 0.0, %v2428
      %v2430 = vpop.f32.mrb[0].mxu0
      %v2431 = vpop.f32.mrb[0].mxu0
      %v2432 = vadd.f32 0.0, %v2431
      %v2433 = vpop.f32.mrb[0].mxu0
      %2434 = vdwg.mxu0
      %v2435 = vadd.f32 %v2222, %v2309
      %v2436 = vadd.f32 %v2223, %v2312
      %v2437 = vadd.f32 %v2224, %v2317
      %v2438 = vadd.f32 %v2225, %v2320
      %v2439 = vadd.f32 %v2226, %v2325
      %v2440 = vadd.f32 %v2227, %v2328
      %v2441 = vadd.f32 %v2228, %v2333
      %v2442 = vadd.f32 %v2229, %v2336
      %v2443 = vadd.f32 %v2230, %v2341
      %v2444 = vadd.f32 %v2231, %v2344
      %v2445 = vadd.f32 %v2232, %v2349
      %v2446 = vadd.f32 %v2233, %v2352
      %v2447 = vadd.f32 %v2234, %v2357
      %v2448 = vadd.f32 %v2235, %v2360
      %v2449 = vadd.f32 %v2236, %v2365
      %v2450 = vadd.f32 %v2237, %v2368
      %v2451 = vadd.f32 %v2238, %v2373
      %v2452 = vadd.f32 %v2239, %v2376
      %v2453 = vadd.f32 %v2240, %v2381
      %v2454 = vadd.f32 %v2241, %v2384
      %v2455 = vadd.f32 %v2242, %v2389
      %v2456 = vadd.f32 %v2243, %v2392
      %v2457 = vadd.f32 %v2244, %v2397
      %v2458 = vadd.f32 %v2245, %v2400
      %v2459 = vadd.f32 %v2246, %v2405
      %v2460 = vadd.f32 %v2247, %v2408
      %v2461 = vadd.f32 %v2248, %v2413
      %v2462 = vadd.f32 %v2249, %v2416
      %v2463 = vadd.f32 %v2250, %v2421
      %v2464 = vadd.f32 %v2251, %v2424
      %v2465 = vadd.f32 %v2252, %v2429
      %v2466 = vadd.f32 %v2253, %v2432
      %s2467 = scalar_lea.vmem %s1, 12
      %v2468 = vld [vmem:[%s2467] sm:$0x3]
      %v2471 = vunpack.c.l.b16 %v397
      %v2472 = vunpack.c.l.b16 %v398
      %v2473 = vpack.c.b16 %v2472, %v2471
      %v2475 = vsel %vm873, %v2473, 0
      %v2478 = vsel %vm922, %v2468, 0
      %2480 = vmatprep.subr.bf16.mxu0 0
      %2481 = vmatpush1.bf16.msra.mxu0 %v2478
      %2482 = vmatprep.subr.bf16.mxu0 0
      %2483 = vmatpush1.bf16.msra.mxu0 0
      %2484 = vmatprep.subr.bf16.mxu0 0
      %2485 = vmatpush1.bf16.msra.mxu0 0
      %2486 = vmatprep.subr.bf16.mxu0 0
      %2487 = vmatpush1.bf16.msra.mxu0 0
      %2488 = vmatprep.subr.bf16.mxu0 0
      %2489 = vmatpush1.bf16.msra.mxu0 0
      %2490 = vmatprep.subr.bf16.mxu0 0
      %2491 = vmatpush1.bf16.msra.mxu0 0
      %2492 = vmatprep.subr.bf16.mxu0 0
      %2493 = vmatpush1.bf16.msra.mxu0 0
      %2494 = vmatprep.subr.bf16.mxu0 0
      %2495 = vmatpush1.bf16.msra.mxu0 0
      %2496 = vmatprep.subr.bf16.mxu0 0
      %2497 = vmatpush1.bf16.msra.mxu0 0
      %2498 = vmatprep.subr.bf16.mxu0 0
      %2499 = vmatpush1.bf16.msra.mxu0 0
      %2500 = vmatprep.subr.bf16.mxu0 0
      %2501 = vmatpush1.bf16.msra.mxu0 0
      %2502 = vmatprep.subr.bf16.mxu0 0
      %2503 = vmatpush1.bf16.msra.mxu0 0
      %2504 = vmatprep.subr.bf16.mxu0 0
      %2505 = vmatpush1.bf16.msra.mxu0 0
      %2506 = vmatprep.subr.bf16.mxu0 0
      %2507 = vmatpush1.bf16.msra.mxu0 0
      %2508 = vmatprep.subr.bf16.mxu0 0
      %2509 = vmatpush1.bf16.msra.mxu0 0
      %2510 = vmatprep.subr.bf16.mxu0 0
      %2511 = vmatpush1.bf16.msra.mxu0 0
      %2512 = vmatprep.mubr.bf16.mxu0 0
      %2513 = vmatmul.mubr.bf16.gmra.mrb[0].mxu0 %v1174
      %v2514 = vpop.f32.mrb[0].mxu0
      %v2515 = vadd.f32 0.0, %v2514
      %v2516 = vpop.f32.mrb[0].mxu0
      %v2517 = vpop.f32.mrb[0].mxu0
      %v2518 = vadd.f32 0.0, %v2517
      %v2519 = vpop.f32.mrb[0].mxu0
      %2520 = vmatprep.mubr.bf16.mxu0 0
      %2521 = vmatmul.mubr.bf16.gmra.mrb[0].mxu0 %v1177
      %v2522 = vpop.f32.mrb[0].mxu0
      %v2523 = vadd.f32 0.0, %v2522
      %v2524 = vpop.f32.mrb[0].mxu0
      %v2525 = vpop.f32.mrb[0].mxu0
      %v2526 = vadd.f32 0.0, %v2525
      %v2527 = vpop.f32.mrb[0].mxu0
      %2528 = vmatprep.mubr.bf16.mxu0 0
      %2529 = vmatmul.mubr.bf16.gmra.mrb[0].mxu0 %v1180
      %v2530 = vpop.f32.mrb[0].mxu0
      %v2531 = vadd.f32 0.0, %v2530
      %v2532 = vpop.f32.mrb[0].mxu0
      %v2533 = vpop.f32.mrb[0].mxu0
      %v2534 = vadd.f32 0.0, %v2533
      %v2535 = vpop.f32.mrb[0].mxu0
      %2536 = vmatprep.mubr.bf16.mxu0 0
      %2537 = vmatmul.mubr.bf16.gmra.mrb[0].mxu0 %v1183
      %v2538 = vpop.f32.mrb[0].mxu0
      %v2539 = vadd.f32 0.0, %v2538
      %v2540 = vpop.f32.mrb[0].mxu0
      %v2541 = vpop.f32.mrb[0].mxu0
      %v2542 = vadd.f32 0.0, %v2541
      %v2543 = vpop.f32.mrb[0].mxu0
      %2544 = vmatprep.mubr.bf16.mxu0 0
      %2545 = vmatmul.mubr.bf16.gmra.mrb[0].mxu0 %v1186
      %v2546 = vpop.f32.mrb[0].mxu0
      %v2547 = vadd.f32 0.0, %v2546
      %v2548 = vpop.f32.mrb[0].mxu0
      %v2549 = vpop.f32.mrb[0].mxu0
      %v2550 = vadd.f32 0.0, %v2549
      %v2551 = vpop.f32.mrb[0].mxu0
      %2552 = vmatprep.mubr.bf16.mxu0 0
      %2553 = vmatmul.mubr.bf16.gmra.mrb[0].mxu0 %v1189
      %v2554 = vpop.f32.mrb[0].mxu0
      %v2555 = vadd.f32 0.0, %v2554
      %v2556 = vpop.f32.mrb[0].mxu0
      %v2557 = vpop.f32.mrb[0].mxu0
      %v2558 = vadd.f32 0.0, %v2557
      %v2559 = vpop.f32.mrb[0].mxu0
      %2560 = vmatprep.mubr.bf16.mxu0 0
      %2561 = vmatmul.mubr.bf16.gmra.mrb[0].mxu0 %v1192
      %v2562 = vpop.f32.mrb[0].mxu0
      %v2563 = vadd.f32 0.0, %v2562
      %v2564 = vpop.f32.mrb[0].mxu0
      %v2565 = vpop.f32.mrb[0].mxu0
      %v2566 = vadd.f32 0.0, %v2565
      %v2567 = vpop.f32.mrb[0].mxu0
      %2568 = vmatprep.mubr.bf16.mxu0 0
      %2569 = vmatmul.mubr.bf16.gmra.mrb[0].mxu0 %v1195
      %v2570 = vpop.f32.mrb[0].mxu0
      %v2571 = vadd.f32 0.0, %v2570
      %v2572 = vpop.f32.mrb[0].mxu0
      %v2573 = vpop.f32.mrb[0].mxu0
      %v2574 = vadd.f32 0.0, %v2573
      %v2575 = vpop.f32.mrb[0].mxu0
      %2576 = vmatprep.mubr.bf16.mxu0 0
      %2577 = vmatmul.mubr.bf16.gmra.mrb[0].mxu0 %v1198
      %v2578 = vpop.f32.mrb[0].mxu0
      %v2579 = vadd.f32 0.0, %v2578
      %v2580 = vpop.f32.mrb[0].mxu0
      %v2581 = vpop.f32.mrb[0].mxu0
      %v2582 = vadd.f32 0.0, %v2581
      %v2583 = vpop.f32.mrb[0].mxu0
      %2584 = vmatprep.mubr.bf16.mxu0 0
      %2585 = vmatmul.mubr.bf16.gmra.mrb[0].mxu0 %v1201
      %v2586 = vpop.f32.mrb[0].mxu0
      %v2587 = vadd.f32 0.0, %v2586
      %v2588 = vpop.f32.mrb[0].mxu0
      %v2589 = vpop.f32.mrb[0].mxu0
      %v2590 = vadd.f32 0.0, %v2589
      %v2591 = vpop.f32.mrb[0].mxu0
      %2592 = vmatprep.mubr.bf16.mxu0 0
      %2593 = vmatmul.mubr.bf16.gmra.mrb[0].mxu0 %v1204
      %v2594 = vpop.f32.mrb[0].mxu0
      %v2595 = vadd.f32 0.0, %v2594
      %v2596 = vpop.f32.mrb[0].mxu0
      %v2597 = vpop.f32.mrb[0].mxu0
      %v2598 = vadd.f32 0.0, %v2597
      %v2599 = vpop.f32.mrb[0].mxu0
      %2600 = vmatprep.mubr.bf16.mxu0 0
      %2601 = vmatmul.mubr.bf16.gmra.mrb[0].mxu0 %v1207
      %v2602 = vpop.f32.mrb[0].mxu0
      %v2603 = vadd.f32 0.0, %v2602
      %v2604 = vpop.f32.mrb[0].mxu0
      %v2605 = vpop.f32.mrb[0].mxu0
      %v2606 = vadd.f32 0.0, %v2605
      %v2607 = vpop.f32.mrb[0].mxu0
      %2608 = vmatprep.mubr.bf16.mxu0 0
      %2609 = vmatmul.mubr.bf16.gmra.mrb[0].mxu0 %v1210
      %v2610 = vpop.f32.mrb[0].mxu0
      %v2611 = vadd.f32 0.0, %v2610
      %v2612 = vpop.f32.mrb[0].mxu0
      %v2613 = vpop.f32.mrb[0].mxu0
      %v2614 = vadd.f32 0.0, %v2613
      %v2615 = vpop.f32.mrb[0].mxu0
      %2616 = vmatprep.mubr.bf16.mxu0 0
      %2617 = vmatmul.mubr.bf16.gmra.mrb[0].mxu0 %v1213
      %v2618 = vpop.f32.mrb[0].mxu0
      %v2619 = vadd.f32 0.0, %v2618
      %v2620 = vpop.f32.mrb[0].mxu0
      %v2621 = vpop.f32.mrb[0].mxu0
      %v2622 = vadd.f32 0.0, %v2621
      %v2623 = vpop.f32.mrb[0].mxu0
      %2624 = vmatprep.mubr.bf16.mxu0 0
      %2625 = vmatmul.mubr.bf16.gmra.mrb[0].mxu0 %v1828
      %v2626 = vpop.f32.mrb[0].mxu0
      %v2627 = vadd.f32 0.0, %v2626
      %v2628 = vpop.f32.mrb[0].mxu0
      %v2629 = vpop.f32.mrb[0].mxu0
      %v2630 = vadd.f32 0.0, %v2629
      %v2631 = vpop.f32.mrb[0].mxu0
      %2632 = vmatprep.mubr.bf16.mxu0 0
      %2633 = vmatmul.mubr.bf16.gmra.mrb[0].mxu0 %v2475
      %v2634 = vpop.f32.mrb[0].mxu0
      %v2635 = vadd.f32 0.0, %v2634
      %v2636 = vpop.f32.mrb[0].mxu0
      %v2637 = vpop.f32.mrb[0].mxu0
      %v2638 = vadd.f32 0.0, %v2637
      %v2639 = vpop.f32.mrb[0].mxu0
      %2640 = vdwg.mxu0
      %v2641 = vadd.f32 %v2435, %v2515
      %v2642 = vadd.f32 %v2436, %v2518
      %v2643 = vadd.f32 %v2437, %v2523
      %v2644 = vadd.f32 %v2438, %v2526
      %v2645 = vadd.f32 %v2439, %v2531
      %v2646 = vadd.f32 %v2440, %v2534
      %v2647 = vadd.f32 %v2441, %v2539
      %v2648 = vadd.f32 %v2442, %v2542
      %v2649 = vadd.f32 %v2443, %v2547
      %v2650 = vadd.f32 %v2444, %v2550
      %v2651 = vadd.f32 %v2445, %v2555
      %v2652 = vadd.f32 %v2446, %v2558
      %v2653 = vadd.f32 %v2447, %v2563
      %v2654 = vadd.f32 %v2448, %v2566
      %v2655 = vadd.f32 %v2449, %v2571
      %v2656 = vadd.f32 %v2450, %v2574
      %v2657 = vadd.f32 %v2451, %v2579
      %v2658 = vadd.f32 %v2452, %v2582
      %v2659 = vadd.f32 %v2453, %v2587
      %v2660 = vadd.f32 %v2454, %v2590
      %v2661 = vadd.f32 %v2455, %v2595
      %v2662 = vadd.f32 %v2456, %v2598
      %v2663 = vadd.f32 %v2457, %v2603
      %v2664 = vadd.f32 %v2458, %v2606
      %v2665 = vadd.f32 %v2459, %v2611
      %v2666 = vadd.f32 %v2460, %v2614
      %v2667 = vadd.f32 %v2461, %v2619
      %v2668 = vadd.f32 %v2462, %v2622
      %v2669 = vadd.f32 %v2463, %v2627
      %v2670 = vadd.f32 %v2464, %v2630
      %v2671 = vadd.f32 %v2465, %v2635
      %v2672 = vadd.f32 %v2466, %v2638
      %v2674 = vshrl.u32 %v397, 16
      %v2676 = vrot.slane %v2674, 4
      %v2677 = vshll.u32 %v397, 16
      %v2679 = vrot.slane %v2677, 5
      %v2680 = vor.u32 %v2676, %v2679
      %v2681 = vrot.slane %v2680, 4
      %v2683 = vshll.u32 %v398, 16
      %v2685 = vrot.slane %v2683, 5
      %v2686 = vsel %vm438, %v2681, %v2685
      %v2687 = vshrl.u32 %v398, 16
      %v2689 = vrot.slane %v2687, 4
      %v2690 = vor.u32 %v2689, %v2685
      %v2691 = vrot.slane %v2690, 4
      %v2693 = vshll.u32 %v416, 16
      %v2695 = vrot.slane %v2693, 5
      %v2696 = vsel %vm438, %v2691, %v2695
      %s2697 = scalar_lea.vmem %s1, 14
      %v2698 = vld [vmem:[%s2697] sm:$0x3]
      %v2699 = vunpack.c.l.b16 %v2686
      %v2700 = vunpack.c.l.b16 %v2696
      %v2701 = vpack.c.b16 %v2700, %v2699
      %v2703 = vsel %vm873, %v2701, 0
      %v2706 = vsel %vm922, %v2698, 0
      %2708 = vmatprep.subr.bf16.mxu0 0
      %2709 = vmatpush1.bf16.msra.mxu0 %v2706
      %2710 = vmatprep.subr.bf16.mxu0 0
      %2711 = vmatpush1.bf16.msra.mxu0 0
      %2712 = vmatprep.subr.bf16.mxu0 0
      %2713 = vmatpush1.bf16.msra.mxu0 0
      %2714 = vmatprep.subr.bf16.mxu0 0
      %2715 = vmatpush1.bf16.msra.mxu0 0
      %2716 = vmatprep.subr.bf16.mxu0 0
      %2717 = vmatpush1.bf16.msra.mxu0 0
      %2718 = vmatprep.subr.bf16.mxu0 0
      %2719 = vmatpush1.bf16.msra.mxu0 0
      %2720 = vmatprep.subr.bf16.mxu0 0
      %2721 = vmatpush1.bf16.msra.mxu0 0
      %2722 = vmatprep.subr.bf16.mxu0 0
      %2723 = vmatpush1.bf16.msra.mxu0 0
      %2724 = vmatprep.subr.bf16.mxu0 0
      %2725 = vmatpush1.bf16.msra.mxu0 0
      %2726 = vmatprep.subr.bf16.mxu0 0
      %2727 = vmatpush1.bf16.msra.mxu0 0
      %2728 = vmatprep.subr.bf16.mxu0 0
      %2729 = vmatpush1.bf16.msra.mxu0 0
      %2730 = vmatprep.subr.bf16.mxu0 0
      %2731 = vmatpush1.bf16.msra.mxu0 0
      %2732 = vmatprep.subr.bf16.mxu0 0
      %2733 = vmatpush1.bf16.msra.mxu0 0
      %2734 = vmatprep.subr.bf16.mxu0 0
      %2735 = vmatpush1.bf16.msra.mxu0 0
      %2736 = vmatprep.subr.bf16.mxu0 0
      %2737 = vmatpush1.bf16.msra.mxu0 0
      %2738 = vmatprep.subr.bf16.mxu0 0
      %2739 = vmatpush1.bf16.msra.mxu0 0
      %2740 = vmatprep.mubr.bf16.mxu0 0
      %2741 = vmatmul.mubr.bf16.gmra.mrb[0].mxu0 %v881
      %v2742 = vpop.f32.mrb[0].mxu0
      %v2743 = vadd.f32 0.0, %v2742
      %v2744 = vpop.f32.mrb[0].mxu0
      %v2745 = vpop.f32.mrb[0].mxu0
      %v2746 = vadd.f32 0.0, %v2745
      %v2747 = vpop.f32.mrb[0].mxu0
      %2748 = vmatprep.mubr.bf16.mxu0 0
      %2749 = vmatmul.mubr.bf16.gmra.mrb[0].mxu0 %v884
      %v2750 = vpop.f32.mrb[0].mxu0
      %v2751 = vadd.f32 0.0, %v2750
      %v2752 = vpop.f32.mrb[0].mxu0
      %v2753 = vpop.f32.mrb[0].mxu0
      %v2754 = vadd.f32 0.0, %v2753
      %v2755 = vpop.f32.mrb[0].mxu0
      %2756 = vmatprep.mubr.bf16.mxu0 0
      %2757 = vmatmul.mubr.bf16.gmra.mrb[0].mxu0 %v887
      %v2758 = vpop.f32.mrb[0].mxu0
      %v2759 = vadd.f32 0.0, %v2758
      %v2760 = vpop.f32.mrb[0].mxu0
      %v2761 = vpop.f32.mrb[0].mxu0
      %v2762 = vadd.f32 0.0, %v2761
      %v2763 = vpop.f32.mrb[0].mxu0
      %2764 = vmatprep.mubr.bf16.mxu0 0
      %2765 = vmatmul.mubr.bf16.gmra.mrb[0].mxu0 %v890
      %v2766 = vpop.f32.mrb[0].mxu0
      %v2767 = vadd.f32 0.0, %v2766
      %v2768 = vpop.f32.mrb[0].mxu0
      %v2769 = vpop.f32.mrb[0].mxu0
      %v2770 = vadd.f32 0.0, %v2769
      %v2771 = vpop.f32.mrb[0].mxu0
      %2772 = vmatprep.mubr.bf16.mxu0 0
      %2773 = vmatmul.mubr.bf16.gmra.mrb[0].mxu0 %v893
      %v2774 = vpop.f32.mrb[0].mxu0
      %v2775 = vadd.f32 0.0, %v2774
      %v2776 = vpop.f32.mrb[0].mxu0
      %v2777 = vpop.f32.mrb[0].mxu0
      %v2778 = vadd.f32 0.0, %v2777
      %v2779 = vpop.f32.mrb[0].mxu0
      %2780 = vmatprep.mubr.bf16.mxu0 0
      %2781 = vmatmul.mubr.bf16.gmra.mrb[0].mxu0 %v896
      %v2782 = vpop.f32.mrb[0].mxu0
      %v2783 = vadd.f32 0.0, %v2782
      %v2784 = vpop.f32.mrb[0].mxu0
      %v2785 = vpop.f32.mrb[0].mxu0
      %v2786 = vadd.f32 0.0, %v2785
      %v2787 = vpop.f32.mrb[0].mxu0
      %2788 = vmatprep.mubr.bf16.mxu0 0
      %2789 = vmatmul.mubr.bf16.gmra.mrb[0].mxu0 %v899
      %v2790 = vpop.f32.mrb[0].mxu0
      %v2791 = vadd.f32 0.0, %v2790
      %v2792 = vpop.f32.mrb[0].mxu0
      %v2793 = vpop.f32.mrb[0].mxu0
      %v2794 = vadd.f32 0.0, %v2793
      %v2795 = vpop.f32.mrb[0].mxu0
      %2796 = vmatprep.mubr.bf16.mxu0 0
      %2797 = vmatmul.mubr.bf16.gmra.mrb[0].mxu0 %v902
      %v2798 = vpop.f32.mrb[0].mxu0
      %v2799 = vadd.f32 0.0, %v2798
      %v2800 = vpop.f32.mrb[0].mxu0
      %v2801 = vpop.f32.mrb[0].mxu0
      %v2802 = vadd.f32 0.0, %v2801
      %v2803 = vpop.f32.mrb[0].mxu0
      %2804 = vmatprep.mubr.bf16.mxu0 0
      %2805 = vmatmul.mubr.bf16.gmra.mrb[0].mxu0 %v905
      %v2806 = vpop.f32.mrb[0].mxu0
      %v2807 = vadd.f32 0.0, %v2806
      %v2808 = vpop.f32.mrb[0].mxu0
      %v2809 = vpop.f32.mrb[0].mxu0
      %v2810 = vadd.f32 0.0, %v2809
      %v2811 = vpop.f32.mrb[0].mxu0
      %2812 = vmatprep.mubr.bf16.mxu0 0
      %2813 = vmatmul.mubr.bf16.gmra.mrb[0].mxu0 %v908
      %v2814 = vpop.f32.mrb[0].mxu0
      %v2815 = vadd.f32 0.0, %v2814
      %v2816 = vpop.f32.mrb[0].mxu0
      %v2817 = vpop.f32.mrb[0].mxu0
      %v2818 = vadd.f32 0.0, %v2817
      %v2819 = vpop.f32.mrb[0].mxu0
      %2820 = vmatprep.mubr.bf16.mxu0 0
      %2821 = vmatmul.mubr.bf16.gmra.mrb[0].mxu0 %v911
      %v2822 = vpop.f32.mrb[0].mxu0
      %v2823 = vadd.f32 0.0, %v2822
      %v2824 = vpop.f32.mrb[0].mxu0
      %v2825 = vpop.f32.mrb[0].mxu0
      %v2826 = vadd.f32 0.0, %v2825
      %v2827 = vpop.f32.mrb[0].mxu0
      %2828 = vmatprep.mubr.bf16.mxu0 0
      %2829 = vmatmul.mubr.bf16.gmra.mrb[0].mxu0 %v914
      %v2830 = vpop.f32.mrb[0].mxu0
      %v2831 = vadd.f32 0.0, %v2830
      %v2832 = vpop.f32.mrb[0].mxu0
      %v2833 = vpop.f32.mrb[0].mxu0
      %v2834 = vadd.f32 0.0, %v2833
      %v2835 = vpop.f32.mrb[0].mxu0
      %2836 = vmatprep.mubr.bf16.mxu0 0
      %2837 = vmatmul.mubr.bf16.gmra.mrb[0].mxu0 %v917
      %v2838 = vpop.f32.mrb[0].mxu0
      %v2839 = vadd.f32 0.0, %v2838
      %v2840 = vpop.f32.mrb[0].mxu0
      %v2841 = vpop.f32.mrb[0].mxu0
      %v2842 = vadd.f32 0.0, %v2841
      %v2843 = vpop.f32.mrb[0].mxu0
      %2844 = vmatprep.mubr.bf16.mxu0 0
      %2845 = vmatmul.mubr.bf16.gmra.mrb[0].mxu0 %v920
      %v2846 = vpop.f32.mrb[0].mxu0
      %v2847 = vadd.f32 0.0, %v2846
      %v2848 = vpop.f32.mrb[0].mxu0
      %v2849 = vpop.f32.mrb[0].mxu0
      %v2850 = vadd.f32 0.0, %v2849
      %v2851 = vpop.f32.mrb[0].mxu0
      %2852 = vmatprep.mubr.bf16.mxu0 0
      %2853 = vmatmul.mubr.bf16.gmra.mrb[0].mxu0 %v2056
      %v2854 = vpop.f32.mrb[0].mxu0
      %v2855 = vadd.f32 0.0, %v2854
      %v2856 = vpop.f32.mrb[0].mxu0
      %v2857 = vpop.f32.mrb[0].mxu0
      %v2858 = vadd.f32 0.0, %v2857
      %v2859 = vpop.f32.mrb[0].mxu0
      %2860 = vmatprep.mubr.bf16.mxu0 0
      %2861 = vmatmul.mubr.bf16.gmra.mrb[0].mxu0 %v2703
      %v2862 = vpop.f32.mrb[0].mxu0
      %v2863 = vadd.f32 0.0, %v2862
      %v2864 = vpop.f32.mrb[0].mxu0
      %v2865 = vpop.f32.mrb[0].mxu0
      %v2866 = vadd.f32 0.0, %v2865
      %v2867 = vpop.f32.mrb[0].mxu0
      %2868 = vdwg.mxu0
      %v2869 = vadd.f32 %v2641, %v2743
      %v2870 = vadd.f32 %v2642, %v2746
      %v2871 = vadd.f32 %v2643, %v2751
      %v2872 = vadd.f32 %v2644, %v2754
      %v2873 = vadd.f32 %v2645, %v2759
      %v2874 = vadd.f32 %v2646, %v2762
      %v2875 = vadd.f32 %v2647, %v2767
      %v2876 = vadd.f32 %v2648, %v2770
      %v2877 = vadd.f32 %v2649, %v2775
      %v2878 = vadd.f32 %v2650, %v2778
      %v2879 = vadd.f32 %v2651, %v2783
      %v2880 = vadd.f32 %v2652, %v2786
      %v2881 = vadd.f32 %v2653, %v2791
      %v2882 = vadd.f32 %v2654, %v2794
      %v2883 = vadd.f32 %v2655, %v2799
      %v2884 = vadd.f32 %v2656, %v2802
      %v2885 = vadd.f32 %v2657, %v2807
      %v2886 = vadd.f32 %v2658, %v2810
      %v2887 = vadd.f32 %v2659, %v2815
      %v2888 = vadd.f32 %v2660, %v2818
      %v2889 = vadd.f32 %v2661, %v2823
      %v2890 = vadd.f32 %v2662, %v2826
      %v2891 = vadd.f32 %v2663, %v2831
      %v2892 = vadd.f32 %v2664, %v2834
      %v2893 = vadd.f32 %v2665, %v2839
      %v2894 = vadd.f32 %v2666, %v2842
      %v2895 = vadd.f32 %v2667, %v2847
      %v2896 = vadd.f32 %v2668, %v2850
      %v2897 = vadd.f32 %v2669, %v2855
      %v2898 = vadd.f32 %v2670, %v2858
      %v2899 = vadd.f32 %v2671, %v2863
      %v2900 = vadd.f32 %v2672, %v2866
      %v2903 = vrot.slane %v434, 5
      %v2904 = vrot.slane %v2903, 4
      %v2905 = vrot.slane %v398, 5
      %v2906 = vsel %vm1413, %v2904, %v2905
      %v2907 = vrot.slane %v2905, 4
      %v2908 = vrot.slane %v416, 5
      %v2909 = vsel %vm1413, %v2907, %v2908
      %s2910 = scalar_lea.vmem %s1, 16
      %v2911 = vld [vmem:[%s2910] sm:$0x3]
      %v2912 = vunpack.c.l.b16 %v2906
      %v2913 = vunpack.c.l.b16 %v2909
      %v2914 = vpack.c.b16 %v2913, %v2912
      %v2916 = vsel %vm873, %v2914, 0
      %v2919 = vsel %vm922, %v2911, 0
      %2921 = vmatprep.subr.bf16.mxu0 0
      %2922 = vmatpush1.bf16.msra.mxu0 %v2919
      %2923 = vmatprep.subr.bf16.mxu0 0
      %2924 = vmatpush1.bf16.msra.mxu0 0
      %2925 = vmatprep.subr.bf16.mxu0 0
      %2926 = vmatpush1.bf16.msra.mxu0 0
      %2927 = vmatprep.subr.bf16.mxu0 0
      %2928 = vmatpush1.bf16.msra.mxu0 0
      %2929 = vmatprep.subr.bf16.mxu0 0
      %2930 = vmatpush1.bf16.msra.mxu0 0
      %2931 = vmatprep.subr.bf16.mxu0 0
      %2932 = vmatpush1.bf16.msra.mxu0 0
      %2933 = vmatprep.subr.bf16.mxu0 0
      %2934 = vmatpush1.bf16.msra.mxu0 0
      %2935 = vmatprep.subr.bf16.mxu0 0
      %2936 = vmatpush1.bf16.msra.mxu0 0
      %2937 = vmatprep.subr.bf16.mxu0 0
      %2938 = vmatpush1.bf16.msra.mxu0 0
      %2939 = vmatprep.subr.bf16.mxu0 0
      %2940 = vmatpush1.bf16.msra.mxu0 0
      %2941 = vmatprep.subr.bf16.mxu0 0
      %2942 = vmatpush1.bf16.msra.mxu0 0
      %2943 = vmatprep.subr.bf16.mxu0 0
      %2944 = vmatpush1.bf16.msra.mxu0 0
      %2945 = vmatprep.subr.bf16.mxu0 0
      %2946 = vmatpush1.bf16.msra.mxu0 0
      %2947 = vmatprep.subr.bf16.mxu0 0
      %2948 = vmatpush1.bf16.msra.mxu0 0
      %2949 = vmatprep.subr.bf16.mxu0 0
      %2950 = vmatpush1.bf16.msra.mxu0 0
      %2951 = vmatprep.subr.bf16.mxu0 0
      %2952 = vmatpush1.bf16.msra.mxu0 0
      %2953 = vmatprep.mubr.bf16.mxu0 0
      %2954 = vmatmul.mubr.bf16.gmra.mrb[0].mxu0 %v1583
      %v2955 = vpop.f32.mrb[0].mxu0
      %v2956 = vadd.f32 0.0, %v2955
      %v2957 = vpop.f32.mrb[0].mxu0
      %v2958 = vpop.f32.mrb[0].mxu0
      %v2959 = vadd.f32 0.0, %v2958
      %v2960 = vpop.f32.mrb[0].mxu0
      %2961 = vmatprep.mubr.bf16.mxu0 0
      %2962 = vmatmul.mubr.bf16.gmra.mrb[0].mxu0 %v1586
      %v2963 = vpop.f32.mrb[0].mxu0
      %v2964 = vadd.f32 0.0, %v2963
      %v2965 = vpop.f32.mrb[0].mxu0
      %v2966 = vpop.f32.mrb[0].mxu0
      %v2967 = vadd.f32 0.0, %v2966
      %v2968 = vpop.f32.mrb[0].mxu0
      %2969 = vmatprep.mubr.bf16.mxu0 0
      %2970 = vmatmul.mubr.bf16.gmra.mrb[0].mxu0 %v1589
      %v2971 = vpop.f32.mrb[0].mxu0
      %v2972 = vadd.f32 0.0, %v2971
      %v2973 = vpop.f32.mrb[0].mxu0
      %v2974 = vpop.f32.mrb[0].mxu0
      %v2975 = vadd.f32 0.0, %v2974
      %v2976 = vpop.f32.mrb[0].mxu0
      %2977 = vmatprep.mubr.bf16.mxu0 0
      %2978 = vmatmul.mubr.bf16.gmra.mrb[0].mxu0 %v1592
      %v2979 = vpop.f32.mrb[0].mxu0
      %v2980 = vadd.f32 0.0, %v2979
      %v2981 = vpop.f32.mrb[0].mxu0
      %v2982 = vpop.f32.mrb[0].mxu0
      %v2983 = vadd.f32 0.0, %v2982
      %v2984 = vpop.f32.mrb[0].mxu0
      %2985 = vmatprep.mubr.bf16.mxu0 0
      %2986 = vmatmul.mubr.bf16.gmra.mrb[0].mxu0 %v1595
      %v2987 = vpop.f32.mrb[0].mxu0
      %v2988 = vadd.f32 0.0, %v2987
      %v2989 = vpop.f32.mrb[0].mxu0
      %v2990 = vpop.f32.mrb[0].mxu0
      %v2991 = vadd.f32 0.0, %v2990
      %v2992 = vpop.f32.mrb[0].mxu0
      %2993 = vmatprep.mubr.bf16.mxu0 0
      %2994 = vmatmul.mubr.bf16.gmra.mrb[0].mxu0 %v1598
      %v2995 = vpop.f32.mrb[0].mxu0
      %v2996 = vadd.f32 0.0, %v2995
      %v2997 = vpop.f32.mrb[0].mxu0
      %v2998 = vpop.f32.mrb[0].mxu0
      %v2999 = vadd.f32 0.0, %v2998
      %v3000 = vpop.f32.mrb[0].mxu0
      %3001 = vmatprep.mubr.bf16.mxu0 0
      %3002 = vmatmul.mubr.bf16.gmra.mrb[0].mxu0 %v1601
      %v3003 = vpop.f32.mrb[0].mxu0
      %v3004 = vadd.f32 0.0, %v3003
      %v3005 = vpop.f32.mrb[0].mxu0
      %v3006 = vpop.f32.mrb[0].mxu0
      %v3007 = vadd.f32 0.0, %v3006
      %v3008 = vpop.f32.mrb[0].mxu0
      %3009 = vmatprep.mubr.bf16.mxu0 0
      %3010 = vmatmul.mubr.bf16.gmra.mrb[0].mxu0 %v1604
      %v3011 = vpop.f32.mrb[0].mxu0
      %v3012 = vadd.f32 0.0, %v3011
      %v3013 = vpop.f32.mrb[0].mxu0
      %v3014 = vpop.f32.mrb[0].mxu0
      %v3015 = vadd.f32 0.0, %v3014
      %v3016 = vpop.f32.mrb[0].mxu0
      %3017 = vmatprep.mubr.bf16.mxu0 0
      %3018 = vmatmul.mubr.bf16.gmra.mrb[0].mxu0 %v1607
      %v3019 = vpop.f32.mrb[0].mxu0
      %v3020 = vadd.f32 0.0, %v3019
      %v3021 = vpop.f32.mrb[0].mxu0
      %v3022 = vpop.f32.mrb[0].mxu0
      %v3023 = vadd.f32 0.0, %v3022
      %v3024 = vpop.f32.mrb[0].mxu0
      %3025 = vmatprep.mubr.bf16.mxu0 0
      %3026 = vmatmul.mubr.bf16.gmra.mrb[0].mxu0 %v1610
      %v3027 = vpop.f32.mrb[0].mxu0
      %v3028 = vadd.f32 0.0, %v3027
      %v3029 = vpop.f32.mrb[0].mxu0
      %v3030 = vpop.f32.mrb[0].mxu0
      %v3031 = vadd.f32 0.0, %v3030
      %v3032 = vpop.f32.mrb[0].mxu0
      %3033 = vmatprep.mubr.bf16.mxu0 0
      %3034 = vmatmul.mubr.bf16.gmra.mrb[0].mxu0 %v1613
      %v3035 = vpop.f32.mrb[0].mxu0
      %v3036 = vadd.f32 0.0, %v3035
      %v3037 = vpop.f32.mrb[0].mxu0
      %v3038 = vpop.f32.mrb[0].mxu0
      %v3039 = vadd.f32 0.0, %v3038
      %v3040 = vpop.f32.mrb[0].mxu0
      %3041 = vmatprep.mubr.bf16.mxu0 0
      %3042 = vmatmul.mubr.bf16.gmra.mrb[0].mxu0 %v1616
      %v3043 = vpop.f32.mrb[0].mxu0
      %v3044 = vadd.f32 0.0, %v3043
      %v3045 = vpop.f32.mrb[0].mxu0
      %v3046 = vpop.f32.mrb[0].mxu0
      %v3047 = vadd.f32 0.0, %v3046
      %v3048 = vpop.f32.mrb[0].mxu0
      %3049 = vmatprep.mubr.bf16.mxu0 0
      %3050 = vmatmul.mubr.bf16.gmra.mrb[0].mxu0 %v1619
      %v3051 = vpop.f32.mrb[0].mxu0
      %v3052 = vadd.f32 0.0, %v3051
      %v3053 = vpop.f32.mrb[0].mxu0
      %v3054 = vpop.f32.mrb[0].mxu0
      %v3055 = vadd.f32 0.0, %v3054
      %v3056 = vpop.f32.mrb[0].mxu0
      %3057 = vmatprep.mubr.bf16.mxu0 0
      %3058 = vmatmul.mubr.bf16.gmra.mrb[0].mxu0 %v1622
      %v3059 = vpop.f32.mrb[0].mxu0
      %v3060 = vadd.f32 0.0, %v3059
      %v3061 = vpop.f32.mrb[0].mxu0
      %v3062 = vpop.f32.mrb[0].mxu0
      %v3063 = vadd.f32 0.0, %v3062
      %v3064 = vpop.f32.mrb[0].mxu0
      %3065 = vmatprep.mubr.bf16.mxu0 0
      %3066 = vmatmul.mubr.bf16.gmra.mrb[0].mxu0 %v2269
      %v3067 = vpop.f32.mrb[0].mxu0
      %v3068 = vadd.f32 0.0, %v3067
      %v3069 = vpop.f32.mrb[0].mxu0
      %v3070 = vpop.f32.mrb[0].mxu0
      %v3071 = vadd.f32 0.0, %v3070
      %v3072 = vpop.f32.mrb[0].mxu0
      %3073 = vmatprep.mubr.bf16.mxu0 0
      %3074 = vmatmul.mubr.bf16.gmra.mrb[0].mxu0 %v2916
      %v3075 = vpop.f32.mrb[0].mxu0
      %v3076 = vadd.f32 0.0, %v3075
      %v3077 = vpop.f32.mrb[0].mxu0
      %v3078 = vpop.f32.mrb[0].mxu0
      %v3079 = vadd.f32 0.0, %v3078
      %v3080 = vpop.f32.mrb[0].mxu0
      %3081 = vdwg.mxu0
      %v3082 = vadd.f32 %v2869, %v2956
      %v3083 = vadd.f32 %v2870, %v2959
      %v3084 = vadd.f32 %v2871, %v2964
      %v3085 = vadd.f32 %v2872, %v2967
      %v3086 = vadd.f32 %v2873, %v2972
      %v3087 = vadd.f32 %v2874, %v2975
      %v3088 = vadd.f32 %v2875, %v2980
      %v3089 = vadd.f32 %v2876, %v2983
      %v3090 = vadd.f32 %v2877, %v2988
      %v3091 = vadd.f32 %v2878, %v2991
      %v3092 = vadd.f32 %v2879, %v2996
      %v3093 = vadd.f32 %v2880, %v2999
      %v3094 = vadd.f32 %v2881, %v3004
      %v3095 = vadd.f32 %v2882, %v3007
      %v3096 = vadd.f32 %v2883, %v3012
      %v3097 = vadd.f32 %v2884, %v3015
      %v3098 = vadd.f32 %v2885, %v3020
      %v3099 = vadd.f32 %v2886, %v3023
      %v3100 = vadd.f32 %v2887, %v3028
      %v3101 = vadd.f32 %v2888, %v3031
      %v3102 = vadd.f32 %v2889, %v3036
      %v3103 = vadd.f32 %v2890, %v3039
      %v3104 = vadd.f32 %v2891, %v3044
      %v3105 = vadd.f32 %v2892, %v3047
      %v3106 = vadd.f32 %v2893, %v3052
      %v3107 = vadd.f32 %v2894, %v3055
      %v3108 = vadd.f32 %v2895, %v3060
      %v3109 = vadd.f32 %v2896, %v3063
      %v3110 = vadd.f32 %v2897, %v3068
      %v3111 = vadd.f32 %v2898, %v3071
      %v3112 = vadd.f32 %v2899, %v3076
      %v3113 = vadd.f32 %v2900, %v3079
      %v3114 = vld [vmem:[%s2] sm:$0x1]
      %v3115 = vadd.f32 %v3082, %v3083
      %v3116 = vadd.f32 %v3115, %v3084
      %v3117 = vadd.f32 %v3116, %v3085
      %v3118 = vadd.f32 %v3117, %v3086
      %v3119 = vadd.f32 %v3118, %v3087
      %v3120 = vadd.f32 %v3119, %v3088
      %v3121 = vadd.f32 %v3120, %v3089
      %v3122 = vadd.f32 %v3121, %v3090
      %v3123 = vadd.f32 %v3122, %v3091
      %v3124 = vadd.f32 %v3123, %v3092
      %v3125 = vadd.f32 %v3124, %v3093
      %v3126 = vadd.f32 %v3125, %v3094
      %v3127 = vadd.f32 %v3126, %v3095
      %v3128 = vadd.f32 %v3127, %v3096
      %v3129 = vadd.f32 %v3128, %v3097
      %v3130 = vadd.f32 %v3129, %v3098
      %v3131 = vadd.f32 %v3130, %v3099
      %v3132 = vadd.f32 %v3131, %v3100
      %v3133 = vadd.f32 %v3132, %v3101
      %v3134 = vadd.f32 %v3133, %v3102
      %v3135 = vadd.f32 %v3134, %v3103
      %v3136 = vadd.f32 %v3135, %v3104
      %v3137 = vadd.f32 %v3136, %v3105
      %v3138 = vadd.f32 %v3137, %v3106
      %v3139 = vadd.f32 %v3138, %v3107
      %v3140 = vadd.f32 %v3139, %v3108
      %v3141 = vadd.f32 %v3140, %v3109
      %v3142 = vadd.f32 %v3141, %v3110
      %v3143 = vadd.f32 %v3142, %v3111
      %v3144 = vadd.f32 %v3143, %v3112
      %v3145 = vadd.f32 %v3144, %v3113
      %v3146 = vrot.slane %v3145, 4
      %v3147 = vadd.f32 %v3145, %v3146
      %v3148 = vrot.slane %v3147, 2
      %v3149 = vadd.f32 %v3147, %v3148
      %v3150 = vrot.slane %v3149, 1
      %v3151 = vadd.f32 %v3149, %v3150
      %v3152 = vmul.f32 %v3082, %v3082
      %v3153 = vmul.f32 %v3083, %v3083
      %v3154 = vmul.f32 %v3084, %v3084
      %v3155 = vmul.f32 %v3085, %v3085
      %v3156 = vmul.f32 %v3086, %v3086
      %v3157 = vmul.f32 %v3087, %v3087
      %v3158 = vmul.f32 %v3088, %v3088
      %v3159 = vmul.f32 %v3089, %v3089
      %v3160 = vmul.f32 %v3090, %v3090
      %v3161 = vmul.f32 %v3091, %v3091
      %v3162 = vmul.f32 %v3092, %v3092
      %v3163 = vmul.f32 %v3093, %v3093
      %v3164 = vmul.f32 %v3094, %v3094
      %v3165 = vmul.f32 %v3095, %v3095
      %v3166 = vmul.f32 %v3096, %v3096
      %v3167 = vmul.f32 %v3097, %v3097
      %v3168 = vmul.f32 %v3098, %v3098
      %v3169 = vmul.f32 %v3099, %v3099
      %v3170 = vmul.f32 %v3100, %v3100
      %v3171 = vmul.f32 %v3101, %v3101
      %v3172 = vmul.f32 %v3102, %v3102
      %v3173 = vmul.f32 %v3103, %v3103
      %v3174 = vmul.f32 %v3104, %v3104
      %v3175 = vmul.f32 %v3105, %v3105
      %v3176 = vmul.f32 %v3106, %v3106
      %v3177 = vmul.f32 %v3107, %v3107
      %v3178 = vmul.f32 %v3108, %v3108
      %v3179 = vmul.f32 %v3109, %v3109
      %v3180 = vmul.f32 %v3110, %v3110
      %v3181 = vmul.f32 %v3111, %v3111
      %v3182 = vmul.f32 %v3112, %v3112
      %v3183 = vmul.f32 %v3113, %v3113
      %v3184 = vadd.f32 %v3152, %v3153
      %v3185 = vadd.f32 %v3184, %v3154
      %v3186 = vadd.f32 %v3185, %v3155
      %v3187 = vadd.f32 %v3186, %v3156
      %v3188 = vadd.f32 %v3187, %v3157
      %v3189 = vadd.f32 %v3188, %v3158
      %v3190 = vadd.f32 %v3189, %v3159
      %v3191 = vadd.f32 %v3190, %v3160
      %v3192 = vadd.f32 %v3191, %v3161
      %v3193 = vadd.f32 %v3192, %v3162
      %v3194 = vadd.f32 %v3193, %v3163
      %v3195 = vadd.f32 %v3194, %v3164
      %v3196 = vadd.f32 %v3195, %v3165
      %v3197 = vadd.f32 %v3196, %v3166
      %v3198 = vadd.f32 %v3197, %v3167
      %v3199 = vadd.f32 %v3198, %v3168
      %v3200 = vadd.f32 %v3199, %v3169
      %v3201 = vadd.f32 %v3200, %v3170
      %v3202 = vadd.f32 %v3201, %v3171
      %v3203 = vadd.f32 %v3202, %v3172
      %v3204 = vadd.f32 %v3203, %v3173
      %v3205 = vadd.f32 %v3204, %v3174
      %v3206 = vadd.f32 %v3205, %v3175
      %v3207 = vadd.f32 %v3206, %v3176
      %v3208 = vadd.f32 %v3207, %v3177
      %v3209 = vadd.f32 %v3208, %v3178
      %v3210 = vadd.f32 %v3209, %v3179
      %v3211 = vadd.f32 %v3210, %v3180
      %v3212 = vadd.f32 %v3211, %v3181
      %v3213 = vadd.f32 %v3212, %v3182
      %v3214 = vadd.f32 %v3213, %v3183
      %v3215 = vrot.slane %v3214, 4
      %v3216 = vadd.f32 %v3214, %v3215
      %v3217 = vrot.slane %v3216, 2
      %v3218 = vadd.f32 %v3216, %v3217
      %v3219 = vrot.slane %v3218, 1
      %v3220 = vadd.f32 %v3218, %v3219
      %v3221 = vmul.f32 %v3114, 256.0
      %v3222 = vadd.f32 %v3151, %v3221
      %v3223 = vmul.f32 %v3114, 2.0
      %v3224 = vmul.f32 %v3223, %v3151
      %v3225 = vadd.f32 %v3220, %v3224
      %v3226 = vmul.f32 %v3114, %v3114
      %v3227 = vmul.f32 %v3226, 256.0
      %v3228 = vadd.f32 %v3225, %v3227
      %v3229 = vld [vmem:[%s5] sm:$0xff]
      %v3230 = vld [vmem:[%s5 + $0x8] sm:$0xff]
      %v3231 = vld [vmem:[%s5 + $0x10] sm:$0xff]
      %v3232 = vld [vmem:[%s5 + $0x18] sm:$0xff]
      %v3233 = vld [vmem:[%s5 + $0x20] sm:$0xff]
      %v3234 = vld [vmem:[%s5 + $0x28] sm:$0xff]
      %v3235 = vld [vmem:[%s5 + $0x30] sm:$0xff]
      %v3236 = vld [vmem:[%s5 + $0x38] sm:$0xff]
      %v3237 = vld [vmem:[%s5 + $0x40] sm:$0xff]
      %v3238 = vld [vmem:[%s5 + $0x48] sm:$0xff]
      %v3239 = vld [vmem:[%s5 + $0x50] sm:$0xff]
      %v3240 = vld [vmem:[%s5 + $0x58] sm:$0xff]
      %v3241 = vld [vmem:[%s5 + $0x60] sm:$0xff]
      %v3242 = vld [vmem:[%s5 + $0x68] sm:$0xff]
      %v3243 = vld [vmem:[%s5 + $0x70] sm:$0xff]
      %v3244 = vld [vmem:[%s5 + $0x78] sm:$0xff]
      %3245 = vmatprep.subr.mxu0 0.0
      %3246 = vmatpush1.msra.mxu0 %v3229
      %3247 = vmatprep.subr.mxu0 0.0
      %3248 = vmatpush1.msra.mxu0 %v3230
      %3249 = vmatprep.subr.mxu0 0.0
      %3250 = vmatpush1.msra.mxu0 %v3231
      %3251 = vmatprep.subr.mxu0 0.0
      %3252 = vmatpush1.msra.mxu0 %v3232
      %3253 = vmatprep.subr.mxu0 0.0
      %3254 = vmatpush1.msra.mxu0 %v3233
      %3255 = vmatprep.subr.mxu0 0.0
      %3256 = vmatpush1.msra.mxu0 %v3234
      %3257 = vmatprep.subr.mxu0 0.0
      %3258 = vmatpush1.msra.mxu0 %v3235
      %3259 = vmatprep.subr.mxu0 0.0
      %3260 = vmatpush1.msra.mxu0 %v3236
      %3261 = vmatprep.subr.mxu0 0.0
      %3262 = vmatpush1.msra.mxu0 %v3237
      %3263 = vmatprep.subr.mxu0 0.0
      %3264 = vmatpush1.msra.mxu0 %v3238
      %3265 = vmatprep.subr.mxu0 0.0
      %3266 = vmatpush1.msra.mxu0 %v3239
      %3267 = vmatprep.subr.mxu0 0.0
      %3268 = vmatpush1.msra.mxu0 %v3240
      %3269 = vmatprep.subr.mxu0 0.0
      %3270 = vmatpush1.msra.mxu0 %v3241
      %3271 = vmatprep.subr.mxu0 0.0
      %3272 = vmatpush1.msra.mxu0 %v3242
      %3273 = vmatprep.subr.mxu0 0.0
      %3274 = vmatpush1.msra.mxu0 %v3243
      %3275 = vmatprep.subr.mxu0 0.0
      %3276 = vmatpush1.msra.mxu0 %v3244
      %3277 = vmatprep.subr.mxu0 0.0
      %3278 = vmatpush1.msra.mxu0 0.0
      %3279 = vmatprep.subr.mxu0 0.0
      %3280 = vmatpush1.msra.mxu0 0.0
      %3281 = vmatprep.subr.mxu0 0.0
      %3282 = vmatpush1.msra.mxu0 0.0
      %3283 = vmatprep.subr.mxu0 0.0
      %3284 = vmatpush1.msra.mxu0 0.0
      %3285 = vmatprep.subr.mxu0 0.0
      %3286 = vmatpush1.msra.mxu0 0.0
      %3287 = vmatprep.subr.mxu0 0.0
      %3288 = vmatpush1.msra.mxu0 0.0
      %3289 = vmatprep.subr.mxu0 0.0
      %3290 = vmatpush1.msra.mxu0 0.0
      %3291 = vmatprep.subr.mxu0 0.0
      %3292 = vmatpush1.msra.mxu0 0.0
      %3293 = vmatprep.subr.mxu0 0.0
      %3294 = vmatpush1.msra.mxu0 0.0
      %3295 = vmatprep.subr.mxu0 0.0
      %3296 = vmatpush1.msra.mxu0 0.0
      %3297 = vmatprep.subr.mxu0 0.0
      %3298 = vmatpush1.msra.mxu0 0.0
      %3299 = vmatprep.subr.mxu0 0.0
      %3300 = vmatpush1.msra.mxu0 0.0
      %3301 = vmatprep.subr.mxu0 0.0
      %3302 = vmatpush1.msra.mxu0 0.0
      %3303 = vmatprep.subr.mxu0 0.0
      %3304 = vmatpush1.msra.mxu0 0.0
      %3305 = vmatprep.subr.mxu0 0.0
      %3306 = vmatpush1.msra.mxu0 0.0
      %3307 = vmatprep.subr.mxu0 0.0
      %3308 = vmatpush1.msra.mxu0 0.0
      %3309 = vmatprep.mubr.f32.mxu0 0.0
      %3310 = vmatmul.mubr.f32.gmra.mrb[0].mxu0 %v3222
      %v3311 = vpop.f32.mrb[0].mxu0
      %v3312 = vadd.f32 0.0, %v3311
      %v3313 = vpop.f32.mrb[0].mxu0
      %3314 = vdwg.mxu0
      %v3315 = vmul.f32 %v3312, 0.001953125
      %3316 = vmatprep.subr.mxu0 0.0
      %3317 = vmatpush1.msra.mxu0 %v3229
      %3318 = vmatprep.subr.mxu0 0.0
      %3319 = vmatpush1.msra.mxu0 %v3230
      %3320 = vmatprep.subr.mxu0 0.0
      %3321 = vmatpush1.msra.mxu0 %v3231
      %3322 = vmatprep.subr.mxu0 0.0
      %3323 = vmatpush1.msra.mxu0 %v3232
      %3324 = vmatprep.subr.mxu0 0.0
      %3325 = vmatpush1.msra.mxu0 %v3233
      %3326 = vmatprep.subr.mxu0 0.0
      %3327 = vmatpush1.msra.mxu0 %v3234
      %3328 = vmatprep.subr.mxu0 0.0
      %3329 = vmatpush1.msra.mxu0 %v3235
      %3330 = vmatprep.subr.mxu0 0.0
      %3331 = vmatpush1.msra.mxu0 %v3236
      %3332 = vmatprep.subr.mxu0 0.0
      %3333 = vmatpush1.msra.mxu0 %v3237
      %3334 = vmatprep.subr.mxu0 0.0
      %3335 = vmatpush1.msra.mxu0 %v3238
      %3336 = vmatprep.subr.mxu0 0.0
      %3337 = vmatpush1.msra.mxu0 %v3239
      %3338 = vmatprep.subr.mxu0 0.0
      %3339 = vmatpush1.msra.mxu0 %v3240
      %3340 = vmatprep.subr.mxu0 0.0
      %3341 = vmatpush1.msra.mxu0 %v3241
      %3342 = vmatprep.subr.mxu0 0.0
      %3343 = vmatpush1.msra.mxu0 %v3242
      %3344 = vmatprep.subr.mxu0 0.0
      %3345 = vmatpush1.msra.mxu0 %v3243
      %3346 = vmatprep.subr.mxu0 0.0
      %3347 = vmatpush1.msra.mxu0 %v3244
      %3348 = vmatprep.subr.mxu0 0.0
      %3349 = vmatpush1.msra.mxu0 0.0
      %3350 = vmatprep.subr.mxu0 0.0
      %3351 = vmatpush1.msra.mxu0 0.0
      %3352 = vmatprep.subr.mxu0 0.0
      %3353 = vmatpush1.msra.mxu0 0.0
      %3354 = vmatprep.subr.mxu0 0.0
      %3355 = vmatpush1.msra.mxu0 0.0
      %3356 = vmatprep.subr.mxu0 0.0
      %3357 = vmatpush1.msra.mxu0 0.0
      %3358 = vmatprep.subr.mxu0 0.0
      %3359 = vmatpush1.msra.mxu0 0.0
      %3360 = vmatprep.subr.mxu0 0.0
      %3361 = vmatpush1.msra.mxu0 0.0
      %3362 = vmatprep.subr.mxu0 0.0
      %3363 = vmatpush1.msra.mxu0 0.0
      %3364 = vmatprep.subr.mxu0 0.0
      %3365 = vmatpush1.msra.mxu0 0.0
      %3366 = vmatprep.subr.mxu0 0.0
      %3367 = vmatpush1.msra.mxu0 0.0
      %3368 = vmatprep.subr.mxu0 0.0
      %3369 = vmatpush1.msra.mxu0 0.0
      %3370 = vmatprep.subr.mxu0 0.0
      %3371 = vmatpush1.msra.mxu0 0.0
      %3372 = vmatprep.subr.mxu0 0.0
      %3373 = vmatpush1.msra.mxu0 0.0
      %3374 = vmatprep.subr.mxu0 0.0
      %3375 = vmatpush1.msra.mxu0 0.0
      %3376 = vmatprep.subr.mxu0 0.0
      %3377 = vmatpush1.msra.mxu0 0.0
      %3378 = vmatprep.subr.mxu0 0.0
      %3379 = vmatpush1.msra.mxu0 0.0
      %3380 = vmatprep.mubr.f32.mxu0 0.0
      %3381 = vmatmul.mubr.f32.gmra.mrb[0].mxu0 %v3228
      %v3382 = vpop.f32.mrb[0].mxu0
      %v3383 = vadd.f32 0.0, %v3382
      %v3384 = vpop.f32.mrb[0].mxu0
      %3385 = vdwg.mxu0
      %v3386 = vmul.f32 %v3383, 0.001953125
      %v3387 = vmul.f32 %v3315, %v3315
      %v3388 = vsub.f32 %v3386, %v3387
      %v3389 = vmax.f32 %v3388, 0.0
      %v3390 = vadd.f32 %v3389, 1e-05
      %v3391 = vrsqrt.pop %v3390
      %v3392 = vld [vmem:[%s6] sm:$0xff]
      %vm3393 = vcmask 64512
      %v3395 = vsel %vm3393, %v3315, 0
      %3397 = vmatprep.subr.mxu0 0.0
      %3398 = vmatpush1.msra.mxu0 %v3392
      %3399 = vmatprep.subr.mxu0 0.0
      %3400 = vmatpush1.msra.mxu0 0.0
      %3401 = vmatprep.subr.mxu0 0.0
      %3402 = vmatpush1.msra.mxu0 0.0
      %3403 = vmatprep.subr.mxu0 0.0
      %3404 = vmatpush1.msra.mxu0 0.0
      %3405 = vmatprep.subr.mxu0 0.0
      %3406 = vmatpush1.msra.mxu0 0.0
      %3407 = vmatprep.subr.mxu0 0.0
      %3408 = vmatpush1.msra.mxu0 0.0
      %3409 = vmatprep.subr.mxu0 0.0
      %3410 = vmatpush1.msra.mxu0 0.0
      %3411 = vmatprep.subr.mxu0 0.0
      %3412 = vmatpush1.msra.mxu0 0.0
      %3413 = vmatprep.subr.mxu0 0.0
      %3414 = vmatpush1.msra.mxu0 0.0
      %3415 = vmatprep.subr.mxu0 0.0
      %3416 = vmatpush1.msra.mxu0 0.0
      %3417 = vmatprep.subr.mxu0 0.0
      %3418 = vmatpush1.msra.mxu0 0.0
      %3419 = vmatprep.subr.mxu0 0.0
      %3420 = vmatpush1.msra.mxu0 0.0
      %3421 = vmatprep.subr.mxu0 0.0
      %3422 = vmatpush1.msra.mxu0 0.0
      %3423 = vmatprep.subr.mxu0 0.0
      %3424 = vmatpush1.msra.mxu0 0.0
      %3425 = vmatprep.subr.mxu0 0.0
      %3426 = vmatpush1.msra.mxu0 0.0
      %3427 = vmatprep.subr.mxu0 0.0
      %3428 = vmatpush1.msra.mxu0 0.0
      %3429 = vmatprep.subr.mxu0 0.0
      %3430 = vmatpush1.msra.mxu0 0.0
      %3431 = vmatprep.subr.mxu0 0.0
      %3432 = vmatpush1.msra.mxu0 0.0
      %3433 = vmatprep.subr.mxu0 0.0
      %3434 = vmatpush1.msra.mxu0 0.0
      %3435 = vmatprep.subr.mxu0 0.0
      %3436 = vmatpush1.msra.mxu0 0.0
      %3437 = vmatprep.subr.mxu0 0.0
      %3438 = vmatpush1.msra.mxu0 0.0
      %3439 = vmatprep.subr.mxu0 0.0
      %3440 = vmatpush1.msra.mxu0 0.0
      %3441 = vmatprep.subr.mxu0 0.0
      %3442 = vmatpush1.msra.mxu0 0.0
      %3443 = vmatprep.subr.mxu0 0.0
      %3444 = vmatpush1.msra.mxu0 0.0
      %3445 = vmatprep.subr.mxu0 0.0
      %3446 = vmatpush1.msra.mxu0 0.0
      %3447 = vmatprep.subr.mxu0 0.0
      %3448 = vmatpush1.msra.mxu0 0.0
      %3449 = vmatprep.subr.mxu0 0.0
      %3450 = vmatpush1.msra.mxu0 0.0
      %3451 = vmatprep.subr.mxu0 0.0
      %3452 = vmatpush1.msra.mxu0 0.0
      %3453 = vmatprep.subr.mxu0 0.0
      %3454 = vmatpush1.msra.mxu0 0.0
      %3455 = vmatprep.subr.mxu0 0.0
      %3456 = vmatpush1.msra.mxu0 0.0
      %3457 = vmatprep.subr.mxu0 0.0
      %3458 = vmatpush1.msra.mxu0 0.0
      %3459 = vmatprep.subr.mxu0 0.0
      %3460 = vmatpush1.msra.mxu0 0.0
      %3461 = vmatprep.mubr.f32.mxu0 0.0
      %3462 = vmatmul.mubr.f32.gmra.mrb[0].mxu0 %v3395
      %v3463 = vpop.f32.mrb[0].mxu0
      %v3464 = vadd.f32 0.0, %v3463
      %v3465 = vpop.f32.mrb[0].mxu0
      %3466 = vdwg.mxu0
      %v3468 = vsel %vm3393, %v3391, 0
      %3470 = vmatprep.subr.mxu0 0.0
      %3471 = vmatpush1.msra.mxu0 %v3392
      %3472 = vmatprep.subr.mxu0 0.0
      %3473 = vmatpush1.msra.mxu0 0.0
      %3474 = vmatprep.subr.mxu0 0.0
      %3475 = vmatpush1.msra.mxu0 0.0
      %3476 = vmatprep.subr.mxu0 0.0
      %3477 = vmatpush1.msra.mxu0 0.0
      %3478 = vmatprep.subr.mxu0 0.0
      %3479 = vmatpush1.msra.mxu0 0.0
      %3480 = vmatprep.subr.mxu0 0.0
      %3481 = vmatpush1.msra.mxu0 0.0
      %3482 = vmatprep.subr.mxu0 0.0
      %3483 = vmatpush1.msra.mxu0 0.0
      %3484 = vmatprep.subr.mxu0 0.0
      %3485 = vmatpush1.msra.mxu0 0.0
      %3486 = vmatprep.subr.mxu0 0.0
      %3487 = vmatpush1.msra.mxu0 0.0
      %3488 = vmatprep.subr.mxu0 0.0
      %3489 = vmatpush1.msra.mxu0 0.0
      %3490 = vmatprep.subr.mxu0 0.0
      %3491 = vmatpush1.msra.mxu0 0.0
      %3492 = vmatprep.subr.mxu0 0.0
      %3493 = vmatpush1.msra.mxu0 0.0
      %3494 = vmatprep.subr.mxu0 0.0
      %3495 = vmatpush1.msra.mxu0 0.0
      %3496 = vmatprep.subr.mxu0 0.0
      %3497 = vmatpush1.msra.mxu0 0.0
      %3498 = vmatprep.subr.mxu0 0.0
      %3499 = vmatpush1.msra.mxu0 0.0
      %3500 = vmatprep.subr.mxu0 0.0
      %3501 = vmatpush1.msra.mxu0 0.0
      %3502 = vmatprep.subr.mxu0 0.0
      %3503 = vmatpush1.msra.mxu0 0.0
      %3504 = vmatprep.subr.mxu0 0.0
      %3505 = vmatpush1.msra.mxu0 0.0
      %3506 = vmatprep.subr.mxu0 0.0
      %3507 = vmatpush1.msra.mxu0 0.0
      %3508 = vmatprep.subr.mxu0 0.0
      %3509 = vmatpush1.msra.mxu0 0.0
      %3510 = vmatprep.subr.mxu0 0.0
      %3511 = vmatpush1.msra.mxu0 0.0
      %3512 = vmatprep.subr.mxu0 0.0
      %3513 = vmatpush1.msra.mxu0 0.0
      %3514 = vmatprep.subr.mxu0 0.0
      %3515 = vmatpush1.msra.mxu0 0.0
      %3516 = vmatprep.subr.mxu0 0.0
      %3517 = vmatpush1.msra.mxu0 0.0
      %3518 = vmatprep.subr.mxu0 0.0
      %3519 = vmatpush1.msra.mxu0 0.0
      %3520 = vmatprep.subr.mxu0 0.0
      %3521 = vmatpush1.msra.mxu0 0.0
      %3522 = vmatprep.subr.mxu0 0.0
      %3523 = vmatpush1.msra.mxu0 0.0
      %3524 = vmatprep.subr.mxu0 0.0
      %3525 = vmatpush1.msra.mxu0 0.0
      %3526 = vmatprep.subr.mxu0 0.0
      %3527 = vmatpush1.msra.mxu0 0.0
      %3528 = vmatprep.subr.mxu0 0.0
      %3529 = vmatpush1.msra.mxu0 0.0
      %3530 = vmatprep.subr.mxu0 0.0
      %3531 = vmatpush1.msra.mxu0 0.0
      %3532 = vmatprep.subr.mxu0 0.0
      %3533 = vmatpush1.msra.mxu0 0.0
      %3534 = vmatprep.mubr.f32.mxu0 0.0
      %3535 = vmatmul.mubr.f32.gmra.mrb[0].mxu0 %v3468
      %v3536 = vpop.f32.mrb[0].mxu0
      %v3537 = vadd.f32 0.0, %v3536
      %v3538 = vpop.f32.mrb[0].mxu0
      %3539 = vdwg.mxu0
      %v3540 = vld [vmem:[%s352] sm:$0x1]
      %v3541 = vadd.f32 %v3540, 1.0
      %v3542 = vld [vmem:[%s3] sm:$0x1]
      %v3543 = vmul.f32 %v3537, %v3542
      %v3544 = vmul.f32 %v3543, %v3541
      %v3545 = vsub.f32 %v3114, %v3464
      %v3546 = vmul.f32 %v3545, %v3544
      %v3547 = vld [vmem:[%s4] sm:$0x1]
      %v3548 = vmul.f32 %v3547, %v3541
      %v3549 = vadd.f32 %v3546, %v3548
      %v3550 = vld [vmem:[%s355] sm:$0x1]
      %v3551 = vadd.f32 %v3549, %v3550
      %v3552 = vlaneseq
      %v3553 = vshrl.u32 %v3552, 7
      %v3554 = vsub.s32 0, %v3553
      %v3555 = vrot.slane %v3544, %v3554
      %v3556 = vmul.f32 %v3082, %v3555
      %v3557 = vmul.f32 %v3083, %v3555
      %v3558 = vmul.f32 %v3084, %v3555
      %v3559 = vmul.f32 %v3085, %v3555
      %v3560 = vmul.f32 %v3086, %v3555
      %v3561 = vmul.f32 %v3087, %v3555
      %v3562 = vmul.f32 %v3088, %v3555
      %v3563 = vmul.f32 %v3089, %v3555
      %v3564 = vmul.f32 %v3090, %v3555
      %v3565 = vmul.f32 %v3091, %v3555
      %v3566 = vmul.f32 %v3092, %v3555
      %v3567 = vmul.f32 %v3093, %v3555
      %v3568 = vmul.f32 %v3094, %v3555
      %v3569 = vmul.f32 %v3095, %v3555
      %v3570 = vmul.f32 %v3096, %v3555
      %v3571 = vmul.f32 %v3097, %v3555
      %v3572 = vmul.f32 %v3098, %v3555
      %v3573 = vmul.f32 %v3099, %v3555
      %v3574 = vmul.f32 %v3100, %v3555
      %v3575 = vmul.f32 %v3101, %v3555
      %v3576 = vmul.f32 %v3102, %v3555
      %v3577 = vmul.f32 %v3103, %v3555
      %v3578 = vmul.f32 %v3104, %v3555
      %v3579 = vmul.f32 %v3105, %v3555
      %v3580 = vmul.f32 %v3106, %v3555
      %v3581 = vmul.f32 %v3107, %v3555
      %v3582 = vmul.f32 %v3108, %v3555
      %v3583 = vmul.f32 %v3109, %v3555
      %v3584 = vmul.f32 %v3110, %v3555
      %v3585 = vmul.f32 %v3111, %v3555
      %v3586 = vmul.f32 %v3112, %v3555
      %v3587 = vmul.f32 %v3113, %v3555
      %v3589 = vlaneseq
      %v3590 = vshrl.u32 %v3589, 7
      %v3591 = vsub.s32 0, %v3590
      %v3592 = vrot.slane %v3551, %v3591
      %v3594 = vadd.f32 %v3556, %v3592
      %v3595 = vadd.f32 %v3557, %v3592
      %v3596 = vadd.f32 %v3558, %v3592
      %v3597 = vadd.f32 %v3559, %v3592
      %v3598 = vadd.f32 %v3560, %v3592
      %v3599 = vadd.f32 %v3561, %v3592
      %v3600 = vadd.f32 %v3562, %v3592
      %v3601 = vadd.f32 %v3563, %v3592
      %v3602 = vadd.f32 %v3564, %v3592
      %v3603 = vadd.f32 %v3565, %v3592
      %v3604 = vadd.f32 %v3566, %v3592
      %v3605 = vadd.f32 %v3567, %v3592
      %v3606 = vadd.f32 %v3568, %v3592
      %v3607 = vadd.f32 %v3569, %v3592
      %v3608 = vadd.f32 %v3570, %v3592
      %v3609 = vadd.f32 %v3571, %v3592
      %v3610 = vadd.f32 %v3572, %v3592
      %v3611 = vadd.f32 %v3573, %v3592
      %v3612 = vadd.f32 %v3574, %v3592
      %v3613 = vadd.f32 %v3575, %v3592
      %v3614 = vadd.f32 %v3576, %v3592
      %v3615 = vadd.f32 %v3577, %v3592
      %v3616 = vadd.f32 %v3578, %v3592
      %v3617 = vadd.f32 %v3579, %v3592
      %v3618 = vadd.f32 %v3580, %v3592
      %v3619 = vadd.f32 %v3581, %v3592
      %v3620 = vadd.f32 %v3582, %v3592
      %v3621 = vadd.f32 %v3583, %v3592
      %v3622 = vadd.f32 %v3584, %v3592
      %v3623 = vadd.f32 %v3585, %v3592
      %v3624 = vadd.f32 %v3586, %v3592
      %v3625 = vadd.f32 %v3587, %v3592
      %v3626 = vpack.c.bf16 %v3595, %v3594
      %v3627 = vpack.c.bf16 %v3597, %v3596
      %v3628 = vpack.c.bf16 %v3599, %v3598
      %v3629 = vpack.c.bf16 %v3601, %v3600
      %v3630 = vpack.c.bf16 %v3603, %v3602
      %v3631 = vpack.c.bf16 %v3605, %v3604
      %v3632 = vpack.c.bf16 %v3607, %v3606
      %v3633 = vpack.c.bf16 %v3609, %v3608
      %v3634 = vpack.c.bf16 %v3611, %v3610
      %v3635 = vpack.c.bf16 %v3613, %v3612
      %v3636 = vpack.c.bf16 %v3615, %v3614
      %v3637 = vpack.c.bf16 %v3617, %v3616
      %v3638 = vpack.c.bf16 %v3619, %v3618
      %v3639 = vpack.c.bf16 %v3621, %v3620
      %v3640 = vpack.c.bf16 %v3623, %v3622
      %v3641 = vpack.c.bf16 %v3625, %v3624
      %v3642 = vxor.u32 %v3626, 2147516416
      %v3643 = vxor.u32 %v3627, 2147516416
      %v3644 = vxor.u32 %v3628, 2147516416
      %v3645 = vxor.u32 %v3629, 2147516416
      %v3646 = vxor.u32 %v3630, 2147516416
      %v3647 = vxor.u32 %v3631, 2147516416
      %v3648 = vxor.u32 %v3632, 2147516416
      %v3649 = vxor.u32 %v3633, 2147516416
      %v3650 = vxor.u32 %v3634, 2147516416
      %v3651 = vxor.u32 %v3635, 2147516416
      %v3652 = vxor.u32 %v3636, 2147516416
      %v3653 = vxor.u32 %v3637, 2147516416
      %v3654 = vxor.u32 %v3638, 2147516416
      %v3655 = vxor.u32 %v3639, 2147516416
      %v3656 = vxor.u32 %v3640, 2147516416
      %v3657 = vxor.u32 %v3641, 2147516416
      %v3659 = vmul.bf16 %v3642, 1069105081
      %v3660 = vpow.bf16.pop %v3659
      %v3662 = vmul.bf16 %v3643, 1069105081
      %v3663 = vpow.bf16.pop %v3662
      %v3665 = vmul.bf16 %v3644, 1069105081
      %v3666 = vpow.bf16.pop %v3665
      %v3668 = vmul.bf16 %v3645, 1069105081
      %v3669 = vpow.bf16.pop %v3668
      %v3671 = vmul.bf16 %v3646, 1069105081
      %v3672 = vpow.bf16.pop %v3671
      %v3674 = vmul.bf16 %v3647, 1069105081
      %v3675 = vpow.bf16.pop %v3674
      %v3677 = vmul.bf16 %v3648, 1069105081
      %v3678 = vpow.bf16.pop %v3677
      %v3680 = vmul.bf16 %v3649, 1069105081
      %v3681 = vpow.bf16.pop %v3680
      %v3683 = vmul.bf16 %v3650, 1069105081
      %v3684 = vpow.bf16.pop %v3683
      %v3686 = vmul.bf16 %v3651, 1069105081
      %v3687 = vpow.bf16.pop %v3686
      %v3689 = vmul.bf16 %v3652, 1069105081
      %v3690 = vpow.bf16.pop %v3689
      %v3692 = vmul.bf16 %v3653, 1069105081
      %v3693 = vpow.bf16.pop %v3692
      %v3695 = vmul.bf16 %v3654, 1069105081
      %v3696 = vpow.bf16.pop %v3695
      %v3698 = vmul.bf16 %v3655, 1069105081
      %v3699 = vpow.bf16.pop %v3698
      %v3701 = vmul.bf16 %v3656, 1069105081
      %v3702 = vpow.bf16.pop %v3701
      %v3704 = vmul.bf16 %v3657, 1069105081
      %v3705 = vpow.bf16.pop %v3704
      %v3706 = vadd.bf16 %v3660, 1065369472
      %v3707 = vadd.bf16 %v3663, 1065369472
      %v3708 = vadd.bf16 %v3666, 1065369472
      %v3709 = vadd.bf16 %v3669, 1065369472
      %v3710 = vadd.bf16 %v3672, 1065369472
      %v3711 = vadd.bf16 %v3675, 1065369472
      %v3712 = vadd.bf16 %v3678, 1065369472
      %v3713 = vadd.bf16 %v3681, 1065369472
      %v3714 = vadd.bf16 %v3684, 1065369472
      %v3715 = vadd.bf16 %v3687, 1065369472
      %v3716 = vadd.bf16 %v3690, 1065369472
      %v3717 = vadd.bf16 %v3693, 1065369472
      %v3718 = vadd.bf16 %v3696, 1065369472
      %v3719 = vadd.bf16 %v3699, 1065369472
      %v3720 = vadd.bf16 %v3702, 1065369472
      %v3721 = vadd.bf16 %v3705, 1065369472
      %v3722 = vrcp.bf16.pop %v3706
      %v3723 = vmul.bf16 1065369472, %v3722
      %v3724 = vrcp.bf16.pop %v3707
      %v3725 = vmul.bf16 1065369472, %v3724
      %v3726 = vrcp.bf16.pop %v3708
      %v3727 = vmul.bf16 1065369472, %v3726
      %v3728 = vrcp.bf16.pop %v3709
      %v3729 = vmul.bf16 1065369472, %v3728
      %v3730 = vrcp.bf16.pop %v3710
      %v3731 = vmul.bf16 1065369472, %v3730
      %v3732 = vrcp.bf16.pop %v3711
      %v3733 = vmul.bf16 1065369472, %v3732
      %v3734 = vrcp.bf16.pop %v3712
      %v3735 = vmul.bf16 1065369472, %v3734
      %v3736 = vrcp.bf16.pop %v3713
      %v3737 = vmul.bf16 1065369472, %v3736
      %v3738 = vrcp.bf16.pop %v3714
      %v3739 = vmul.bf16 1065369472, %v3738
      %v3740 = vrcp.bf16.pop %v3715
      %v3741 = vmul.bf16 1065369472, %v3740
      %v3742 = vrcp.bf16.pop %v3716
      %v3743 = vmul.bf16 1065369472, %v3742
      %v3744 = vrcp.bf16.pop %v3717
      %v3745 = vmul.bf16 1065369472, %v3744
      %v3746 = vrcp.bf16.pop %v3718
      %v3747 = vmul.bf16 1065369472, %v3746
      %v3748 = vrcp.bf16.pop %v3719
      %v3749 = vmul.bf16 1065369472, %v3748
      %v3750 = vrcp.bf16.pop %v3720
      %v3751 = vmul.bf16 1065369472, %v3750
      %v3752 = vrcp.bf16.pop %v3721
      %v3753 = vmul.bf16 1065369472, %v3752
      %v3754 = vmul.bf16 %v3626, %v3723
      %v3755 = vmul.bf16 %v3627, %v3725
      %v3756 = vmul.bf16 %v3628, %v3727
      %v3757 = vmul.bf16 %v3629, %v3729
      %v3758 = vmul.bf16 %v3630, %v3731
      %v3759 = vmul.bf16 %v3631, %v3733
      %v3760 = vmul.bf16 %v3632, %v3735
      %v3761 = vmul.bf16 %v3633, %v3737
      %v3762 = vmul.bf16 %v3634, %v3739
      %v3763 = vmul.bf16 %v3635, %v3741
      %v3764 = vmul.bf16 %v3636, %v3743
      %v3765 = vmul.bf16 %v3637, %v3745
      %v3766 = vmul.bf16 %v3638, %v3747
      %v3767 = vmul.bf16 %v3639, %v3749
      %v3768 = vmul.bf16 %v3640, %v3751
      %v3769 = vmul.bf16 %v3641, %v3753
      %v3786 = vunpack.c.l.b16 %v3754
      %v3787 = vunpack.c.h.b16 %v3754
      %v3788 = vunpack.c.l.b16 %v3755
      %v3789 = vunpack.c.h.b16 %v3755
      %v3790 = vunpack.c.l.b16 %v3756
      %v3791 = vunpack.c.h.b16 %v3756
      %v3792 = vunpack.c.l.b16 %v3757
      %v3793 = vunpack.c.h.b16 %v3757
      %v3794 = vunpack.c.l.b16 %v3758
      %v3795 = vunpack.c.h.b16 %v3758
      %v3796 = vunpack.c.l.b16 %v3759
      %v3797 = vunpack.c.h.b16 %v3759
      %v3798 = vunpack.c.l.b16 %v3760
      %v3799 = vunpack.c.h.b16 %v3760
      %v3800 = vunpack.c.l.b16 %v3761
      %v3801 = vunpack.c.h.b16 %v3761
      %v3802 = vunpack.c.l.b16 %v3762
      %v3803 = vunpack.c.h.b16 %v3762
      %v3804 = vunpack.c.l.b16 %v3763
      %v3805 = vunpack.c.h.b16 %v3763
      %v3806 = vunpack.c.l.b16 %v3764
      %v3807 = vunpack.c.h.b16 %v3764
      %v3808 = vunpack.c.l.b16 %v3765
      %v3809 = vunpack.c.h.b16 %v3765
      %v3810 = vunpack.c.l.b16 %v3766
      %v3811 = vunpack.c.h.b16 %v3766
      %v3812 = vunpack.c.l.b16 %v3767
      %v3813 = vunpack.c.h.b16 %v3767
      %v3814 = vunpack.c.l.b16 %v3768
      %v3815 = vunpack.c.h.b16 %v3768
      %v3816 = vunpack.c.l.b16 %v3769
      %v3817 = vunpack.c.h.b16 %v3769
      %v3818 = vpack.c.b16 %v3786, %v3786
      %v3819 = vpack.c.b16 %v3787, %v3787
      %v3820 = vpack.c.b16 %v3788, %v3788
      %v3821 = vpack.c.b16 %v3789, %v3789
      %v3822 = vpack.c.b16 %v3790, %v3790
      %v3823 = vpack.c.b16 %v3791, %v3791
      %v3824 = vpack.c.b16 %v3792, %v3792
      %v3825 = vpack.c.b16 %v3793, %v3793
      %v3826 = vpack.c.b16 %v3794, %v3794
      %v3827 = vpack.c.b16 %v3795, %v3795
      %v3828 = vpack.c.b16 %v3796, %v3796
      %v3829 = vpack.c.b16 %v3797, %v3797
      %v3830 = vpack.c.b16 %v3798, %v3798
      %v3831 = vpack.c.b16 %v3799, %v3799
      %v3832 = vpack.c.b16 %v3800, %v3800
      %v3833 = vpack.c.b16 %v3801, %v3801
      %v3834 = vpack.c.b16 %v3802, %v3802
      %v3835 = vpack.c.b16 %v3803, %v3803
      %v3836 = vpack.c.b16 %v3804, %v3804
      %v3837 = vpack.c.b16 %v3805, %v3805
      %v3838 = vpack.c.b16 %v3806, %v3806
      %v3839 = vpack.c.b16 %v3807, %v3807
      %v3840 = vpack.c.b16 %v3808, %v3808
      %v3841 = vpack.c.b16 %v3809, %v3809
      %v3842 = vpack.c.b16 %v3810, %v3810
      %v3843 = vpack.c.b16 %v3811, %v3811
      %v3844 = vpack.c.b16 %v3812, %v3812
      %v3845 = vpack.c.b16 %v3813, %v3813
      %v3846 = vpack.c.b16 %v3814, %v3814
      %v3847 = vpack.c.b16 %v3815, %v3815
      %v3848 = vpack.c.b16 %v3816, %v3816
      %v3849 = vpack.c.b16 %v3817, %v3817
      %vm3882 = vcmask 125952
      %3883 = vst.msk [vmem:[%s360] sm:$0xf] %vm3882, %v3818
      %3884 = vst.msk [vmem:[%s360 + $0x4] sm:$0xf] %vm3882, %v3819
      %3885 = vst.msk [vmem:[%s360 + $0x8] sm:$0xf] %vm3882, %v3820
      %3886 = vst.msk [vmem:[%s360 + $0xc] sm:$0xf] %vm3882, %v3821
      %3887 = vst.msk [vmem:[%s360 + $0x10] sm:$0xf] %vm3882, %v3822
      %3888 = vst.msk [vmem:[%s360 + $0x14] sm:$0xf] %vm3882, %v3823
      %3889 = vst.msk [vmem:[%s360 + $0x18] sm:$0xf] %vm3882, %v3824
      %3890 = vst.msk [vmem:[%s360 + $0x1c] sm:$0xf] %vm3882, %v3825
      %3891 = vst.msk [vmem:[%s360 + $0x20] sm:$0xf] %vm3882, %v3826
      %3892 = vst.msk [vmem:[%s360 + $0x24] sm:$0xf] %vm3882, %v3827
      %3893 = vst.msk [vmem:[%s360 + $0x28] sm:$0xf] %vm3882, %v3828
      %3894 = vst.msk [vmem:[%s360 + $0x2c] sm:$0xf] %vm3882, %v3829
      %3895 = vst.msk [vmem:[%s360 + $0x30] sm:$0xf] %vm3882, %v3830
      %3896 = vst.msk [vmem:[%s360 + $0x34] sm:$0xf] %vm3882, %v3831
      %3897 = vst.msk [vmem:[%s360 + $0x38] sm:$0xf] %vm3882, %v3832
      %3898 = vst.msk [vmem:[%s360 + $0x3c] sm:$0xf] %vm3882, %v3833
      %3899 = vst.msk [vmem:[%s360 + $0x40] sm:$0xf] %vm3882, %v3834
      %3900 = vst.msk [vmem:[%s360 + $0x44] sm:$0xf] %vm3882, %v3835
      %3901 = vst.msk [vmem:[%s360 + $0x48] sm:$0xf] %vm3882, %v3836
      %3902 = vst.msk [vmem:[%s360 + $0x4c] sm:$0xf] %vm3882, %v3837
      %3903 = vst.msk [vmem:[%s360 + $0x50] sm:$0xf] %vm3882, %v3838
      %3904 = vst.msk [vmem:[%s360 + $0x54] sm:$0xf] %vm3882, %v3839
      %3905 = vst.msk [vmem:[%s360 + $0x58] sm:$0xf] %vm3882, %v3840
      %3906 = vst.msk [vmem:[%s360 + $0x5c] sm:$0xf] %vm3882, %v3841
      %3907 = vst.msk [vmem:[%s360 + $0x60] sm:$0xf] %vm3882, %v3842
      %3908 = vst.msk [vmem:[%s360 + $0x64] sm:$0xf] %vm3882, %v3843
      %3909 = vst.msk [vmem:[%s360 + $0x68] sm:$0xf] %vm3882, %v3844
      %3910 = vst.msk [vmem:[%s360 + $0x6c] sm:$0xf] %vm3882, %v3845
      %3911 = vst.msk [vmem:[%s360 + $0x70] sm:$0xf] %vm3882, %v3846
      %3912 = vst.msk [vmem:[%s360 + $0x74] sm:$0xf] %vm3882, %v3847
      %3913 = vst.msk [vmem:[%s360 + $0x78] sm:$0xf] %vm3882, %v3848
      %3914 = vst.msk [vmem:[%s360 + $0x7c] sm:$0xf] %vm3882, %v3849
      %p3915 = scmp.lt.s32.totalorder %s20, 1
      %s3916 = scalar_select %p3915, %s20, 1
      %s3917 = smul.addr %s3916, 32
      %s3918 = smul.addr %s3917, 4
      %s3919 = scalar_lea.vmem %s9, %s3918
      // Predicated region
      $region57: #{tpu_custom_call.1} parent=55 // pred_check
        %p3920 = pneg %p242
      $region58: #{tpu_custom_call.1} parent=55 // pred_check_branch
        %3922 = sbr.rel (%p3920) target = $region60
      $region59: #{tpu_custom_call.1} parent=55 // pred_region
        _
      $region60: #{tpu_custom_call.1} parent=55 // pred_fallthru
        _
    $region56: #{tpu_custom_call.1} parent=5 // pred_fallthru
      _
    %p3923 = scmp.le.s32.totalorder 2, %s15
    // Predicated region
    $region61: #{tpu_custom_call.1} parent=5 // pred_check
      %p3924 = pneg %p3923
    $region62: #{tpu_custom_call.1} parent=5 // pred_check_branch
      %3926 = sbr.rel (%p3924) target = $region64
    $region63: #{tpu_custom_call.1} parent=5 // pred_region
      %s3927 = ssub.s32 %s15, 2
      // Predicated region
      $region65: #{tpu_custom_call.1} parent=63 // pred_check
        %p3928 = pneg %p248
      $region66: #{tpu_custom_call.1} parent=63 // pred_check_branch
        %3930 = sbr.rel (%p3928) target = $region68
      $region67: #{tpu_custom_call.1} parent=63 // pred_region
        %p3931 = scmp.lt.s32.totalorder %s21, 1
        %s3932 = scalar_select %p3931, %s21, 1
        %s3933 = smul.addr %s3932, 32
        %s3934 = smul.addr %s3933, 4
        %s3935 = scalar_lea.vmem %s9, %s3934
      $region68: #{tpu_custom_call.1} parent=63 // pred_fallthru
        _
    $region64: #{tpu_custom_call.1} parent=5 // pred_fallthru
      _
  $region6: #{tpu_custom_call.1} parent=0 // loop_footer
    %s19 = sadd.s32 1, %s15
  $region7: #{tpu_custom_call.1} parent=0 // loop_footer_branch
    %14 = sbr.rel target = $region3
  $region8: #{tpu_custom_call.1} parent=0 // loop_exit
    _

</llo_original>
